<compile_context>
chip_gen: v7x
topology: tpu7x:2x2x1
jax: 0.10.0
libtpu: 0.0.40
codegen_flags: <defaults>
</compile_context>

<pallas_src>
import functools

import numpy as np

import jax
import jax.numpy as jnp
from jax.experimental import pallas as pl
from jax.experimental.pallas import tpu as pltpu


# --------------------------------------------------------------------------
# Fused Pallas kernel: LayerNorm + conv1 + conv2 + deconv1 + deconv2 (+ SiLUs)
# --------------------------------------------------------------------------

def _diamond_fwd_kernel(x_ref, lnw_ref, lnb_ref,
                        l1_ref, r1_ref, b1_ref,
                        l2_ref, r2_ref, b2_ref,
                        l3_ref, r3_ref, b3_ref,
                        l4_ref, r4_ref, b4_ref,
                        o_ref, *, eps, inv_feat):
    x = x_ref[0]                                    # [C*H, W] = [448, 56]

    # ---- LayerNorm over all C*H*W features: one pass (sum + sum of squares).
    s1 = jnp.sum(x)
    s2 = jnp.sum(x * x)
    mean = s1 * inv_feat
    var = s2 * inv_feat - mean * mean
    inv = jax.lax.rsqrt(var + eps)
    xn = (x - mean) * inv * lnw_ref[...] + lnb_ref[...]

    def silu(v):
        return v * jax.nn.sigmoid(v)

    def stage(act, l_ref, r_ref, b_ref):
        # out = bias + sum_t  L[t] @ act @ R[t]   (plain 2-D MXU matmuls)
        acc = b_ref[...]                            # [rows, 1], broadcasts
        for t in range(2):                          # static unroll (kw taps)
            acc = acc + jnp.dot(
                jnp.dot(l_ref[t], act, preferred_element_type=jnp.float32),
                r_ref[t], preferred_element_type=jnp.float32)
        return acc

    a1 = silu(stage(xn, l1_ref, r1_ref, b1_ref))    # conv1  -> [c_mid*14, 14]
    a2 = silu(stage(a1, l2_ref, r2_ref, b2_ref))    # conv2  -> [c_out*4,  4]
    d1 = silu(stage(a2, l3_ref, r3_ref, b3_ref))    # deconv1-> [c_mid*14, 14]
    y = stage(d1, l4_ref, r4_ref, b4_ref)           # deconv2-> [c_in*54,  54]
    o_ref[0] = y


# --------------------------------------------------------------------------
# Host-side (one-time) preparation of the factorised weight / selection matrices
# --------------------------------------------------------------------------

def prepare_operands(params, c_in=8, H=56, W=56, k=2, s=4):
    c_mid = params["conv1_w"].shape[0]
    c_out = params["conv2_w"].shape[0]
    h1 = (H - k) // s + 1           # 14   conv1 output
    h2 = (h1 - k) // s + 1          # 4    conv2 output
    h3 = s * (h2 - 1) + k           # 14   deconv1 output
    h4 = s * (h1 - 1) + k           # 54   deconv2 output

    w1 = np.asarray(params["conv1_w"], np.float32)    # [c_mid, c_in, 2, 2]
    w2 = np.asarray(params["conv2_w"], np.float32)    # [c_out, c_mid, 2, 2]
    wd1 = np.asarray(params["deconv1_w"], np.float32)  # [c_out, c_mid, 2, 2]  (Cin,Cout,kh,kw)
    wd2 = np.asarray(params["deconv2_w"], np.float32)  # [c_mid, c_in, 2, 2]   (Cin,Cout,kh,kw)

    # conv1:  a1[cm*h1+i, j] = b1[cm] + sum_dw (L1[dw] @ XN @ R1[dw])[cm*h1+i, j]
    L1 = np.zeros((2, c_mid * h1, c_in * H), np.float32)
    R1 = np.zeros((2, W, h1), np.float32)
    for dw in range(k):
        for cm in range(c_mid):
            for i in range(h1):
                for ci in range(c_in):
                    for dh in range(k):
                        L1[dw, cm * h1 + i, ci * H + s * i + dh] = w1[cm, ci, dh, dw]
        for j in range(h1):
            R1[dw, s * j + dw, j] = 1.0

    # conv2:  a2[co*h2+p, q] = b2[co] + sum_kw (L2[kw] @ a1 @ R2[kw])[co*h2+p, q]
    L2 = np.zeros((2, c_out * h2, c_mid * h1), np.float32)
    R2 = np.zeros((2, h1, h2), np.float32)
    for kw in range(k):
        for co in range(c_out):
            for p in range(h2):
                for cm in range(c_mid):
                    for kh in range(k):
                        L2[kw, co * h2 + p, cm * h1 + s * p + kh] = w2[co, cm, kh, kw]
        for q in range(h2):
            R2[kw, s * q + kw, q] = 1.0

    # deconv1: d1[cm*h3+i, j] = bd1[cm] + sum_kw (L3[kw] @ a2 @ R3[kw]);
    #          non-contributing positions get bias only (zero rows/cols in L3/R3).
    L3 = np.zeros((2, c_mid * h3, c_out * h2), np.float32)
    R3 = np.zeros((2, h2, h3), np.float32)
    for kw in range(k):
        for cm in range(c_mid):
            for p in range(h2):
                for kh in range(k):
                    for co in range(c_out):
                        L3[kw, cm * h3 + s * p + kh, co * h2 + p] = wd1[co, cm, kh, kw]
        for q in range(h2):
            R3[kw, q, s * q + kw] = 1.0

    # deconv2 + scatter into the final (C*H_out, W_out) layout:
    #   y[ci*h4 + 4i + kh, 4j + kw] = bd2[ci] + sum_cm d1[cm*h3+i, j]*wd2[cm,ci,kh,kw]
    L4 = np.zeros((2, c_in * h4, c_mid * h3), np.float32)
    R4 = np.zeros((2, h3, h4), np.float32)
    for kw in range(k):
        for ci in range(c_in):
            for i in range(h3):
                for kh in range(k):
                    for cm in range(c_mid):
                        L4[kw, ci * h4 + s * i + kh, cm * h3 + i] = wd2[cm, ci, kh, kw]
        for j in range(h3):
            R4[kw, j, s * j + kw] = 1.0

    ops = {
        "ln_w": np.asarray(params["ln_w"], np.float32).reshape(c_in * H, W),
        "ln_b": np.asarray(params["ln_b"], np.float32).reshape(c_in * H, W),
        "L1": L1, "R1": R1,
        "b1": np.repeat(np.asarray(params["conv1_b"], np.float32), h1)[:, None],
        "L2": L2, "R2": R2,
        "b2": np.repeat(np.asarray(params["conv2_b"], np.float32), h2)[:, None],
        "L3": L3, "R3": R3,
        "b3": np.repeat(np.asarray(params["deconv1_b"], np.float32), h3)[:, None],
        "L4": L4, "R4": R4,
        "b4": np.repeat(np.asarray(params["deconv2_b"], np.float32), h4)[:, None],
    }
    return {name: jnp.asarray(v) for name, v in ops.items()}, (h1, h2, h3, h4)


# --------------------------------------------------------------------------
# Wrapper: single fused pallas_call (grid over batch, "parallel" for v7x megacore)
# --------------------------------------------------------------------------

_CONST_ORDER = ["ln_w", "ln_b", "L1", "R1", "b1", "L2", "R2", "b2",
                "L3", "R3", "b3", "L4", "R4", "b4"]


def _replicated_spec(shape):
    zeros = (0,) * len(shape)
    return pl.BlockSpec(tuple(shape), lambda i, _z=zeros: _z)


def diamond_style_forward(x_nchw, ops, dims):
    _, _, _, h4 = dims
    n, c, hh, ww = x_nchw.shape
    x2 = x_nchw.reshape(n, c * hh, ww).astype(jnp.float32)      # free reshape

    consts = [ops[name] for name in _CONST_ORDER]
    in_specs = [pl.BlockSpec((1, c * hh, ww), lambda i: (i, 0, 0))]
    in_specs += [_replicated_spec(a.shape) for a in consts]

    out = pl.pallas_call(
        functools.partial(_diamond_fwd_kernel, eps=1e-5,
                          inv_feat=1.0 / float(c * hh * ww)),
        out_shape=jax.ShapeDtypeStruct((n, c * h4, h4), jnp.float32),
        grid=(n,),
        in_specs=in_specs,
        out_specs=pl.BlockSpec((1, c * h4, h4), lambda i: (i, 0, 0)),
        compiler_params=pltpu.CompilerParams(
            dimension_semantics=("parallel",)),
    )(x2, *consts)

    y = out.reshape(n, c, h4, h4)                               # free reshape
    loss_total = jnp.float32(-999.0)                            # eval mode
    return y, loss_total


# --------------------------------------------------------------------------
# Parameters (deterministic, synthetic; PyTorch weight layouts)
# --------------------------------------------------------------------------

def init_params(key, input_size, output_size, spatial=56):
    c_in, c_mid, c_out = input_size, output_size // 4, output_size
    ks = jax.random.split(key, 8)
    return {
        "ln_w": jnp.ones((c_in, spatial, spatial), jnp.float32),
        "ln_b": jnp.zeros((c_in, spatial, spatial), jnp.float32),
        # Conv2d: [Cout, Cin, kh, kw]; ConvTranspose2d: [Cin, Cout, kh, kw]
        "conv1_w": 0.3 * jax.random.normal(ks[0], (c_mid, c_in, 2, 2), jnp.float32),
        "conv1_b": 0.1 * jax.random.normal(ks[1], (c_mid,), jnp.float32),
        "conv2_w": 0.3 * jax.random.normal(ks[2], (c_out, c_mid, 2, 2), jnp.float32),
        "conv2_b": 0.1 * jax.random.normal(ks[3], (c_out,), jnp.float32),
        "deconv1_w": 0.3 * jax.random.normal(ks[4], (c_out, c_mid, 2, 2), jnp.float32),
        "deconv1_b": 0.1 * jax.random.normal(ks[5], (c_mid,), jnp.float32),
        "deconv2_w": 0.3 * jax.random.normal(ks[6], (c_mid, c_in, 2, 2), jnp.float32),
        "deconv2_b": 0.1 * jax.random.normal(ks[7], (c_in,), jnp.float32),
    }


# --------------------------------------------------------------------------
# Plain-JAX reference of the PyTorch forward_pass (for the self-check)
# --------------------------------------------------------------------------

def reference_forward(x, params, eps=1e-5, stride=4):
    hp = jax.lax.Precision.HIGHEST
    n = x.shape[0]
    xf = x.reshape(n, -1).astype(jnp.float32)
    mean = jnp.mean(xf, axis=1, keepdims=True)
    var = jnp.mean((xf - mean) ** 2, axis=1, keepdims=True)
    xn = ((xf - mean) / jnp.sqrt(var + eps)).reshape(x.shape)
    xn = xn * params["ln_w"][None] + params["ln_b"][None]

    def silu(v):
        return v * jax.nn.sigmoid(v)

    def conv(v, wgt, b):
        out = jax.lax.conv_general_dilated(
            v, wgt, (stride, stride), "VALID",
            dimension_numbers=("NCHW", "OIHW", "NCHW"), precision=hp)
        return out + b[None, :, None, None]

    def deconv(v, wgt, b):
        nb, _, hin, win = v.shape
        _, cout, kh, kw = wgt.shape
        contrib = jnp.einsum("ncij,cokl->noikjl", v, wgt, precision=hp)
        full = jnp.zeros((nb, cout, hin, stride, win, stride), jnp.float32)
        full = full.at[:, :, :, :kh, :, :kw].set(contrib)
        full = full.reshape(nb, cout, hin * stride, win * stride)
        hout, wout = stride * (hin - 1) + kh, stride * (win - 1) + kw
        return full[:, :, :hout, :wout] + b[None, :, None, None]

    a1 = silu(conv(xn, params["conv1_w"], params["conv1_b"]))
    a2 = silu(conv(a1, params["conv2_w"], params["conv2_b"]))
    d1 = silu(deconv(a2, params["deconv1_w"], params["deconv1_b"]))
    return deconv(d1, params["deconv2_w"], params["deconv2_b"])


# --------------------------------------------------------------------------

if __name__ == "__main__":
    input_size = 8            # dictated by LayerNorm([8, 56, 56])
    output_size = 16
    stylevel = 1.0            # unused in the forward computation
    batch = 2

    params = init_params(jax.random.PRNGKey(42), input_size, output_size)
    ops, dims = prepare_operands(params)

    x = jax.random.normal(jax.random.PRNGKey(0),
                          (batch, input_size, 56, 56), jnp.float32)
    # l1 only participates in training mode (Gram-loss target); unused in eval.
    l1 = jax.random.normal(jax.random.PRNGKey(1),
                           (batch, input_size, 56, 56), jnp.float32)

    fwd = jax.jit(lambda xx, oo: diamond_style_forward(xx, oo, dims))
    y, loss_total = fwd(x, ops)
    jax.block_until_ready(y)

    assert y.shape == (batch, input_size, 54, 54), y.shape
    assert y.dtype == jnp.float32
    assert float(loss_total) == -999.0

    # numerical self-check against the plain-JAX reference of forward_pass
    y_ref = reference_forward(x, params)
    np.testing.assert_allclose(np.asarray(y), np.asarray(y_ref),
                               rtol=5e-2, atol=5e-3)

    print("KERNEL_OK")
</pallas_src>

<mosaic_0001>
module attributes {stable_mosaic.version = 11 : i64} {
  func.func @_diamond_fwd_kernel(%arg0: i32, %arg1: memref<1x448x56xf32, #tpu.memory_space<vmem>>, %arg2: memref<448x56xf32, #tpu.memory_space<vmem>>, %arg3: memref<448x56xf32, #tpu.memory_space<vmem>>, %arg4: memref<2x56x448xf32, #tpu.memory_space<vmem>>, %arg5: memref<2x56x14xf32, #tpu.memory_space<vmem>>, %arg6: memref<56x1xf32, #tpu.memory_space<vmem>>, %arg7: memref<2x64x56xf32, #tpu.memory_space<vmem>>, %arg8: memref<2x14x4xf32, #tpu.memory_space<vmem>>, %arg9: memref<64x1xf32, #tpu.memory_space<vmem>>, %arg10: memref<2x56x64xf32, #tpu.memory_space<vmem>>, %arg11: memref<2x4x14xf32, #tpu.memory_space<vmem>>, %arg12: memref<56x1xf32, #tpu.memory_space<vmem>>, %arg13: memref<2x432x56xf32, #tpu.memory_space<vmem>>, %arg14: memref<2x14x54xf32, #tpu.memory_space<vmem>>, %arg15: memref<432x1xf32, #tpu.memory_space<vmem>>, %arg16: memref<1x432x54xf32, #tpu.memory_space<vmem>>) attributes {dimension_semantics = [#tpu.dimension_semantics<parallel>], iteration_bounds = array<i64: 2>, scalar_prefetch = 0 : i64, scratch_operands = 0 : i64, tpu.core_type = #tpu.core_type<tc>, window_params = [{transform_indices = @transform_0, window_bounds = array<i64: 1, 448, 56>}, {pipeline_mode = #tpu.pipeline_mode<synchronous>, transform_indices = @transform_1, window_bounds = array<i64: 448, 56>}, {pipeline_mode = #tpu.pipeline_mode<synchronous>, transform_indices = @transform_2, window_bounds = array<i64: 448, 56>}, {pipeline_mode = #tpu.pipeline_mode<synchronous>, transform_indices = @transform_3, window_bounds = array<i64: 2, 56, 448>}, {pipeline_mode = #tpu.pipeline_mode<synchronous>, transform_indices = @transform_4, window_bounds = array<i64: 2, 56, 14>}, {pipeline_mode = #tpu.pipeline_mode<synchronous>, transform_indices = @transform_5, window_bounds = array<i64: 56, 1>}, {pipeline_mode = #tpu.pipeline_mode<synchronous>, transform_indices = @transform_6, window_bounds = array<i64: 2, 64, 56>}, {pipeline_mode = #tpu.pipeline_mode<synchronous>, transform_indices = @transform_7, window_bounds = array<i64: 2, 14, 4>}, {pipeline_mode = #tpu.pipeline_mode<synchronous>, transform_indices = @transform_8, window_bounds = array<i64: 64, 1>}, {pipeline_mode = #tpu.pipeline_mode<synchronous>, transform_indices = @transform_9, window_bounds = array<i64: 2, 56, 64>}, {pipeline_mode = #tpu.pipeline_mode<synchronous>, transform_indices = @transform_10, window_bounds = array<i64: 2, 4, 14>}, {pipeline_mode = #tpu.pipeline_mode<synchronous>, transform_indices = @transform_11, window_bounds = array<i64: 56, 1>}, {pipeline_mode = #tpu.pipeline_mode<synchronous>, transform_indices = @transform_12, window_bounds = array<i64: 2, 432, 56>}, {pipeline_mode = #tpu.pipeline_mode<synchronous>, transform_indices = @transform_13, window_bounds = array<i64: 2, 14, 54>}, {pipeline_mode = #tpu.pipeline_mode<synchronous>, transform_indices = @transform_14, window_bounds = array<i64: 432, 1>}, {transform_indices = @transform_15, window_bounds = array<i64: 1, 432, 54>}]} {
    %c0 = arith.constant 0 : index
    %c0_0 = arith.constant 0 : index
    %c0_1 = arith.constant 0 : index
    %0 = vector.load %arg1[%c0, %c0_0, %c0_1] : memref<1x448x56xf32, #tpu.memory_space<vmem>>, vector<1x448x56xf32>
    %1 = vector.shape_cast %0 : vector<1x448x56xf32> to vector<448x56xf32>
    %2 = vector.shape_cast %1 : vector<448x56xf32> to vector<1x448x56xf32>
    %cst = arith.constant dense<0.000000e+00> : vector<1xf32>
    %3 = vector.multi_reduction <add>, %2, %cst [1, 2] : vector<1x448x56xf32> to vector<1xf32>
    %4 = vector.shape_cast %3 : vector<1xf32> to vector<1x1x1xf32>
    %5 = vector.extract %4[0, 0, 0] : f32 from vector<1x1x1xf32>
    %6 = arith.mulf %1, %1 : vector<448x56xf32>
    %7 = vector.shape_cast %6 : vector<448x56xf32> to vector<1x448x56xf32>
    %cst_2 = arith.constant dense<0.000000e+00> : vector<1xf32>
    %8 = vector.multi_reduction <add>, %7, %cst_2 [1, 2] : vector<1x448x56xf32> to vector<1xf32>
    %9 = vector.shape_cast %8 : vector<1xf32> to vector<1x1x1xf32>
    %10 = vector.extract %9[0, 0, 0] : f32 from vector<1x1x1xf32>
    %cst_3 = arith.constant 3.98596931E-5 : f32
    %11 = arith.mulf %5, %cst_3 : f32
    %cst_4 = arith.constant 3.98596931E-5 : f32
    %12 = arith.mulf %10, %cst_4 : f32
    %13 = arith.mulf %11, %11 : f32
    %14 = arith.subf %12, %13 : f32
    %cst_5 = arith.constant 9.99999974E-6 : f32
    %15 = arith.addf %14, %cst_5 : f32
    %16 = math.rsqrt %15 : f32
    %17 = vector.broadcast %11 : f32 to vector<448x56xf32>
    %18 = arith.subf %1, %17 : vector<448x56xf32>
    %19 = vector.broadcast %16 : f32 to vector<448x56xf32>
    %20 = arith.mulf %18, %19 : vector<448x56xf32>
    %c0_6 = arith.constant 0 : index
    %c0_7 = arith.constant 0 : index
    %21 = vector.load %arg2[%c0_6, %c0_7] : memref<448x56xf32, #tpu.memory_space<vmem>>, vector<448x56xf32>
    %22 = arith.mulf %20, %21 : vector<448x56xf32>
    %c0_8 = arith.constant 0 : index
    %c0_9 = arith.constant 0 : index
    %23 = vector.load %arg3[%c0_8, %c0_9] : memref<448x56xf32, #tpu.memory_space<vmem>>, vector<448x56xf32>
    %24 = arith.addf %22, %23 : vector<448x56xf32>
    %c0_10 = arith.constant 0 : index
    %c0_11 = arith.constant 0 : index
    %25 = vector.load %arg6[%c0_10, %c0_11] : memref<56x1xf32, #tpu.memory_space<vmem>>, vector<56x1xf32>
    %c0_12 = arith.constant 0 : index
    %c0_13 = arith.constant 0 : index
    %c0_14 = arith.constant 0 : index
    %26 = vector.load %arg4[%c0_12, %c0_13, %c0_14] : memref<2x56x448xf32, #tpu.memory_space<vmem>>, vector<1x56x448xf32>
    %27 = vector.shape_cast %26 : vector<1x56x448xf32> to vector<56x448xf32>
    %cst_15 = arith.constant dense<0.000000e+00> : vector<56x56xf32>
    %28 = tpu.matmul %27, %24, %cst_15 {dimension_numbers = #tpu.dot_dimension_numbers<[1], [0], [0], [1], [0, 0, 1, 1], [], []>} : vector<56x448xf32>, vector<448x56xf32>, vector<56x56xf32> -> vector<56x56xf32>
    %c0_16 = arith.constant 0 : index
    %c0_17 = arith.constant 0 : index
    %c0_18 = arith.constant 0 : index
    %29 = vector.load %arg5[%c0_16, %c0_17, %c0_18] : memref<2x56x14xf32, #tpu.memory_space<vmem>>, vector<1x56x14xf32>
    %30 = vector.shape_cast %29 : vector<1x56x14xf32> to vector<56x14xf32>
    %cst_19 = arith.constant dense<0.000000e+00> : vector<56x14xf32>
    %31 = tpu.matmul %28, %30, %cst_19 {dimension_numbers = #tpu.dot_dimension_numbers<[1], [0], [0], [1], [0, 0, 1, 1], [], []>} : vector<56x56xf32>, vector<56x14xf32>, vector<56x14xf32> -> vector<56x14xf32>
    %32 = vector.broadcast %25 : vector<56x1xf32> to vector<56x14xf32>
    %33 = arith.addf %32, %31 : vector<56x14xf32>
    %c1 = arith.constant 1 : index
    %c0_20 = arith.constant 0 : index
    %c0_21 = arith.constant 0 : index
    %34 = vector.load %arg4[%c1, %c0_20, %c0_21] : memref<2x56x448xf32, #tpu.memory_space<vmem>>, vector<1x56x448xf32>
    %35 = vector.shape_cast %34 : vector<1x56x448xf32> to vector<56x448xf32>
    %cst_22 = arith.constant dense<0.000000e+00> : vector<56x56xf32>
    %36 = tpu.matmul %35, %24, %cst_22 {dimension_numbers = #tpu.dot_dimension_numbers<[1], [0], [0], [1], [0, 0, 1, 1], [], []>} : vector<56x448xf32>, vector<448x56xf32>, vector<56x56xf32> -> vector<56x56xf32>
    %c1_23 = arith.constant 1 : index
    %c0_24 = arith.constant 0 : index
    %c0_25 = arith.constant 0 : index
    %37 = vector.load %arg5[%c1_23, %c0_24, %c0_25] : memref<2x56x14xf32, #tpu.memory_space<vmem>>, vector<1x56x14xf32>
    %38 = vector.shape_cast %37 : vector<1x56x14xf32> to vector<56x14xf32>
    %cst_26 = arith.constant dense<0.000000e+00> : vector<56x14xf32>
    %39 = tpu.matmul %36, %38, %cst_26 {dimension_numbers = #tpu.dot_dimension_numbers<[1], [0], [0], [1], [0, 0, 1, 1], [], []>} : vector<56x56xf32>, vector<56x14xf32>, vector<56x14xf32> -> vector<56x14xf32>
    %40 = arith.addf %33, %39 : vector<56x14xf32>
    %41 = arith.negf %40 : vector<56x14xf32>
    %42 = math.exp %41 : vector<56x14xf32>
    %cst_27 = arith.constant 1.000000e+00 : f32
    %43 = vector.broadcast %cst_27 : f32 to vector<56x14xf32>
    %44 = arith.addf %43, %42 : vector<56x14xf32>
    %45 = arith.divf %43, %44 : vector<56x14xf32>
    %46 = arith.mulf %40, %45 : vector<56x14xf32>
    %c0_28 = arith.constant 0 : index
    %c0_29 = arith.constant 0 : index
    %47 = vector.load %arg9[%c0_28, %c0_29] : memref<64x1xf32, #tpu.memory_space<vmem>>, vector<64x1xf32>
    %c0_30 = arith.constant 0 : index
    %c0_31 = arith.constant 0 : index
    %c0_32 = arith.constant 0 : index
    %48 = vector.load %arg7[%c0_30, %c0_31, %c0_32] : memref<2x64x56xf32, #tpu.memory_space<vmem>>, vector<1x64x56xf32>
    %49 = vector.shape_cast %48 : vector<1x64x56xf32> to vector<64x56xf32>
    %cst_33 = arith.constant dense<0.000000e+00> : vector<64x14xf32>
    %50 = tpu.matmul %49, %46, %cst_33 {dimension_numbers = #tpu.dot_dimension_numbers<[1], [0], [0], [1], [0, 0, 1, 1], [], []>} : vector<64x56xf32>, vector<56x14xf32>, vector<64x14xf32> -> vector<64x14xf32>
    %c0_34 = arith.constant 0 : index
    %c0_35 = arith.constant 0 : index
    %c0_36 = arith.constant 0 : index
    %51 = vector.load %arg8[%c0_34, %c0_35, %c0_36] : memref<2x14x4xf32, #tpu.memory_space<vmem>>, vector<1x14x4xf32>
    %52 = vector.shape_cast %51 : vector<1x14x4xf32> to vector<14x4xf32>
    %cst_37 = arith.constant dense<0.000000e+00> : vector<64x4xf32>
    %53 = tpu.matmul %50, %52, %cst_37 {dimension_numbers = #tpu.dot_dimension_numbers<[1], [0], [0], [1], [0, 0, 1, 1], [], []>} : vector<64x14xf32>, vector<14x4xf32>, vector<64x4xf32> -> vector<64x4xf32>
    %54 = vector.broadcast %47 : vector<64x1xf32> to vector<64x4xf32>
    %55 = arith.addf %54, %53 : vector<64x4xf32>
    %c1_38 = arith.constant 1 : index
    %c0_39 = arith.constant 0 : index
    %c0_40 = arith.constant 0 : index
    %56 = vector.load %arg7[%c1_38, %c0_39, %c0_40] : memref<2x64x56xf32, #tpu.memory_space<vmem>>, vector<1x64x56xf32>
    %57 = vector.shape_cast %56 : vector<1x64x56xf32> to vector<64x56xf32>
    %cst_41 = arith.constant dense<0.000000e+00> : vector<64x14xf32>
    %58 = tpu.matmul %57, %46, %cst_41 {dimension_numbers = #tpu.dot_dimension_numbers<[1], [0], [0], [1], [0, 0, 1, 1], [], []>} : vector<64x56xf32>, vector<56x14xf32>, vector<64x14xf32> -> vector<64x14xf32>
    %c1_42 = arith.constant 1 : index
    %c0_43 = arith.constant 0 : index
    %c0_44 = arith.constant 0 : index
    %59 = vector.load %arg8[%c1_42, %c0_43, %c0_44] : memref<2x14x4xf32, #tpu.memory_space<vmem>>, vector<1x14x4xf32>
    %60 = vector.shape_cast %59 : vector<1x14x4xf32> to vector<14x4xf32>
    %cst_45 = arith.constant dense<0.000000e+00> : vector<64x4xf32>
    %61 = tpu.matmul %58, %60, %cst_45 {dimension_numbers = #tpu.dot_dimension_numbers<[1], [0], [0], [1], [0, 0, 1, 1], [], []>} : vector<64x14xf32>, vector<14x4xf32>, vector<64x4xf32> -> vector<64x4xf32>
    %62 = arith.addf %55, %61 : vector<64x4xf32>
    %63 = arith.negf %62 : vector<64x4xf32>
    %64 = math.exp %63 : vector<64x4xf32>
    %cst_46 = arith.constant 1.000000e+00 : f32
    %65 = vector.broadcast %cst_46 : f32 to vector<64x4xf32>
    %66 = arith.addf %65, %64 : vector<64x4xf32>
    %67 = arith.divf %65, %66 : vector<64x4xf32>
    %68 = arith.mulf %62, %67 : vector<64x4xf32>
    %c0_47 = arith.constant 0 : index
    %c0_48 = arith.constant 0 : index
    %69 = vector.load %arg12[%c0_47, %c0_48] : memref<56x1xf32, #tpu.memory_space<vmem>>, vector<56x1xf32>
    %c0_49 = arith.constant 0 : index
    %c0_50 = arith.constant 0 : index
    %c0_51 = arith.constant 0 : index
    %70 = vector.load %arg10[%c0_49, %c0_50, %c0_51] : memref<2x56x64xf32, #tpu.memory_space<vmem>>, vector<1x56x64xf32>
    %71 = vector.shape_cast %70 : vector<1x56x64xf32> to vector<56x64xf32>
    %cst_52 = arith.constant dense<0.000000e+00> : vector<56x4xf32>
    %72 = tpu.matmul %71, %68, %cst_52 {dimension_numbers = #tpu.dot_dimension_numbers<[1], [0], [0], [1], [0, 0, 1, 1], [], []>} : vector<56x64xf32>, vector<64x4xf32>, vector<56x4xf32> -> vector<56x4xf32>
    %c0_53 = arith.constant 0 : index
    %c0_54 = arith.constant 0 : index
    %c0_55 = arith.constant 0 : index
    %73 = vector.load %arg11[%c0_53, %c0_54, %c0_55] : memref<2x4x14xf32, #tpu.memory_space<vmem>>, vector<1x4x14xf32>
    %74 = vector.shape_cast %73 : vector<1x4x14xf32> to vector<4x14xf32>
    %cst_56 = arith.constant dense<0.000000e+00> : vector<56x14xf32>
    %75 = tpu.matmul %72, %74, %cst_56 {dimension_numbers = #tpu.dot_dimension_numbers<[1], [0], [0], [1], [0, 0, 1, 1], [], []>} : vector<56x4xf32>, vector<4x14xf32>, vector<56x14xf32> -> vector<56x14xf32>
    %76 = vector.broadcast %69 : vector<56x1xf32> to vector<56x14xf32>
    %77 = arith.addf %76, %75 : vector<56x14xf32>
    %c1_57 = arith.constant 1 : index
    %c0_58 = arith.constant 0 : index
    %c0_59 = arith.constant 0 : index
    %78 = vector.load %arg10[%c1_57, %c0_58, %c0_59] : memref<2x56x64xf32, #tpu.memory_space<vmem>>, vector<1x56x64xf32>
    %79 = vector.shape_cast %78 : vector<1x56x64xf32> to vector<56x64xf32>
    %cst_60 = arith.constant dense<0.000000e+00> : vector<56x4xf32>
    %80 = tpu.matmul %79, %68, %cst_60 {dimension_numbers = #tpu.dot_dimension_numbers<[1], [0], [0], [1], [0, 0, 1, 1], [], []>} : vector<56x64xf32>, vector<64x4xf32>, vector<56x4xf32> -> vector<56x4xf32>
    %c1_61 = arith.constant 1 : index
    %c0_62 = arith.constant 0 : index
    %c0_63 = arith.constant 0 : index
    %81 = vector.load %arg11[%c1_61, %c0_62, %c0_63] : memref<2x4x14xf32, #tpu.memory_space<vmem>>, vector<1x4x14xf32>
    %82 = vector.shape_cast %81 : vector<1x4x14xf32> to vector<4x14xf32>
    %cst_64 = arith.constant dense<0.000000e+00> : vector<56x14xf32>
    %83 = tpu.matmul %80, %82, %cst_64 {dimension_numbers = #tpu.dot_dimension_numbers<[1], [0], [0], [1], [0, 0, 1, 1], [], []>} : vector<56x4xf32>, vector<4x14xf32>, vector<56x14xf32> -> vector<56x14xf32>
    %84 = arith.addf %77, %83 : vector<56x14xf32>
    %85 = arith.negf %84 : vector<56x14xf32>
    %86 = math.exp %85 : vector<56x14xf32>
    %cst_65 = arith.constant 1.000000e+00 : f32
    %87 = vector.broadcast %cst_65 : f32 to vector<56x14xf32>
    %88 = arith.addf %87, %86 : vector<56x14xf32>
    %89 = arith.divf %87, %88 : vector<56x14xf32>
    %90 = arith.mulf %84, %89 : vector<56x14xf32>
    %c0_66 = arith.constant 0 : index
    %c0_67 = arith.constant 0 : index
    %91 = vector.load %arg15[%c0_66, %c0_67] : memref<432x1xf32, #tpu.memory_space<vmem>>, vector<432x1xf32>
    %c0_68 = arith.constant 0 : index
    %c0_69 = arith.constant 0 : index
    %c0_70 = arith.constant 0 : index
    %92 = vector.load %arg13[%c0_68, %c0_69, %c0_70] : memref<2x432x56xf32, #tpu.memory_space<vmem>>, vector<1x432x56xf32>
    %93 = vector.shape_cast %92 : vector<1x432x56xf32> to vector<432x56xf32>
    %cst_71 = arith.constant dense<0.000000e+00> : vector<432x14xf32>
    %94 = tpu.matmul %93, %90, %cst_71 {dimension_numbers = #tpu.dot_dimension_numbers<[1], [0], [0], [1], [0, 0, 1, 1], [], []>} : vector<432x56xf32>, vector<56x14xf32>, vector<432x14xf32> -> vector<432x14xf32>
    %c0_72 = arith.constant 0 : index
    %c0_73 = arith.constant 0 : index
    %c0_74 = arith.constant 0 : index
    %95 = vector.load %arg14[%c0_72, %c0_73, %c0_74] : memref<2x14x54xf32, #tpu.memory_space<vmem>>, vector<1x14x54xf32>
    %96 = vector.shape_cast %95 : vector<1x14x54xf32> to vector<14x54xf32>
    %cst_75 = arith.constant dense<0.000000e+00> : vector<432x54xf32>
    %97 = tpu.matmul %94, %96, %cst_75 {dimension_numbers = #tpu.dot_dimension_numbers<[1], [0], [0], [1], [0, 0, 1, 1], [], []>} : vector<432x14xf32>, vector<14x54xf32>, vector<432x54xf32> -> vector<432x54xf32>
    %98 = vector.broadcast %91 : vector<432x1xf32> to vector<432x54xf32>
    %99 = arith.addf %98, %97 : vector<432x54xf32>
    %c1_76 = arith.constant 1 : index
    %c0_77 = arith.constant 0 : index
    %c0_78 = arith.constant 0 : index
    %100 = vector.load %arg13[%c1_76, %c0_77, %c0_78] : memref<2x432x56xf32, #tpu.memory_space<vmem>>, vector<1x432x56xf32>
    %101 = vector.shape_cast %100 : vector<1x432x56xf32> to vector<432x56xf32>
    %cst_79 = arith.constant dense<0.000000e+00> : vector<432x14xf32>
    %102 = tpu.matmul %101, %90, %cst_79 {dimension_numbers = #tpu.dot_dimension_numbers<[1], [0], [0], [1], [0, 0, 1, 1], [], []>} : vector<432x56xf32>, vector<56x14xf32>, vector<432x14xf32> -> vector<432x14xf32>
    %c1_80 = arith.constant 1 : index
    %c0_81 = arith.constant 0 : index
    %c0_82 = arith.constant 0 : index
    %103 = vector.load %arg14[%c1_80, %c0_81, %c0_82] : memref<2x14x54xf32, #tpu.memory_space<vmem>>, vector<1x14x54xf32>
    %104 = vector.shape_cast %103 : vector<1x14x54xf32> to vector<14x54xf32>
    %cst_83 = arith.constant dense<0.000000e+00> : vector<432x54xf32>
    %105 = tpu.matmul %102, %104, %cst_83 {dimension_numbers = #tpu.dot_dimension_numbers<[1], [0], [0], [1], [0, 0, 1, 1], [], []>} : vector<432x14xf32>, vector<14x54xf32>, vector<432x54xf32> -> vector<432x54xf32>
    %106 = arith.addf %99, %105 : vector<432x54xf32>
    %c0_84 = arith.constant 0 : index
    %c0_85 = arith.constant 0 : index
    %c0_86 = arith.constant 0 : index
    %107 = vector.load %arg16[%c0_84, %c0_85, %c0_86] : memref<1x432x54xf32, #tpu.memory_space<vmem>>, vector<1x432x54xf32>
    %108 = vector.shape_cast %107 : vector<1x432x54xf32> to vector<432x54xf32>
    %109 = vector.shape_cast %106 : vector<432x54xf32> to vector<1x432x54xf32>
    tpu.vector_store %arg16[%c0_84, %c0_85, %c0_86], %109 {strides = array<i32>} : memref<1x432x54xf32, #tpu.memory_space<vmem>>, vector<1x432x54xf32>,
    return
  }
  func.func @transform_0(%arg0: i32) -> (i32, i32, i32) {
    %c0_i32 = arith.constant 0 : i32
    %c0_i32_0 = arith.constant 0 : i32
    %c0_i32_1 = arith.constant 0 : i32
    return %arg0, %c0_i32, %c0_i32_0 : i32, i32, i32
  }
  func.func @transform_1(%arg0: i32) -> (i32, i32) {
    %c0_i32 = arith.constant 0 : i32
    %c0_i32_0 = arith.constant 0 : i32
    %c0_i32_1 = arith.constant 0 : i32
    return %c0_i32, %c0_i32_0 : i32, i32
  }
  func.func @transform_2(%arg0: i32) -> (i32, i32) {
    %c0_i32 = arith.constant 0 : i32
    %c0_i32_0 = arith.constant 0 : i32
    %c0_i32_1 = arith.constant 0 : i32
    return %c0_i32, %c0_i32_0 : i32, i32
  }
  func.func @transform_3(%arg0: i32) -> (i32, i32, i32) {
    %c0_i32 = arith.constant 0 : i32
    %c0_i32_0 = arith.constant 0 : i32
    %c0_i32_1 = arith.constant 0 : i32
    %c0_i32_2 = arith.constant 0 : i32
    return %c0_i32, %c0_i32_0, %c0_i32_1 : i32, i32, i32
  }
  func.func @transform_4(%arg0: i32) -> (i32, i32, i32) {
    %c0_i32 = arith.constant 0 : i32
    %c0_i32_0 = arith.constant 0 : i32
    %c0_i32_1 = arith.constant 0 : i32
    %c0_i32_2 = arith.constant 0 : i32
    return %c0_i32, %c0_i32_0, %c0_i32_1 : i32, i32, i32
  }
  func.func @transform_5(%arg0: i32) -> (i32, i32) {
    %c0_i32 = arith.constant 0 : i32
    %c0_i32_0 = arith.constant 0 : i32
    %c0_i32_1 = arith.constant 0 : i32
    return %c0_i32, %c0_i32_0 : i32, i32
  }
  func.func @transform_6(%arg0: i32) -> (i32, i32, i32) {
    %c0_i32 = arith.constant 0 : i32
    %c0_i32_0 = arith.constant 0 : i32
    %c0_i32_1 = arith.constant 0 : i32
    %c0_i32_2 = arith.constant 0 : i32
    return %c0_i32, %c0_i32_0, %c0_i32_1 : i32, i32, i32
  }
  func.func @transform_7(%arg0: i32) -> (i32, i32, i32) {
    %c0_i32 = arith.constant 0 : i32
    %c0_i32_0 = arith.constant 0 : i32
    %c0_i32_1 = arith.constant 0 : i32
    %c0_i32_2 = arith.constant 0 : i32
    return %c0_i32, %c0_i32_0, %c0_i32_1 : i32, i32, i32
  }
  func.func @transform_8(%arg0: i32) -> (i32, i32) {
    %c0_i32 = arith.constant 0 : i32
    %c0_i32_0 = arith.constant 0 : i32
    %c0_i32_1 = arith.constant 0 : i32
    return %c0_i32, %c0_i32_0 : i32, i32
  }
  func.func @transform_9(%arg0: i32) -> (i32, i32, i32) {
    %c0_i32 = arith.constant 0 : i32
    %c0_i32_0 = arith.constant 0 : i32
    %c0_i32_1 = arith.constant 0 : i32
    %c0_i32_2 = arith.constant 0 : i32
    return %c0_i32, %c0_i32_0, %c0_i32_1 : i32, i32, i32
  }
  func.func @transform_10(%arg0: i32) -> (i32, i32, i32) {
    %c0_i32 = arith.constant 0 : i32
    %c0_i32_0 = arith.constant 0 : i32
    %c0_i32_1 = arith.constant 0 : i32
    %c0_i32_2 = arith.constant 0 : i32
    return %c0_i32, %c0_i32_0, %c0_i32_1 : i32, i32, i32
  }
  func.func @transform_11(%arg0: i32) -> (i32, i32) {
    %c0_i32 = arith.constant 0 : i32
    %c0_i32_0 = arith.constant 0 : i32
    %c0_i32_1 = arith.constant 0 : i32
    return %c0_i32, %c0_i32_0 : i32, i32
  }
  func.func @transform_12(%arg0: i32) -> (i32, i32, i32) {
    %c0_i32 = arith.constant 0 : i32
    %c0_i32_0 = arith.constant 0 : i32
    %c0_i32_1 = arith.constant 0 : i32
    %c0_i32_2 = arith.constant 0 : i32
    return %c0_i32, %c0_i32_0, %c0_i32_1 : i32, i32, i32
  }
  func.func @transform_13(%arg0: i32) -> (i32, i32, i32) {
    %c0_i32 = arith.constant 0 : i32
    %c0_i32_0 = arith.constant 0 : i32
    %c0_i32_1 = arith.constant 0 : i32
    %c0_i32_2 = arith.constant 0 : i32
    return %c0_i32, %c0_i32_0, %c0_i32_1 : i32, i32, i32
  }
  func.func @transform_14(%arg0: i32) -> (i32, i32) {
    %c0_i32 = arith.constant 0 : i32
    %c0_i32_0 = arith.constant 0 : i32
    %c0_i32_1 = arith.constant 0 : i32
    return %c0_i32, %c0_i32_0 : i32, i32
  }
  func.func @transform_15(%arg0: i32) -> (i32, i32, i32) {
    %c0_i32 = arith.constant 0 : i32
    %c0_i32_0 = arith.constant 0 : i32
    %c0_i32_1 = arith.constant 0 : i32
    return %arg0, %c0_i32, %c0_i32_0 : i32, i32, i32
  }
}

</mosaic_0001>

<llo_original>
// kernel: _lambda_.1
$region0: #{_lambda_.1}
  #allocation0 [shape = 'u32[]', space=smem, size = 0x4, offset = 0x4, fixed_abs, tag = 'smem constant byte address 0x4 - core index']
  #allocation1 [shape = 'u32[144,128]{1,0:T(1,128)}', space=vmem, size = 0x12000, scoped, tag = 'internal scratch']
  %s0 = inlined_call_operand.vmem [shape: f32[2,448,56], index: 0, kind: input, shape index: {}]
  %s1 = inlined_call_operand.vmem [shape: f32[448,56], index: 1, kind: input, shape index: {}]
  %s2 = inlined_call_operand.vmem [shape: f32[448,56], index: 2, kind: input, shape index: {}]
  %s3 = inlined_call_operand.vmem [shape: f32[2,56,448], index: 3, kind: input, shape index: {}]
  %s4 = inlined_call_operand.vmem [shape: f32[2,56,14], index: 4, kind: input, shape index: {}]
  %s5 = inlined_call_operand.vmem [shape: f32[56,1], index: 5, kind: input, shape index: {}]
  %s6 = inlined_call_operand.vmem [shape: f32[2,64,56], index: 6, kind: input, shape index: {}]
  %s7 = inlined_call_operand.vmem [shape: f32[2,14,4], index: 7, kind: input, shape index: {}]
  %s8 = inlined_call_operand.vmem [shape: f32[64,1], index: 8, kind: input, shape index: {}]
  %s9 = inlined_call_operand.vmem [shape: f32[2,56,64], index: 9, kind: input, shape index: {}]
  %s10 = inlined_call_operand.vmem [shape: f32[2,4,14], index: 10, kind: input, shape index: {}]
  %s11 = inlined_call_operand.vmem [shape: f32[56,1], index: 11, kind: input, shape index: {}]
  %s12 = inlined_call_operand.vmem [shape: f32[2,432,56], index: 12, kind: input, shape index: {}]
  %s13 = inlined_call_operand.vmem [shape: f32[2,14,54], index: 13, kind: input, shape index: {}]
  %s14 = inlined_call_operand.vmem [shape: f32[432,1], index: 14, kind: input, shape index: {}]
  %s15 = inlined_call_operand.vmem [shape: f32[2,432,54], index: 15, kind: output, shape index: {}]
  %s16 = sld [smem:[#allocation0]]
  $region93: #{_lambda_.1} parent=0
    _
  %s18 = ssub.s32 1, %s16
  %s19 = scalar_select 0, %s18, %s16
  loop: start=0, step=1, limit=4
  $region2: #{_lambda_.1} parent=0 // loop_pre_header
    _
  $region3: #{_lambda_.1} parent=0 // loop_header
    %s21 = sphi 0, %s25
    %p22 = scmp.ge.s32.totalorder %s21, 4
    %s31 = sphi 0, %s33
    %s34 = sphi 0, %s31
    %s35 = sphi 0, %s34
    %s51 = sphi 0, %s35
    %s55 = sphi 0, %s55
    %s57 = sphi 0, %s55
    %s58 = sphi 0, %s57
    %s72 = sphi 0, %s58
    %s76 = sphi 0, %s76
    %s78 = sphi 0, %s76
    %s79 = sphi 0, %s78
    %s93 = sphi 0, %s79
    %s97 = sphi 0, %s97
    %s99 = sphi 0, %s97
    %s100 = sphi 0, %s99
    %s114 = sphi 0, %s100
    %s118 = sphi 0, %s118
    %s120 = sphi 0, %s118
    %s121 = sphi 0, %s120
    %s135 = sphi 0, %s121
    %s139 = sphi 0, %s139
    %s141 = sphi 0, %s139
    %s142 = sphi 0, %s141
    %s156 = sphi 0, %s142
    %s160 = sphi 0, %s160
    %s162 = sphi 0, %s160
    %s163 = sphi 0, %s162
    %s177 = sphi 0, %s163
    %s181 = sphi 0, %s181
    %s183 = sphi 0, %s181
    %s184 = sphi 0, %s183
    %s198 = sphi 0, %s184
    %s202 = sphi 0, %s202
    %s204 = sphi 0, %s202
    %s205 = sphi 0, %s204
    %s219 = sphi 0, %s205
    %s223 = sphi 0, %s223
    %s225 = sphi 0, %s223
    %s226 = sphi 0, %s225
    %s240 = sphi 0, %s226
    %s244 = sphi 0, %s244
    %s246 = sphi 0, %s244
    %s247 = sphi 0, %s246
    %s261 = sphi 0, %s247
    %s265 = sphi 0, %s265
    %s267 = sphi 0, %s265
    %s268 = sphi 0, %s267
    %s282 = sphi 0, %s268
    %s286 = sphi 0, %s286
    %s288 = sphi 0, %s286
    %s289 = sphi 0, %s288
    %s303 = sphi 0, %s289
    %s307 = sphi 0, %s307
    %s309 = sphi 0, %s307
    %s310 = sphi 0, %s309
    %s324 = sphi 0, %s310
    %s328 = sphi 0, %s328
    %s330 = sphi 0, %s328
    %s331 = sphi 0, %s330
    %s345 = sphi 0, %s331
    %s351 = sphi 0, %s353
    %s354 = sphi 0, %s351
    %s355 = sphi 0, %s354
    %s371 = sphi 0, %s355
  $region4: #{_lambda_.1} parent=0 // loop_header_branch
    %24 = sbr.rel (%p22) target = $region8
  $region5: #{_lambda_.1} parent=0 // loop_body
    %s26 = ssub.s32 %s21, 1
    %s27 = ssub.s32 %s21, 2
    %s28 = sadd.s32 %s21, 1
    %s29 = ssub.s32 %s21, %s28
    %p30 = scmp.eq.s32.totalorder %s29, 0
    %s32 = sadd.s32 %s31, 1
    %s33 = scalar_select %p30, %s31, %s32
    %p36 = pneg %p30
    %p37 = scmp.eq.s32.totalorder %s21, 1
    %p38 = por %p36, %p37
    %p39 = scmp.ne.s32.totalorder %s31, %s34
    %p40 = scmp.eq.s32.totalorder %s21, 0
    %p41 = por %p39, %p40
    %p42 = scmp.ne.s32.totalorder %s31, %s34
    %p43 = scmp.eq.s32.totalorder %s26, 1
    %p44 = por %p42, %p43
    %p45 = scmp.ne.s32.totalorder %s34, %s35
    %p46 = scmp.eq.s32.totalorder %s26, 0
    %p47 = por %p45, %p46
    %p48 = scmp.ne.s32.totalorder %s34, %s35
    %p49 = scmp.eq.s32.totalorder %s27, 1
    %p50 = por %p48, %p49
    %p52 = scmp.ne.s32.totalorder %s35, %s51
    %p53 = scmp.eq.s32.totalorder %s27, 0
    %p54 = por %p52, %p53
    %s56 = sadd.s32 %s55, 1
    %p59 = scmp.eq.s32.totalorder %s21, 1
    %p60 = scmp.ne.s32.totalorder %s55, %s57
    %p61 = scmp.eq.s32.totalorder %s21, 0
    %p62 = por %p60, %p61
    %p63 = scmp.ne.s32.totalorder %s55, %s57
    %p64 = scmp.eq.s32.totalorder %s26, 1
    %p65 = por %p63, %p64
    %p66 = scmp.ne.s32.totalorder %s57, %s58
    %p67 = scmp.eq.s32.totalorder %s26, 0
    %p68 = por %p66, %p67
    %p69 = scmp.ne.s32.totalorder %s57, %s58
    %p70 = scmp.eq.s32.totalorder %s27, 1
    %p71 = por %p69, %p70
    %p73 = scmp.ne.s32.totalorder %s58, %s72
    %p74 = scmp.eq.s32.totalorder %s27, 0
    %p75 = por %p73, %p74
    %s77 = sadd.s32 %s76, 1
    %p80 = scmp.eq.s32.totalorder %s21, 1
    %p81 = scmp.ne.s32.totalorder %s76, %s78
    %p82 = scmp.eq.s32.totalorder %s21, 0
    %p83 = por %p81, %p82
    %p84 = scmp.ne.s32.totalorder %s76, %s78
    %p85 = scmp.eq.s32.totalorder %s26, 1
    %p86 = por %p84, %p85
    %p87 = scmp.ne.s32.totalorder %s78, %s79
    %p88 = scmp.eq.s32.totalorder %s26, 0
    %p89 = por %p87, %p88
    %p90 = scmp.ne.s32.totalorder %s78, %s79
    %p91 = scmp.eq.s32.totalorder %s27, 1
    %p92 = por %p90, %p91
    %p94 = scmp.ne.s32.totalorder %s79, %s93
    %p95 = scmp.eq.s32.totalorder %s27, 0
    %p96 = por %p94, %p95
    %s98 = sadd.s32 %s97, 1
    %p101 = scmp.eq.s32.totalorder %s21, 1
    %p102 = scmp.ne.s32.totalorder %s97, %s99
    %p103 = scmp.eq.s32.totalorder %s21, 0
    %p104 = por %p102, %p103
    %p105 = scmp.ne.s32.totalorder %s97, %s99
    %p106 = scmp.eq.s32.totalorder %s26, 1
    %p107 = por %p105, %p106
    %p108 = scmp.ne.s32.totalorder %s99, %s100
    %p109 = scmp.eq.s32.totalorder %s26, 0
    %p110 = por %p108, %p109
    %p111 = scmp.ne.s32.totalorder %s99, %s100
    %p112 = scmp.eq.s32.totalorder %s27, 1
    %p113 = por %p111, %p112
    %p115 = scmp.ne.s32.totalorder %s100, %s114
    %p116 = scmp.eq.s32.totalorder %s27, 0
    %p117 = por %p115, %p116
    %s119 = sadd.s32 %s118, 1
    %p122 = scmp.eq.s32.totalorder %s21, 1
    %p123 = scmp.ne.s32.totalorder %s118, %s120
    %p124 = scmp.eq.s32.totalorder %s21, 0
    %p125 = por %p123, %p124
    %p126 = scmp.ne.s32.totalorder %s118, %s120
    %p127 = scmp.eq.s32.totalorder %s26, 1
    %p128 = por %p126, %p127
    %p129 = scmp.ne.s32.totalorder %s120, %s121
    %p130 = scmp.eq.s32.totalorder %s26, 0
    %p131 = por %p129, %p130
    %p132 = scmp.ne.s32.totalorder %s120, %s121
    %p133 = scmp.eq.s32.totalorder %s27, 1
    %p134 = por %p132, %p133
    %p136 = scmp.ne.s32.totalorder %s121, %s135
    %p137 = scmp.eq.s32.totalorder %s27, 0
    %p138 = por %p136, %p137
    %s140 = sadd.s32 %s139, 1
    %p143 = scmp.eq.s32.totalorder %s21, 1
    %p144 = scmp.ne.s32.totalorder %s139, %s141
    %p145 = scmp.eq.s32.totalorder %s21, 0
    %p146 = por %p144, %p145
    %p147 = scmp.ne.s32.totalorder %s139, %s141
    %p148 = scmp.eq.s32.totalorder %s26, 1
    %p149 = por %p147, %p148
    %p150 = scmp.ne.s32.totalorder %s141, %s142
    %p151 = scmp.eq.s32.totalorder %s26, 0
    %p152 = por %p150, %p151
    %p153 = scmp.ne.s32.totalorder %s141, %s142
    %p154 = scmp.eq.s32.totalorder %s27, 1
    %p155 = por %p153, %p154
    %p157 = scmp.ne.s32.totalorder %s142, %s156
    %p158 = scmp.eq.s32.totalorder %s27, 0
    %p159 = por %p157, %p158
    %s161 = sadd.s32 %s160, 1
    %p164 = scmp.eq.s32.totalorder %s21, 1
    %p165 = scmp.ne.s32.totalorder %s160, %s162
    %p166 = scmp.eq.s32.totalorder %s21, 0
    %p167 = por %p165, %p166
    %p168 = scmp.ne.s32.totalorder %s160, %s162
    %p169 = scmp.eq.s32.totalorder %s26, 1
    %p170 = por %p168, %p169
    %p171 = scmp.ne.s32.totalorder %s162, %s163
    %p172 = scmp.eq.s32.totalorder %s26, 0
    %p173 = por %p171, %p172
    %p174 = scmp.ne.s32.totalorder %s162, %s163
    %p175 = scmp.eq.s32.totalorder %s27, 1
    %p176 = por %p174, %p175
    %p178 = scmp.ne.s32.totalorder %s163, %s177
    %p179 = scmp.eq.s32.totalorder %s27, 0
    %p180 = por %p178, %p179
    %s182 = sadd.s32 %s181, 1
    %p185 = scmp.eq.s32.totalorder %s21, 1
    %p186 = scmp.ne.s32.totalorder %s181, %s183
    %p187 = scmp.eq.s32.totalorder %s21, 0
    %p188 = por %p186, %p187
    %p189 = scmp.ne.s32.totalorder %s181, %s183
    %p190 = scmp.eq.s32.totalorder %s26, 1
    %p191 = por %p189, %p190
    %p192 = scmp.ne.s32.totalorder %s183, %s184
    %p193 = scmp.eq.s32.totalorder %s26, 0
    %p194 = por %p192, %p193
    %p195 = scmp.ne.s32.totalorder %s183, %s184
    %p196 = scmp.eq.s32.totalorder %s27, 1
    %p197 = por %p195, %p196
    %p199 = scmp.ne.s32.totalorder %s184, %s198
    %p200 = scmp.eq.s32.totalorder %s27, 0
    %p201 = por %p199, %p200
    %s203 = sadd.s32 %s202, 1
    %p206 = scmp.eq.s32.totalorder %s21, 1
    %p207 = scmp.ne.s32.totalorder %s202, %s204
    %p208 = scmp.eq.s32.totalorder %s21, 0
    %p209 = por %p207, %p208
    %p210 = scmp.ne.s32.totalorder %s202, %s204
    %p211 = scmp.eq.s32.totalorder %s26, 1
    %p212 = por %p210, %p211
    %p213 = scmp.ne.s32.totalorder %s204, %s205
    %p214 = scmp.eq.s32.totalorder %s26, 0
    %p215 = por %p213, %p214
    %p216 = scmp.ne.s32.totalorder %s204, %s205
    %p217 = scmp.eq.s32.totalorder %s27, 1
    %p218 = por %p216, %p217
    %p220 = scmp.ne.s32.totalorder %s205, %s219
    %p221 = scmp.eq.s32.totalorder %s27, 0
    %p222 = por %p220, %p221
    %s224 = sadd.s32 %s223, 1
    %p227 = scmp.eq.s32.totalorder %s21, 1
    %p228 = scmp.ne.s32.totalorder %s223, %s225
    %p229 = scmp.eq.s32.totalorder %s21, 0
    %p230 = por %p228, %p229
    %p231 = scmp.ne.s32.totalorder %s223, %s225
    %p232 = scmp.eq.s32.totalorder %s26, 1
    %p233 = por %p231, %p232
    %p234 = scmp.ne.s32.totalorder %s225, %s226
    %p235 = scmp.eq.s32.totalorder %s26, 0
    %p236 = por %p234, %p235
    %p237 = scmp.ne.s32.totalorder %s225, %s226
    %p238 = scmp.eq.s32.totalorder %s27, 1
    %p239 = por %p237, %p238
    %p241 = scmp.ne.s32.totalorder %s226, %s240
    %p242 = scmp.eq.s32.totalorder %s27, 0
    %p243 = por %p241, %p242
    %s245 = sadd.s32 %s244, 1
    %p248 = scmp.eq.s32.totalorder %s21, 1
    %p249 = scmp.ne.s32.totalorder %s244, %s246
    %p250 = scmp.eq.s32.totalorder %s21, 0
    %p251 = por %p249, %p250
    %p252 = scmp.ne.s32.totalorder %s244, %s246
    %p253 = scmp.eq.s32.totalorder %s26, 1
    %p254 = por %p252, %p253
    %p255 = scmp.ne.s32.totalorder %s246, %s247
    %p256 = scmp.eq.s32.totalorder %s26, 0
    %p257 = por %p255, %p256
    %p258 = scmp.ne.s32.totalorder %s246, %s247
    %p259 = scmp.eq.s32.totalorder %s27, 1
    %p260 = por %p258, %p259
    %p262 = scmp.ne.s32.totalorder %s247, %s261
    %p263 = scmp.eq.s32.totalorder %s27, 0
    %p264 = por %p262, %p263
    %s266 = sadd.s32 %s265, 1
    %p269 = scmp.eq.s32.totalorder %s21, 1
    %p270 = scmp.ne.s32.totalorder %s265, %s267
    %p271 = scmp.eq.s32.totalorder %s21, 0
    %p272 = por %p270, %p271
    %p273 = scmp.ne.s32.totalorder %s265, %s267
    %p274 = scmp.eq.s32.totalorder %s26, 1
    %p275 = por %p273, %p274
    %p276 = scmp.ne.s32.totalorder %s267, %s268
    %p277 = scmp.eq.s32.totalorder %s26, 0
    %p278 = por %p276, %p277
    %p279 = scmp.ne.s32.totalorder %s267, %s268
    %p280 = scmp.eq.s32.totalorder %s27, 1
    %p281 = por %p279, %p280
    %p283 = scmp.ne.s32.totalorder %s268, %s282
    %p284 = scmp.eq.s32.totalorder %s27, 0
    %p285 = por %p283, %p284
    %s287 = sadd.s32 %s286, 1
    %p290 = scmp.eq.s32.totalorder %s21, 1
    %p291 = scmp.ne.s32.totalorder %s286, %s288
    %p292 = scmp.eq.s32.totalorder %s21, 0
    %p293 = por %p291, %p292
    %p294 = scmp.ne.s32.totalorder %s286, %s288
    %p295 = scmp.eq.s32.totalorder %s26, 1
    %p296 = por %p294, %p295
    %p297 = scmp.ne.s32.totalorder %s288, %s289
    %p298 = scmp.eq.s32.totalorder %s26, 0
    %p299 = por %p297, %p298
    %p300 = scmp.ne.s32.totalorder %s288, %s289
    %p301 = scmp.eq.s32.totalorder %s27, 1
    %p302 = por %p300, %p301
    %p304 = scmp.ne.s32.totalorder %s289, %s303
    %p305 = scmp.eq.s32.totalorder %s27, 0
    %p306 = por %p304, %p305
    %s308 = sadd.s32 %s307, 1
    %p311 = scmp.eq.s32.totalorder %s21, 1
    %p312 = scmp.ne.s32.totalorder %s307, %s309
    %p313 = scmp.eq.s32.totalorder %s21, 0
    %p314 = por %p312, %p313
    %p315 = scmp.ne.s32.totalorder %s307, %s309
    %p316 = scmp.eq.s32.totalorder %s26, 1
    %p317 = por %p315, %p316
    %p318 = scmp.ne.s32.totalorder %s309, %s310
    %p319 = scmp.eq.s32.totalorder %s26, 0
    %p320 = por %p318, %p319
    %p321 = scmp.ne.s32.totalorder %s309, %s310
    %p322 = scmp.eq.s32.totalorder %s27, 1
    %p323 = por %p321, %p322
    %p325 = scmp.ne.s32.totalorder %s310, %s324
    %p326 = scmp.eq.s32.totalorder %s27, 0
    %p327 = por %p325, %p326
    %s329 = sadd.s32 %s328, 1
    %p332 = scmp.eq.s32.totalorder %s21, 1
    %p333 = scmp.ne.s32.totalorder %s328, %s330
    %p334 = scmp.eq.s32.totalorder %s21, 0
    %p335 = por %p333, %p334
    %p336 = scmp.ne.s32.totalorder %s328, %s330
    %p337 = scmp.eq.s32.totalorder %s26, 1
    %p338 = por %p336, %p337
    %p339 = scmp.ne.s32.totalorder %s330, %s331
    %p340 = scmp.eq.s32.totalorder %s26, 0
    %p341 = por %p339, %p340
    %p342 = scmp.ne.s32.totalorder %s330, %s331
    %p343 = scmp.eq.s32.totalorder %s27, 1
    %p344 = por %p342, %p343
    %p346 = scmp.ne.s32.totalorder %s331, %s345
    %p347 = scmp.eq.s32.totalorder %s27, 0
    %p348 = por %p346, %p347
    %s349 = ssub.s32 %s21, %s28
    %p350 = scmp.eq.s32.totalorder %s349, 0
    %s352 = sadd.s32 %s351, 1
    %s353 = scalar_select %p350, %s351, %s352
    %p356 = pneg %p350
    %p357 = scmp.eq.s32.totalorder %s21, 1
    %p358 = por %p356, %p357
    %p359 = scmp.ne.s32.totalorder %s351, %s354
    %p360 = scmp.eq.s32.totalorder %s21, 0
    %p361 = por %p359, %p360
    %p362 = scmp.ne.s32.totalorder %s351, %s354
    %p363 = scmp.eq.s32.totalorder %s26, 1
    %p364 = por %p362, %p363
    %p365 = scmp.ne.s32.totalorder %s354, %s355
    %p366 = scmp.eq.s32.totalorder %s26, 0
    %p367 = por %p365, %p366
    %p368 = scmp.ne.s32.totalorder %s354, %s355
    %p369 = scmp.eq.s32.totalorder %s27, 1
    %p370 = por %p368, %p369
    %p372 = scmp.ne.s32.totalorder %s355, %s371
    %p373 = scmp.eq.s32.totalorder %s27, 0
    %p374 = por %p372, %p373
    %p375 = scmp.le.s32.totalorder 1, %s21
    %p376 = scmp.lt.s32.totalorder %s21, 3
    %p377 = pnand %p375, %p376
    %p378 = pneg %p377
    // Predicated region
    $region9: #{_lambda_.1} parent=5 // pred_check
      _
    $region10: #{_lambda_.1} parent=5 // pred_check_branch
      %380 = sbr.rel (%p377) target = $region12
    $region11: #{_lambda_.1} parent=5 // pred_region
      %s381 = ssub.s32 %s21, 1
      // Predicated region
      $region13: #{_lambda_.1} parent=11 // pred_check
        %p382 = pneg %p68
      $region14: #{_lambda_.1} parent=11 // pred_check_branch
        %384 = sbr.rel (%p382) target = $region16
      $region15: #{_lambda_.1} parent=11 // pred_region
        _
      $region16: #{_lambda_.1} parent=11 // pred_fallthru
        _
      // Predicated region
      $region17: #{_lambda_.1} parent=11 // pred_check
        %p385 = pneg %p89
      $region18: #{_lambda_.1} parent=11 // pred_check_branch
        %387 = sbr.rel (%p385) target = $region20
      $region19: #{_lambda_.1} parent=11 // pred_region
        _
      $region20: #{_lambda_.1} parent=11 // pred_fallthru
        _
      // Predicated region
      $region21: #{_lambda_.1} parent=11 // pred_check
        %p388 = pneg %p110
      $region22: #{_lambda_.1} parent=11 // pred_check_branch
        %390 = sbr.rel (%p388) target = $region24
      $region23: #{_lambda_.1} parent=11 // pred_region
        _
      $region24: #{_lambda_.1} parent=11 // pred_fallthru
        _
      // Predicated region
      $region25: #{_lambda_.1} parent=11 // pred_check
        %p391 = pneg %p131
      $region26: #{_lambda_.1} parent=11 // pred_check_branch
        %393 = sbr.rel (%p391) target = $region28
      $region27: #{_lambda_.1} parent=11 // pred_region
        _
      $region28: #{_lambda_.1} parent=11 // pred_fallthru
        _
      // Predicated region
      $region29: #{_lambda_.1} parent=11 // pred_check
        %p394 = pneg %p152
      $region30: #{_lambda_.1} parent=11 // pred_check_branch
        %396 = sbr.rel (%p394) target = $region32
      $region31: #{_lambda_.1} parent=11 // pred_region
        _
      $region32: #{_lambda_.1} parent=11 // pred_fallthru
        _
      // Predicated region
      $region33: #{_lambda_.1} parent=11 // pred_check
        %p397 = pneg %p173
      $region34: #{_lambda_.1} parent=11 // pred_check_branch
        %399 = sbr.rel (%p397) target = $region36
      $region35: #{_lambda_.1} parent=11 // pred_region
        _
      $region36: #{_lambda_.1} parent=11 // pred_fallthru
        _
      // Predicated region
      $region37: #{_lambda_.1} parent=11 // pred_check
        %p400 = pneg %p194
      $region38: #{_lambda_.1} parent=11 // pred_check_branch
        %402 = sbr.rel (%p400) target = $region40
      $region39: #{_lambda_.1} parent=11 // pred_region
        _
      $region40: #{_lambda_.1} parent=11 // pred_fallthru
        _
      // Predicated region
      $region41: #{_lambda_.1} parent=11 // pred_check
        %p403 = pneg %p215
      $region42: #{_lambda_.1} parent=11 // pred_check_branch
        %405 = sbr.rel (%p403) target = $region44
      $region43: #{_lambda_.1} parent=11 // pred_region
        _
      $region44: #{_lambda_.1} parent=11 // pred_fallthru
        _
      // Predicated region
      $region45: #{_lambda_.1} parent=11 // pred_check
        %p406 = pneg %p236
      $region46: #{_lambda_.1} parent=11 // pred_check_branch
        %408 = sbr.rel (%p406) target = $region48
      $region47: #{_lambda_.1} parent=11 // pred_region
        _
      $region48: #{_lambda_.1} parent=11 // pred_fallthru
        _
      // Predicated region
      $region49: #{_lambda_.1} parent=11 // pred_check
        %p409 = pneg %p257
      $region50: #{_lambda_.1} parent=11 // pred_check_branch
        %411 = sbr.rel (%p409) target = $region52
      $region51: #{_lambda_.1} parent=11 // pred_region
        _
      $region52: #{_lambda_.1} parent=11 // pred_fallthru
        _
      // Predicated region
      $region53: #{_lambda_.1} parent=11 // pred_check
        %p412 = pneg %p278
      $region54: #{_lambda_.1} parent=11 // pred_check_branch
        %414 = sbr.rel (%p412) target = $region56
      $region55: #{_lambda_.1} parent=11 // pred_region
        _
      $region56: #{_lambda_.1} parent=11 // pred_fallthru
        _
      // Predicated region
      $region57: #{_lambda_.1} parent=11 // pred_check
        %p415 = pneg %p299
      $region58: #{_lambda_.1} parent=11 // pred_check_branch
        %417 = sbr.rel (%p415) target = $region60
      $region59: #{_lambda_.1} parent=11 // pred_region
        _
      $region60: #{_lambda_.1} parent=11 // pred_fallthru
        _
      // Predicated region
      $region61: #{_lambda_.1} parent=11 // pred_check
        %p418 = pneg %p320
      $region62: #{_lambda_.1} parent=11 // pred_check_branch
        %420 = sbr.rel (%p418) target = $region64
      $region63: #{_lambda_.1} parent=11 // pred_region
        _
      $region64: #{_lambda_.1} parent=11 // pred_fallthru
        _
      // Predicated region
      $region65: #{_lambda_.1} parent=11 // pred_check
        %p421 = pneg %p341
      $region66: #{_lambda_.1} parent=11 // pred_check_branch
        %423 = sbr.rel (%p421) target = $region68
      $region67: #{_lambda_.1} parent=11 // pred_region
        _
      $region68: #{_lambda_.1} parent=11 // pred_fallthru
        _
    $region12: #{_lambda_.1} parent=5 // pred_fallthru
      _
    %p424 = scmp.lt.s32.totalorder %s21, 2
    // Predicated region
    $region69: #{_lambda_.1} parent=5 // pred_check
      %p425 = pneg %p424
    $region70: #{_lambda_.1} parent=5 // pred_check_branch
      %427 = sbr.rel (%p425) target = $region72
    $region71: #{_lambda_.1} parent=5 // pred_region
      // Predicated region
      $region73: #{_lambda_.1} parent=71 // pred_check
        %p428 = pneg %p41
      $region74: #{_lambda_.1} parent=71 // pred_check_branch
        %430 = sbr.rel (%p428) target = $region76
      $region75: #{_lambda_.1} parent=71 // pred_region
        %p431 = scmp.lt.s32.totalorder %s21, 1
        %s432 = scalar_select %p431, %s21, 1
        %s433 = smul.addr %s432, 56
        %s434 = smul.addr %s433, 8
        %s435 = scalar_lea.vmem %s0, %s434
      $region76: #{_lambda_.1} parent=71 // pred_fallthru
        _
    $region72: #{_lambda_.1} parent=5 // pred_fallthru
      _
    %p436 = scmp.le.s32.totalorder 1, %s21
    %p437 = scmp.lt.s32.totalorder %s21, 3
    %p438 = pnand %p436, %p437
    %p439 = pneg %p438
    // Predicated region
    $region77: #{_lambda_.1} parent=5 // pred_check
      _
    $region78: #{_lambda_.1} parent=5 // pred_check_branch
      %441 = sbr.rel (%p438) target = $region80
    $region79: #{_lambda_.1} parent=5 // pred_region
      %s442 = ssub.s32 %s21, 1
      %p443 = scmp.lt.s32.totalorder %s26, 1
      %s444 = scalar_select %p443, %s26, 1
      %s445 = smul.addr %s444, 56
      %s446 = smul.addr %s445, 8
      %s447 = scalar_lea.vmem %s0, %s446
      %p448 = pneg %p47
      %p449 = pneg %p44
      %p450 = pneg %p68
      %p451 = pneg %p65
      %p452 = pneg %p89
      %p453 = pneg %p86
      %p454 = pneg %p110
      %p455 = pneg %p107
      %p456 = pneg %p131
      %p457 = pneg %p128
      %p458 = pneg %p152
      %p459 = pneg %p149
      %p460 = pneg %p173
      %p461 = pneg %p170
      %p462 = pneg %p194
      %p463 = pneg %p191
      %p464 = pneg %p215
      %p465 = pneg %p212
      %p466 = pneg %p236
      %p467 = pneg %p233
      %p468 = pneg %p257
      %p469 = pneg %p254
      %p470 = pneg %p278
      %p471 = pneg %p275
      %p472 = pneg %p299
      %p473 = pneg %p296
      %p474 = pneg %p320
      %p475 = pneg %p317
      %p476 = pneg %p341
      %p477 = pneg %p338
      %p478 = pneg %p367
      %p479 = pneg %p364
      %p480 = scmp.lt.s32.totalorder %s26, 1
      %s481 = scalar_select %p480, %s26, 1
      %s482 = smul.addr %s481, 54
      %s483 = smul.addr %s482, 8
      %s484 = scalar_lea.vmem %s15, %s483
      %p485 = scmp.lt.s32.totalorder %s26, 1
      %s486 = scalar_select %p485, %s26, 1
      %s487 = smul.addr %s486, 56
      %s488 = smul.addr %s487, 8
      %s489 = scalar_lea.vmem %s0, %s488
      %p490 = scmp.lt.s32.totalorder %s26, 1
      %s491 = scalar_select %p490, %s26, 1
      %s492 = smul.addr %s491, 54
      %s493 = smul.addr %s492, 8
      %s494 = scalar_lea.vmem %s15, %s493
      %v495 = vld [vmem:[%s489] sm:$0xff]
      %v496 = vld [vmem:[%s489 + $0x8] sm:$0xff]
      %v497 = vld [vmem:[%s489 + $0x10] sm:$0xff]
      %v498 = vld [vmem:[%s489 + $0x18] sm:$0xff]
      %v499 = vld [vmem:[%s489 + $0x20] sm:$0xff]
      %v500 = vld [vmem:[%s489 + $0x28] sm:$0xff]
      %v501 = vld [vmem:[%s489 + $0x30] sm:$0xff]
      %v502 = vld [vmem:[%s489 + $0x38] sm:$0xff]
      %v503 = vld [vmem:[%s489 + $0x40] sm:$0xff]
      %v504 = vld [vmem:[%s489 + $0x48] sm:$0xff]
      %v505 = vld [vmem:[%s489 + $0x50] sm:$0xff]
      %v506 = vld [vmem:[%s489 + $0x58] sm:$0xff]
      %v507 = vld [vmem:[%s489 + $0x60] sm:$0xff]
      %v508 = vld [vmem:[%s489 + $0x68] sm:$0xff]
      %v509 = vld [vmem:[%s489 + $0x70] sm:$0xff]
      %v510 = vld [vmem:[%s489 + $0x78] sm:$0xff]
      %v511 = vld [vmem:[%s489 + $0x80] sm:$0xff]
      %v512 = vld [vmem:[%s489 + $0x88] sm:$0xff]
      %v513 = vld [vmem:[%s489 + $0x90] sm:$0xff]
      %v514 = vld [vmem:[%s489 + $0x98] sm:$0xff]
      %v515 = vld [vmem:[%s489 + $0xa0] sm:$0xff]
      %v516 = vld [vmem:[%s489 + $0xa8] sm:$0xff]
      %v517 = vld [vmem:[%s489 + $0xb0] sm:$0xff]
      %v518 = vld [vmem:[%s489 + $0xb8] sm:$0xff]
      %v519 = vld [vmem:[%s489 + $0xc0] sm:$0xff]
      %v520 = vld [vmem:[%s489 + $0xc8] sm:$0xff]
      %v521 = vld [vmem:[%s489 + $0xd0] sm:$0xff]
      %v522 = vld [vmem:[%s489 + $0xd8] sm:$0xff]
      %v523 = vld [vmem:[%s489 + $0xe0] sm:$0xff]
      %v524 = vld [vmem:[%s489 + $0xe8] sm:$0xff]
      %v525 = vld [vmem:[%s489 + $0xf0] sm:$0xff]
      %v526 = vld [vmem:[%s489 + $0xf8] sm:$0xff]
      %v527 = vld [vmem:[%s489 + $0x100] sm:$0xff]
      %v528 = vld [vmem:[%s489 + $0x108] sm:$0xff]
      %v529 = vld [vmem:[%s489 + $0x110] sm:$0xff]
      %v530 = vld [vmem:[%s489 + $0x118] sm:$0xff]
      %v531 = vld [vmem:[%s489 + $0x120] sm:$0xff]
      %v532 = vld [vmem:[%s489 + $0x128] sm:$0xff]
      %v533 = vld [vmem:[%s489 + $0x130] sm:$0xff]
      %v534 = vld [vmem:[%s489 + $0x138] sm:$0xff]
      %v535 = vld [vmem:[%s489 + $0x140] sm:$0xff]
      %v536 = vld [vmem:[%s489 + $0x148] sm:$0xff]
      %v537 = vld [vmem:[%s489 + $0x150] sm:$0xff]
      %v538 = vld [vmem:[%s489 + $0x158] sm:$0xff]
      %v539 = vld [vmem:[%s489 + $0x160] sm:$0xff]
      %v540 = vld [vmem:[%s489 + $0x168] sm:$0xff]
      %v541 = vld [vmem:[%s489 + $0x170] sm:$0xff]
      %v542 = vld [vmem:[%s489 + $0x178] sm:$0xff]
      %v543 = vld [vmem:[%s489 + $0x180] sm:$0xff]
      %v544 = vld [vmem:[%s489 + $0x188] sm:$0xff]
      %v545 = vld [vmem:[%s489 + $0x190] sm:$0xff]
      %v546 = vld [vmem:[%s489 + $0x198] sm:$0xff]
      %v547 = vld [vmem:[%s489 + $0x1a0] sm:$0xff]
      %v548 = vld [vmem:[%s489 + $0x1a8] sm:$0xff]
      %v549 = vld [vmem:[%s489 + $0x1b0] sm:$0xff]
      %v550 = vld [vmem:[%s489 + $0x1b8] sm:$0xff]
      %vm551 = vcmask 457728
      %v552 = vsel %vm551, %v495, 0.0
      %v553 = vsel %vm551, %v496, 0.0
      %v554 = vadd.f32 %v552, %v553
      %v555 = vsel %vm551, %v497, 0.0
      %v556 = vadd.f32 %v554, %v555
      %v557 = vsel %vm551, %v498, 0.0
      %v558 = vadd.f32 %v556, %v557
      %v559 = vsel %vm551, %v499, 0.0
      %v560 = vadd.f32 %v558, %v559
      %v561 = vsel %vm551, %v500, 0.0
      %v562 = vadd.f32 %v560, %v561
      %v563 = vsel %vm551, %v501, 0.0
      %v564 = vadd.f32 %v562, %v563
      %v565 = vsel %vm551, %v502, 0.0
      %v566 = vadd.f32 %v564, %v565
      %v567 = vsel %vm551, %v503, 0.0
      %v568 = vadd.f32 %v566, %v567
      %v569 = vsel %vm551, %v504, 0.0
      %v570 = vadd.f32 %v568, %v569
      %v571 = vsel %vm551, %v505, 0.0
      %v572 = vadd.f32 %v570, %v571
      %v573 = vsel %vm551, %v506, 0.0
      %v574 = vadd.f32 %v572, %v573
      %v575 = vsel %vm551, %v507, 0.0
      %v576 = vadd.f32 %v574, %v575
      %v577 = vsel %vm551, %v508, 0.0
      %v578 = vadd.f32 %v576, %v577
      %v579 = vsel %vm551, %v509, 0.0
      %v580 = vadd.f32 %v578, %v579
      %v581 = vsel %vm551, %v510, 0.0
      %v582 = vadd.f32 %v580, %v581
      %v583 = vsel %vm551, %v511, 0.0
      %v584 = vadd.f32 %v582, %v583
      %v585 = vsel %vm551, %v512, 0.0
      %v586 = vadd.f32 %v584, %v585
      %v587 = vsel %vm551, %v513, 0.0
      %v588 = vadd.f32 %v586, %v587
      %v589 = vsel %vm551, %v514, 0.0
      %v590 = vadd.f32 %v588, %v589
      %v591 = vsel %vm551, %v515, 0.0
      %v592 = vadd.f32 %v590, %v591
      %v593 = vsel %vm551, %v516, 0.0
      %v594 = vadd.f32 %v592, %v593
      %v595 = vsel %vm551, %v517, 0.0
      %v596 = vadd.f32 %v594, %v595
      %v597 = vsel %vm551, %v518, 0.0
      %v598 = vadd.f32 %v596, %v597
      %v599 = vsel %vm551, %v519, 0.0
      %v600 = vadd.f32 %v598, %v599
      %v601 = vsel %vm551, %v520, 0.0
      %v602 = vadd.f32 %v600, %v601
      %v603 = vsel %vm551, %v521, 0.0
      %v604 = vadd.f32 %v602, %v603
      %v605 = vsel %vm551, %v522, 0.0
      %v606 = vadd.f32 %v604, %v605
      %v607 = vsel %vm551, %v523, 0.0
      %v608 = vadd.f32 %v606, %v607
      %v609 = vsel %vm551, %v524, 0.0
      %v610 = vadd.f32 %v608, %v609
      %v611 = vsel %vm551, %v525, 0.0
      %v612 = vadd.f32 %v610, %v611
      %v613 = vsel %vm551, %v526, 0.0
      %v614 = vadd.f32 %v612, %v613
      %v615 = vsel %vm551, %v527, 0.0
      %v616 = vadd.f32 %v614, %v615
      %v617 = vsel %vm551, %v528, 0.0
      %v618 = vadd.f32 %v616, %v617
      %v619 = vsel %vm551, %v529, 0.0
      %v620 = vadd.f32 %v618, %v619
      %v621 = vsel %vm551, %v530, 0.0
      %v622 = vadd.f32 %v620, %v621
      %v623 = vsel %vm551, %v531, 0.0
      %v624 = vadd.f32 %v622, %v623
      %v625 = vsel %vm551, %v532, 0.0
      %v626 = vadd.f32 %v624, %v625
      %v627 = vsel %vm551, %v533, 0.0
      %v628 = vadd.f32 %v626, %v627
      %v629 = vsel %vm551, %v534, 0.0
      %v630 = vadd.f32 %v628, %v629
      %v631 = vsel %vm551, %v535, 0.0
      %v632 = vadd.f32 %v630, %v631
      %v633 = vsel %vm551, %v536, 0.0
      %v634 = vadd.f32 %v632, %v633
      %v635 = vsel %vm551, %v537, 0.0
      %v636 = vadd.f32 %v634, %v635
      %v637 = vsel %vm551, %v538, 0.0
      %v638 = vadd.f32 %v636, %v637
      %v639 = vsel %vm551, %v539, 0.0
      %v640 = vadd.f32 %v638, %v639
      %v641 = vsel %vm551, %v540, 0.0
      %v642 = vadd.f32 %v640, %v641
      %v643 = vsel %vm551, %v541, 0.0
      %v644 = vadd.f32 %v642, %v643
      %v645 = vsel %vm551, %v542, 0.0
      %v646 = vadd.f32 %v644, %v645
      %v647 = vsel %vm551, %v543, 0.0
      %v648 = vadd.f32 %v646, %v647
      %v649 = vsel %vm551, %v544, 0.0
      %v650 = vadd.f32 %v648, %v649
      %v651 = vsel %vm551, %v545, 0.0
      %v652 = vadd.f32 %v650, %v651
      %v653 = vsel %vm551, %v546, 0.0
      %v654 = vadd.f32 %v652, %v653
      %v655 = vsel %vm551, %v547, 0.0
      %v656 = vadd.f32 %v654, %v655
      %v657 = vsel %vm551, %v548, 0.0
      %v658 = vadd.f32 %v656, %v657
      %v659 = vsel %vm551, %v549, 0.0
      %v660 = vadd.f32 %v658, %v659
      %v661 = vsel %vm551, %v550, 0.0
      %v662 = vadd.f32 %v660, %v661
      %663 = vadd.xlane.f32.xlu0 %v662
      %v664 = vpop.xlane.xlu0 %663
      %v665 = vrot.slane %v664, 4
      %v666 = vadd.f32 %v664, %v665
      %v667 = vrot.slane %v666, 2
      %v668 = vadd.f32 %v666, %v667
      %v669 = vrot.slane %v668, 1
      %v670 = vadd.f32 %v668, %v669
      %s671 = vtos %v670
      %v672 = vmul.f32 %v495, %v495
      %v673 = vmul.f32 %v496, %v496
      %v674 = vmul.f32 %v497, %v497
      %v675 = vmul.f32 %v498, %v498
      %v676 = vmul.f32 %v499, %v499
      %v677 = vmul.f32 %v500, %v500
      %v678 = vmul.f32 %v501, %v501
      %v679 = vmul.f32 %v502, %v502
      %v680 = vmul.f32 %v503, %v503
      %v681 = vmul.f32 %v504, %v504
      %v682 = vmul.f32 %v505, %v505
      %v683 = vmul.f32 %v506, %v506
      %v684 = vmul.f32 %v507, %v507
      %v685 = vmul.f32 %v508, %v508
      %v686 = vmul.f32 %v509, %v509
      %v687 = vmul.f32 %v510, %v510
      %v688 = vmul.f32 %v511, %v511
      %v689 = vmul.f32 %v512, %v512
      %v690 = vmul.f32 %v513, %v513
      %v691 = vmul.f32 %v514, %v514
      %v692 = vmul.f32 %v515, %v515
      %v693 = vmul.f32 %v516, %v516
      %v694 = vmul.f32 %v517, %v517
      %v695 = vmul.f32 %v518, %v518
      %v696 = vmul.f32 %v519, %v519
      %v697 = vmul.f32 %v520, %v520
      %v698 = vmul.f32 %v521, %v521
      %v699 = vmul.f32 %v522, %v522
      %v700 = vmul.f32 %v523, %v523
      %v701 = vmul.f32 %v524, %v524
      %v702 = vmul.f32 %v525, %v525
      %v703 = vmul.f32 %v526, %v526
      %v704 = vmul.f32 %v527, %v527
      %v705 = vmul.f32 %v528, %v528
      %v706 = vmul.f32 %v529, %v529
      %v707 = vmul.f32 %v530, %v530
      %v708 = vmul.f32 %v531, %v531
      %v709 = vmul.f32 %v532, %v532
      %v710 = vmul.f32 %v533, %v533
      %v711 = vmul.f32 %v534, %v534
      %v712 = vmul.f32 %v535, %v535
      %v713 = vmul.f32 %v536, %v536
      %v714 = vmul.f32 %v537, %v537
      %v715 = vmul.f32 %v538, %v538
      %v716 = vmul.f32 %v539, %v539
      %v717 = vmul.f32 %v540, %v540
      %v718 = vmul.f32 %v541, %v541
      %v719 = vmul.f32 %v542, %v542
      %v720 = vmul.f32 %v543, %v543
      %v721 = vmul.f32 %v544, %v544
      %v722 = vmul.f32 %v545, %v545
      %v723 = vmul.f32 %v546, %v546
      %v724 = vmul.f32 %v547, %v547
      %v725 = vmul.f32 %v548, %v548
      %v726 = vmul.f32 %v549, %v549
      %v727 = vmul.f32 %v550, %v550
      %v728 = vsel %vm551, %v672, 0.0
      %v729 = vsel %vm551, %v673, 0.0
      %v730 = vadd.f32 %v728, %v729
      %v731 = vsel %vm551, %v674, 0.0
      %v732 = vadd.f32 %v730, %v731
      %v733 = vsel %vm551, %v675, 0.0
      %v734 = vadd.f32 %v732, %v733
      %v735 = vsel %vm551, %v676, 0.0
      %v736 = vadd.f32 %v734, %v735
      %v737 = vsel %vm551, %v677, 0.0
      %v738 = vadd.f32 %v736, %v737
      %v739 = vsel %vm551, %v678, 0.0
      %v740 = vadd.f32 %v738, %v739
      %v741 = vsel %vm551, %v679, 0.0
      %v742 = vadd.f32 %v740, %v741
      %v743 = vsel %vm551, %v680, 0.0
      %v744 = vadd.f32 %v742, %v743
      %v745 = vsel %vm551, %v681, 0.0
      %v746 = vadd.f32 %v744, %v745
      %v747 = vsel %vm551, %v682, 0.0
      %v748 = vadd.f32 %v746, %v747
      %v749 = vsel %vm551, %v683, 0.0
      %v750 = vadd.f32 %v748, %v749
      %v751 = vsel %vm551, %v684, 0.0
      %v752 = vadd.f32 %v750, %v751
      %v753 = vsel %vm551, %v685, 0.0
      %v754 = vadd.f32 %v752, %v753
      %v755 = vsel %vm551, %v686, 0.0
      %v756 = vadd.f32 %v754, %v755
      %v757 = vsel %vm551, %v687, 0.0
      %v758 = vadd.f32 %v756, %v757
      %v759 = vsel %vm551, %v688, 0.0
      %v760 = vadd.f32 %v758, %v759
      %v761 = vsel %vm551, %v689, 0.0
      %v762 = vadd.f32 %v760, %v761
      %v763 = vsel %vm551, %v690, 0.0
      %v764 = vadd.f32 %v762, %v763
      %v765 = vsel %vm551, %v691, 0.0
      %v766 = vadd.f32 %v764, %v765
      %v767 = vsel %vm551, %v692, 0.0
      %v768 = vadd.f32 %v766, %v767
      %v769 = vsel %vm551, %v693, 0.0
      %v770 = vadd.f32 %v768, %v769
      %v771 = vsel %vm551, %v694, 0.0
      %v772 = vadd.f32 %v770, %v771
      %v773 = vsel %vm551, %v695, 0.0
      %v774 = vadd.f32 %v772, %v773
      %v775 = vsel %vm551, %v696, 0.0
      %v776 = vadd.f32 %v774, %v775
      %v777 = vsel %vm551, %v697, 0.0
      %v778 = vadd.f32 %v776, %v777
      %v779 = vsel %vm551, %v698, 0.0
      %v780 = vadd.f32 %v778, %v779
      %v781 = vsel %vm551, %v699, 0.0
      %v782 = vadd.f32 %v780, %v781
      %v783 = vsel %vm551, %v700, 0.0
      %v784 = vadd.f32 %v782, %v783
      %v785 = vsel %vm551, %v701, 0.0
      %v786 = vadd.f32 %v784, %v785
      %v787 = vsel %vm551, %v702, 0.0
      %v788 = vadd.f32 %v786, %v787
      %v789 = vsel %vm551, %v703, 0.0
      %v790 = vadd.f32 %v788, %v789
      %v791 = vsel %vm551, %v704, 0.0
      %v792 = vadd.f32 %v790, %v791
      %v793 = vsel %vm551, %v705, 0.0
      %v794 = vadd.f32 %v792, %v793
      %v795 = vsel %vm551, %v706, 0.0
      %v796 = vadd.f32 %v794, %v795
      %v797 = vsel %vm551, %v707, 0.0
      %v798 = vadd.f32 %v796, %v797
      %v799 = vsel %vm551, %v708, 0.0
      %v800 = vadd.f32 %v798, %v799
      %v801 = vsel %vm551, %v709, 0.0
      %v802 = vadd.f32 %v800, %v801
      %v803 = vsel %vm551, %v710, 0.0
      %v804 = vadd.f32 %v802, %v803
      %v805 = vsel %vm551, %v711, 0.0
      %v806 = vadd.f32 %v804, %v805
      %v807 = vsel %vm551, %v712, 0.0
      %v808 = vadd.f32 %v806, %v807
      %v809 = vsel %vm551, %v713, 0.0
      %v810 = vadd.f32 %v808, %v809
      %v811 = vsel %vm551, %v714, 0.0
      %v812 = vadd.f32 %v810, %v811
      %v813 = vsel %vm551, %v715, 0.0
      %v814 = vadd.f32 %v812, %v813
      %v815 = vsel %vm551, %v716, 0.0
      %v816 = vadd.f32 %v814, %v815
      %v817 = vsel %vm551, %v717, 0.0
      %v818 = vadd.f32 %v816, %v817
      %v819 = vsel %vm551, %v718, 0.0
      %v820 = vadd.f32 %v818, %v819
      %v821 = vsel %vm551, %v719, 0.0
      %v822 = vadd.f32 %v820, %v821
      %v823 = vsel %vm551, %v720, 0.0
      %v824 = vadd.f32 %v822, %v823
      %v825 = vsel %vm551, %v721, 0.0
      %v826 = vadd.f32 %v824, %v825
      %v827 = vsel %vm551, %v722, 0.0
      %v828 = vadd.f32 %v826, %v827
      %v829 = vsel %vm551, %v723, 0.0
      %v830 = vadd.f32 %v828, %v829
      %v831 = vsel %vm551, %v724, 0.0
      %v832 = vadd.f32 %v830, %v831
      %v833 = vsel %vm551, %v725, 0.0
      %v834 = vadd.f32 %v832, %v833
      %v835 = vsel %vm551, %v726, 0.0
      %v836 = vadd.f32 %v834, %v835
      %v837 = vsel %vm551, %v727, 0.0
      %v838 = vadd.f32 %v836, %v837
      %839 = vadd.xlane.f32.xlu0 %v838
      %v840 = vpop.xlane.xlu0 %839
      %v841 = vrot.slane %v840, 4
      %v842 = vadd.f32 %v840, %v841
      %v843 = vrot.slane %v842, 2
      %v844 = vadd.f32 %v842, %v843
      %v845 = vrot.slane %v844, 1
      %v846 = vadd.f32 %v844, %v845
      %s847 = vtos %v846
      %s848 = smul.f32 %s671, 3.9859693e-05
      %s849 = smul.f32 %s847, 3.9859693e-05
      %s850 = smul.f32 %s848, %s848
      %s851 = ssub.f32 %s849, %s850
      %s852 = sadd.f32 %s851, 1e-05
      %v853 = vstv %s852
      %v854 = vrsqrt.pop %v853
      %s855 = vtos %v854
      %v856 = vstv %s848
      %v857 = vsub.f32 %v495, %v856
      %v858 = vsub.f32 %v496, %v856
      %v859 = vsub.f32 %v497, %v856
      %v860 = vsub.f32 %v498, %v856
      %v861 = vsub.f32 %v499, %v856
      %v862 = vsub.f32 %v500, %v856
      %v863 = vsub.f32 %v501, %v856
      %v864 = vsub.f32 %v502, %v856
      %v865 = vsub.f32 %v503, %v856
      %v866 = vsub.f32 %v504, %v856
      %v867 = vsub.f32 %v505, %v856
      %v868 = vsub.f32 %v506, %v856
      %v869 = vsub.f32 %v507, %v856
      %v870 = vsub.f32 %v508, %v856
      %v871 = vsub.f32 %v509, %v856
      %v872 = vsub.f32 %v510, %v856
      %v873 = vsub.f32 %v511, %v856
      %v874 = vsub.f32 %v512, %v856
      %v875 = vsub.f32 %v513, %v856
      %v876 = vsub.f32 %v514, %v856
      %v877 = vsub.f32 %v515, %v856
      %v878 = vsub.f32 %v516, %v856
      %v879 = vsub.f32 %v517, %v856
      %v880 = vsub.f32 %v518, %v856
      %v881 = vsub.f32 %v519, %v856
      %v882 = vsub.f32 %v520, %v856
      %v883 = vsub.f32 %v521, %v856
      %v884 = vsub.f32 %v522, %v856
      %v885 = vsub.f32 %v523, %v856
      %v886 = vsub.f32 %v524, %v856
      %v887 = vsub.f32 %v525, %v856
      %v888 = vsub.f32 %v526, %v856
      %v889 = vsub.f32 %v527, %v856
      %v890 = vsub.f32 %v528, %v856
      %v891 = vsub.f32 %v529, %v856
      %v892 = vsub.f32 %v530, %v856
      %v893 = vsub.f32 %v531, %v856
      %v894 = vsub.f32 %v532, %v856
      %v895 = vsub.f32 %v533, %v856
      %v896 = vsub.f32 %v534, %v856
      %v897 = vsub.f32 %v535, %v856
      %v898 = vsub.f32 %v536, %v856
      %v899 = vsub.f32 %v537, %v856
      %v900 = vsub.f32 %v538, %v856
      %v901 = vsub.f32 %v539, %v856
      %v902 = vsub.f32 %v540, %v856
      %v903 = vsub.f32 %v541, %v856
      %v904 = vsub.f32 %v542, %v856
      %v905 = vsub.f32 %v543, %v856
      %v906 = vsub.f32 %v544, %v856
      %v907 = vsub.f32 %v545, %v856
      %v908 = vsub.f32 %v546, %v856
      %v909 = vsub.f32 %v547, %v856
      %v910 = vsub.f32 %v548, %v856
      %v911 = vsub.f32 %v549, %v856
      %v912 = vsub.f32 %v550, %v856
      %v913 = vstv %s855
      %v914 = vmul.f32 %v857, %v913
      %v915 = vmul.f32 %v858, %v913
      %v916 = vmul.f32 %v859, %v913
      %v917 = vmul.f32 %v860, %v913
      %v918 = vmul.f32 %v861, %v913
      %v919 = vmul.f32 %v862, %v913
      %v920 = vmul.f32 %v863, %v913
      %v921 = vmul.f32 %v864, %v913
      %v922 = vmul.f32 %v865, %v913
      %v923 = vmul.f32 %v866, %v913
      %v924 = vmul.f32 %v867, %v913
      %v925 = vmul.f32 %v868, %v913
      %v926 = vmul.f32 %v869, %v913
      %v927 = vmul.f32 %v870, %v913
      %v928 = vmul.f32 %v871, %v913
      %v929 = vmul.f32 %v872, %v913
      %v930 = vmul.f32 %v873, %v913
      %v931 = vmul.f32 %v874, %v913
      %v932 = vmul.f32 %v875, %v913
      %v933 = vmul.f32 %v876, %v913
      %v934 = vmul.f32 %v877, %v913
      %v935 = vmul.f32 %v878, %v913
      %v936 = vmul.f32 %v879, %v913
      %v937 = vmul.f32 %v880, %v913
      %v938 = vmul.f32 %v881, %v913
      %v939 = vmul.f32 %v882, %v913
      %v940 = vmul.f32 %v883, %v913
      %v941 = vmul.f32 %v884, %v913
      %v942 = vmul.f32 %v885, %v913
      %v943 = vmul.f32 %v886, %v913
      %v944 = vmul.f32 %v887, %v913
      %v945 = vmul.f32 %v888, %v913
      %v946 = vmul.f32 %v889, %v913
      %v947 = vmul.f32 %v890, %v913
      %v948 = vmul.f32 %v891, %v913
      %v949 = vmul.f32 %v892, %v913
      %v950 = vmul.f32 %v893, %v913
      %v951 = vmul.f32 %v894, %v913
      %v952 = vmul.f32 %v895, %v913
      %v953 = vmul.f32 %v896, %v913
      %v954 = vmul.f32 %v897, %v913
      %v955 = vmul.f32 %v898, %v913
      %v956 = vmul.f32 %v899, %v913
      %v957 = vmul.f32 %v900, %v913
      %v958 = vmul.f32 %v901, %v913
      %v959 = vmul.f32 %v902, %v913
      %v960 = vmul.f32 %v903, %v913
      %v961 = vmul.f32 %v904, %v913
      %v962 = vmul.f32 %v905, %v913
      %v963 = vmul.f32 %v906, %v913
      %v964 = vmul.f32 %v907, %v913
      %v965 = vmul.f32 %v908, %v913
      %v966 = vmul.f32 %v909, %v913
      %v967 = vmul.f32 %v910, %v913
      %v968 = vmul.f32 %v911, %v913
      %v969 = vmul.f32 %v912, %v913
      %v970 = vld [vmem:[%s1] sm:$0xff]
      %v971 = vld [vmem:[%s1 + $0x8] sm:$0xff]
      %v972 = vld [vmem:[%s1 + $0x10] sm:$0xff]
      %v973 = vld [vmem:[%s1 + $0x18] sm:$0xff]
      %v974 = vld [vmem:[%s1 + $0x20] sm:$0xff]
      %v975 = vld [vmem:[%s1 + $0x28] sm:$0xff]
      %v976 = vld [vmem:[%s1 + $0x30] sm:$0xff]
      %v977 = vld [vmem:[%s1 + $0x38] sm:$0xff]
      %v978 = vld [vmem:[%s1 + $0x40] sm:$0xff]
      %v979 = vld [vmem:[%s1 + $0x48] sm:$0xff]
      %v980 = vld [vmem:[%s1 + $0x50] sm:$0xff]
      %v981 = vld [vmem:[%s1 + $0x58] sm:$0xff]
      %v982 = vld [vmem:[%s1 + $0x60] sm:$0xff]
      %v983 = vld [vmem:[%s1 + $0x68] sm:$0xff]
      %v984 = vld [vmem:[%s1 + $0x70] sm:$0xff]
      %v985 = vld [vmem:[%s1 + $0x78] sm:$0xff]
      %v986 = vld [vmem:[%s1 + $0x80] sm:$0xff]
      %v987 = vld [vmem:[%s1 + $0x88] sm:$0xff]
      %v988 = vld [vmem:[%s1 + $0x90] sm:$0xff]
      %v989 = vld [vmem:[%s1 + $0x98] sm:$0xff]
      %v990 = vld [vmem:[%s1 + $0xa0] sm:$0xff]
      %v991 = vld [vmem:[%s1 + $0xa8] sm:$0xff]
      %v992 = vld [vmem:[%s1 + $0xb0] sm:$0xff]
      %v993 = vld [vmem:[%s1 + $0xb8] sm:$0xff]
      %v994 = vld [vmem:[%s1 + $0xc0] sm:$0xff]
      %v995 = vld [vmem:[%s1 + $0xc8] sm:$0xff]
      %v996 = vld [vmem:[%s1 + $0xd0] sm:$0xff]
      %v997 = vld [vmem:[%s1 + $0xd8] sm:$0xff]
      %v998 = vld [vmem:[%s1 + $0xe0] sm:$0xff]
      %v999 = vld [vmem:[%s1 + $0xe8] sm:$0xff]
      %v1000 = vld [vmem:[%s1 + $0xf0] sm:$0xff]
      %v1001 = vld [vmem:[%s1 + $0xf8] sm:$0xff]
      %v1002 = vld [vmem:[%s1 + $0x100] sm:$0xff]
      %v1003 = vld [vmem:[%s1 + $0x108] sm:$0xff]
      %v1004 = vld [vmem:[%s1 + $0x110] sm:$0xff]
      %v1005 = vld [vmem:[%s1 + $0x118] sm:$0xff]
      %v1006 = vld [vmem:[%s1 + $0x120] sm:$0xff]
      %v1007 = vld [vmem:[%s1 + $0x128] sm:$0xff]
      %v1008 = vld [vmem:[%s1 + $0x130] sm:$0xff]
      %v1009 = vld [vmem:[%s1 + $0x138] sm:$0xff]
      %v1010 = vld [vmem:[%s1 + $0x140] sm:$0xff]
      %v1011 = vld [vmem:[%s1 + $0x148] sm:$0xff]
      %v1012 = vld [vmem:[%s1 + $0x150] sm:$0xff]
      %v1013 = vld [vmem:[%s1 + $0x158] sm:$0xff]
      %v1014 = vld [vmem:[%s1 + $0x160] sm:$0xff]
      %v1015 = vld [vmem:[%s1 + $0x168] sm:$0xff]
      %v1016 = vld [vmem:[%s1 + $0x170] sm:$0xff]
      %v1017 = vld [vmem:[%s1 + $0x178] sm:$0xff]
      %v1018 = vld [vmem:[%s1 + $0x180] sm:$0xff]
      %v1019 = vld [vmem:[%s1 + $0x188] sm:$0xff]
      %v1020 = vld [vmem:[%s1 + $0x190] sm:$0xff]
      %v1021 = vld [vmem:[%s1 + $0x198] sm:$0xff]
      %v1022 = vld [vmem:[%s1 + $0x1a0] sm:$0xff]
      %v1023 = vld [vmem:[%s1 + $0x1a8] sm:$0xff]
      %v1024 = vld [vmem:[%s1 + $0x1b0] sm:$0xff]
      %v1025 = vld [vmem:[%s1 + $0x1b8] sm:$0xff]
      %v1026 = vmul.f32 %v914, %v970
      %v1027 = vmul.f32 %v915, %v971
      %v1028 = vmul.f32 %v916, %v972
      %v1029 = vmul.f32 %v917, %v973
      %v1030 = vmul.f32 %v918, %v974
      %v1031 = vmul.f32 %v919, %v975
      %v1032 = vmul.f32 %v920, %v976
      %v1033 = vmul.f32 %v921, %v977
      %v1034 = vmul.f32 %v922, %v978
      %v1035 = vmul.f32 %v923, %v979
      %v1036 = vmul.f32 %v924, %v980
      %v1037 = vmul.f32 %v925, %v981
      %v1038 = vmul.f32 %v926, %v982
      %v1039 = vmul.f32 %v927, %v983
      %v1040 = vmul.f32 %v928, %v984
      %v1041 = vmul.f32 %v929, %v985
      %v1042 = vmul.f32 %v930, %v986
      %v1043 = vmul.f32 %v931, %v987
      %v1044 = vmul.f32 %v932, %v988
      %v1045 = vmul.f32 %v933, %v989
      %v1046 = vmul.f32 %v934, %v990
      %v1047 = vmul.f32 %v935, %v991
      %v1048 = vmul.f32 %v936, %v992
      %v1049 = vmul.f32 %v937, %v993
      %v1050 = vmul.f32 %v938, %v994
      %v1051 = vmul.f32 %v939, %v995
      %v1052 = vmul.f32 %v940, %v996
      %v1053 = vmul.f32 %v941, %v997
      %v1054 = vmul.f32 %v942, %v998
      %v1055 = vmul.f32 %v943, %v999
      %v1056 = vmul.f32 %v944, %v1000
      %v1057 = vmul.f32 %v945, %v1001
      %v1058 = vmul.f32 %v946, %v1002
      %v1059 = vmul.f32 %v947, %v1003
      %v1060 = vmul.f32 %v948, %v1004
      %v1061 = vmul.f32 %v949, %v1005
      %v1062 = vmul.f32 %v950, %v1006
      %v1063 = vmul.f32 %v951, %v1007
      %v1064 = vmul.f32 %v952, %v1008
      %v1065 = vmul.f32 %v953, %v1009
      %v1066 = vmul.f32 %v954, %v1010
      %v1067 = vmul.f32 %v955, %v1011
      %v1068 = vmul.f32 %v956, %v1012
      %v1069 = vmul.f32 %v957, %v1013
      %v1070 = vmul.f32 %v958, %v1014
      %v1071 = vmul.f32 %v959, %v1015
      %v1072 = vmul.f32 %v960, %v1016
      %v1073 = vmul.f32 %v961, %v1017
      %v1074 = vmul.f32 %v962, %v1018
      %v1075 = vmul.f32 %v963, %v1019
      %v1076 = vmul.f32 %v964, %v1020
      %v1077 = vmul.f32 %v965, %v1021
      %v1078 = vmul.f32 %v966, %v1022
      %v1079 = vmul.f32 %v967, %v1023
      %v1080 = vmul.f32 %v968, %v1024
      %v1081 = vmul.f32 %v969, %v1025
      %v1082 = vld [vmem:[%s2] sm:$0xff]
      %v1083 = vld [vmem:[%s2 + $0x8] sm:$0xff]
      %v1084 = vld [vmem:[%s2 + $0x10] sm:$0xff]
      %v1085 = vld [vmem:[%s2 + $0x18] sm:$0xff]
      %v1086 = vld [vmem:[%s2 + $0x20] sm:$0xff]
      %v1087 = vld [vmem:[%s2 + $0x28] sm:$0xff]
      %v1088 = vld [vmem:[%s2 + $0x30] sm:$0xff]
      %v1089 = vld [vmem:[%s2 + $0x38] sm:$0xff]
      %v1090 = vld [vmem:[%s2 + $0x40] sm:$0xff]
      %v1091 = vld [vmem:[%s2 + $0x48] sm:$0xff]
      %v1092 = vld [vmem:[%s2 + $0x50] sm:$0xff]
      %v1093 = vld [vmem:[%s2 + $0x58] sm:$0xff]
      %v1094 = vld [vmem:[%s2 + $0x60] sm:$0xff]
      %v1095 = vld [vmem:[%s2 + $0x68] sm:$0xff]
      %v1096 = vld [vmem:[%s2 + $0x70] sm:$0xff]
      %v1097 = vld [vmem:[%s2 + $0x78] sm:$0xff]
      %v1098 = vld [vmem:[%s2 + $0x80] sm:$0xff]
      %v1099 = vld [vmem:[%s2 + $0x88] sm:$0xff]
      %v1100 = vld [vmem:[%s2 + $0x90] sm:$0xff]
      %v1101 = vld [vmem:[%s2 + $0x98] sm:$0xff]
      %v1102 = vld [vmem:[%s2 + $0xa0] sm:$0xff]
      %v1103 = vld [vmem:[%s2 + $0xa8] sm:$0xff]
      %v1104 = vld [vmem:[%s2 + $0xb0] sm:$0xff]
      %v1105 = vld [vmem:[%s2 + $0xb8] sm:$0xff]
      %v1106 = vld [vmem:[%s2 + $0xc0] sm:$0xff]
      %v1107 = vld [vmem:[%s2 + $0xc8] sm:$0xff]
      %v1108 = vld [vmem:[%s2 + $0xd0] sm:$0xff]
      %v1109 = vld [vmem:[%s2 + $0xd8] sm:$0xff]
      %v1110 = vld [vmem:[%s2 + $0xe0] sm:$0xff]
      %v1111 = vld [vmem:[%s2 + $0xe8] sm:$0xff]
      %v1112 = vld [vmem:[%s2 + $0xf0] sm:$0xff]
      %v1113 = vld [vmem:[%s2 + $0xf8] sm:$0xff]
      %v1114 = vld [vmem:[%s2 + $0x100] sm:$0xff]
      %v1115 = vld [vmem:[%s2 + $0x108] sm:$0xff]
      %v1116 = vld [vmem:[%s2 + $0x110] sm:$0xff]
      %v1117 = vld [vmem:[%s2 + $0x118] sm:$0xff]
      %v1118 = vld [vmem:[%s2 + $0x120] sm:$0xff]
      %v1119 = vld [vmem:[%s2 + $0x128] sm:$0xff]
      %v1120 = vld [vmem:[%s2 + $0x130] sm:$0xff]
      %v1121 = vld [vmem:[%s2 + $0x138] sm:$0xff]
      %v1122 = vld [vmem:[%s2 + $0x140] sm:$0xff]
      %v1123 = vld [vmem:[%s2 + $0x148] sm:$0xff]
      %v1124 = vld [vmem:[%s2 + $0x150] sm:$0xff]
      %v1125 = vld [vmem:[%s2 + $0x158] sm:$0xff]
      %v1126 = vld [vmem:[%s2 + $0x160] sm:$0xff]
      %v1127 = vld [vmem:[%s2 + $0x168] sm:$0xff]
      %v1128 = vld [vmem:[%s2 + $0x170] sm:$0xff]
      %v1129 = vld [vmem:[%s2 + $0x178] sm:$0xff]
      %v1130 = vld [vmem:[%s2 + $0x180] sm:$0xff]
      %v1131 = vld [vmem:[%s2 + $0x188] sm:$0xff]
      %v1132 = vld [vmem:[%s2 + $0x190] sm:$0xff]
      %v1133 = vld [vmem:[%s2 + $0x198] sm:$0xff]
      %v1134 = vld [vmem:[%s2 + $0x1a0] sm:$0xff]
      %v1135 = vld [vmem:[%s2 + $0x1a8] sm:$0xff]
      %v1136 = vld [vmem:[%s2 + $0x1b0] sm:$0xff]
      %v1137 = vld [vmem:[%s2 + $0x1b8] sm:$0xff]
      %v1138 = vadd.f32 %v1026, %v1082
      %v1139 = vadd.f32 %v1027, %v1083
      %v1140 = vadd.f32 %v1028, %v1084
      %v1141 = vadd.f32 %v1029, %v1085
      %v1142 = vadd.f32 %v1030, %v1086
      %v1143 = vadd.f32 %v1031, %v1087
      %v1144 = vadd.f32 %v1032, %v1088
      %v1145 = vadd.f32 %v1033, %v1089
      %v1146 = vadd.f32 %v1034, %v1090
      %v1147 = vadd.f32 %v1035, %v1091
      %v1148 = vadd.f32 %v1036, %v1092
      %v1149 = vadd.f32 %v1037, %v1093
      %v1150 = vadd.f32 %v1038, %v1094
      %v1151 = vadd.f32 %v1039, %v1095
      %v1152 = vadd.f32 %v1040, %v1096
      %v1153 = vadd.f32 %v1041, %v1097
      %v1154 = vadd.f32 %v1042, %v1098
      %v1155 = vadd.f32 %v1043, %v1099
      %v1156 = vadd.f32 %v1044, %v1100
      %v1157 = vadd.f32 %v1045, %v1101
      %v1158 = vadd.f32 %v1046, %v1102
      %v1159 = vadd.f32 %v1047, %v1103
      %v1160 = vadd.f32 %v1048, %v1104
      %v1161 = vadd.f32 %v1049, %v1105
      %v1162 = vadd.f32 %v1050, %v1106
      %v1163 = vadd.f32 %v1051, %v1107
      %v1164 = vadd.f32 %v1052, %v1108
      %v1165 = vadd.f32 %v1053, %v1109
      %v1166 = vadd.f32 %v1054, %v1110
      %v1167 = vadd.f32 %v1055, %v1111
      %v1168 = vadd.f32 %v1056, %v1112
      %v1169 = vadd.f32 %v1057, %v1113
      %v1170 = vadd.f32 %v1058, %v1114
      %v1171 = vadd.f32 %v1059, %v1115
      %v1172 = vadd.f32 %v1060, %v1116
      %v1173 = vadd.f32 %v1061, %v1117
      %v1174 = vadd.f32 %v1062, %v1118
      %v1175 = vadd.f32 %v1063, %v1119
      %v1176 = vadd.f32 %v1064, %v1120
      %v1177 = vadd.f32 %v1065, %v1121
      %v1178 = vadd.f32 %v1066, %v1122
      %v1179 = vadd.f32 %v1067, %v1123
      %v1180 = vadd.f32 %v1068, %v1124
      %v1181 = vadd.f32 %v1069, %v1125
      %v1182 = vadd.f32 %v1070, %v1126
      %v1183 = vadd.f32 %v1071, %v1127
      %v1184 = vadd.f32 %v1072, %v1128
      %v1185 = vadd.f32 %v1073, %v1129
      %v1186 = vadd.f32 %v1074, %v1130
      %v1187 = vadd.f32 %v1075, %v1131
      %v1188 = vadd.f32 %v1076, %v1132
      %v1189 = vadd.f32 %v1077, %v1133
      %v1190 = vadd.f32 %v1078, %v1134
      %v1191 = vadd.f32 %v1079, %v1135
      %v1192 = vadd.f32 %v1080, %v1136
      %v1193 = vadd.f32 %v1081, %v1137
      %v1194 = vld [vmem:[%s5] sm:$0xff]
      %v1195 = vld [vmem:[%s5 + $0x8] sm:$0xff]
      %v1196 = vld [vmem:[%s5 + $0x10] sm:$0xff]
      %v1197 = vld [vmem:[%s5 + $0x18] sm:$0xff]
      %v1198 = vld [vmem:[%s5 + $0x20] sm:$0xff]
      %v1199 = vld [vmem:[%s5 + $0x28] sm:$0xff]
      %v1200 = vld [vmem:[%s5 + $0x30] sm:$0xff]
      %v1201 = vld [vmem:[%s3] sm:$0xff]
      %v1202 = vld [vmem:[%s3 + $0x8] sm:$0xff]
      %v1203 = vld [vmem:[%s3 + $0x10] sm:$0xff]
      %v1204 = vld [vmem:[%s3 + $0x18] sm:$0xff]
      %v1205 = vld [vmem:[%s3 + $0x20] sm:$0xff]
      %v1206 = vld [vmem:[%s3 + $0x28] sm:$0xff]
      %v1207 = vld [vmem:[%s3 + $0x30] sm:$0xff]
      %v1208 = vld [vmem:[%s3 + $0x38] sm:$0xff]
      %v1209 = vld [vmem:[%s3 + $0x40] sm:$0xff]
      %v1210 = vld [vmem:[%s3 + $0x48] sm:$0xff]
      %v1211 = vld [vmem:[%s3 + $0x50] sm:$0xff]
      %v1212 = vld [vmem:[%s3 + $0x58] sm:$0xff]
      %v1213 = vld [vmem:[%s3 + $0x60] sm:$0xff]
      %v1214 = vld [vmem:[%s3 + $0x68] sm:$0xff]
      %v1215 = vld [vmem:[%s3 + $0x70] sm:$0xff]
      %v1216 = vld [vmem:[%s3 + $0x78] sm:$0xff]
      %v1217 = vld [vmem:[%s3 + $0x80] sm:$0xff]
      %v1218 = vld [vmem:[%s3 + $0x88] sm:$0xff]
      %v1219 = vld [vmem:[%s3 + $0x90] sm:$0xff]
      %v1220 = vld [vmem:[%s3 + $0x98] sm:$0xff]
      %v1221 = vld [vmem:[%s3 + $0xa0] sm:$0xff]
      %v1222 = vld [vmem:[%s3 + $0xa8] sm:$0xff]
      %v1223 = vld [vmem:[%s3 + $0xb0] sm:$0xff]
      %v1224 = vld [vmem:[%s3 + $0xb8] sm:$0xff]
      %v1225 = vld [vmem:[%s3 + $0xc0] sm:$0xff]
      %v1226 = vld [vmem:[%s3 + $0xc8] sm:$0xff]
      %v1227 = vld [vmem:[%s3 + $0xd0] sm:$0xff]
      %v1228 = vld [vmem:[%s3 + $0xd8] sm:$0xff]
      %vm1229 = vcmask 523264
      %v1231 = vsel %vm1229, %v1204, 0
      %v1234 = vsel %vm1229, %v1208, 0
      %v1237 = vsel %vm1229, %v1212, 0
      %v1240 = vsel %vm1229, %v1216, 0
      %v1243 = vsel %vm1229, %v1220, 0
      %v1246 = vsel %vm1229, %v1224, 0
      %v1249 = vsel %vm1229, %v1228, 0
      %1251 = vmatprep.subr.mxu0 0.0
      %1252 = vmatpush1.msra.mxu0 %v1138
      %1253 = vmatprep.subr.mxu0 0.0
      %1254 = vmatpush1.msra.mxu0 %v1139
      %1255 = vmatprep.subr.mxu0 0.0
      %1256 = vmatpush1.msra.mxu0 %v1140
      %1257 = vmatprep.subr.mxu0 0.0
      %1258 = vmatpush1.msra.mxu0 %v1141
      %1259 = vmatprep.subr.mxu0 0.0
      %1260 = vmatpush1.msra.mxu0 %v1142
      %1261 = vmatprep.subr.mxu0 0.0
      %1262 = vmatpush1.msra.mxu0 %v1143
      %1263 = vmatprep.subr.mxu0 0.0
      %1264 = vmatpush1.msra.mxu0 %v1144
      %1265 = vmatprep.subr.mxu0 0.0
      %1266 = vmatpush1.msra.mxu0 %v1145
      %1267 = vmatprep.subr.mxu0 0.0
      %1268 = vmatpush1.msra.mxu0 %v1146
      %1269 = vmatprep.subr.mxu0 0.0
      %1270 = vmatpush1.msra.mxu0 %v1147
      %1271 = vmatprep.subr.mxu0 0.0
      %1272 = vmatpush1.msra.mxu0 %v1148
      %1273 = vmatprep.subr.mxu0 0.0
      %1274 = vmatpush1.msra.mxu0 %v1149
      %1275 = vmatprep.subr.mxu0 0.0
      %1276 = vmatpush1.msra.mxu0 %v1150
      %1277 = vmatprep.subr.mxu0 0.0
      %1278 = vmatpush1.msra.mxu0 %v1151
      %1279 = vmatprep.subr.mxu0 0.0
      %1280 = vmatpush1.msra.mxu0 %v1152
      %1281 = vmatprep.subr.mxu0 0.0
      %1282 = vmatpush1.msra.mxu0 %v1153
      %1283 = vmatprep.subr.mxu0 0.0
      %1284 = vmatpush1.msra.mxu0 %v1154
      %1285 = vmatprep.subr.mxu0 0.0
      %1286 = vmatpush1.msra.mxu0 %v1155
      %1287 = vmatprep.subr.mxu0 0.0
      %1288 = vmatpush1.msra.mxu0 %v1156
      %1289 = vmatprep.subr.mxu0 0.0
      %1290 = vmatpush1.msra.mxu0 %v1157
      %1291 = vmatprep.subr.mxu0 0.0
      %1292 = vmatpush1.msra.mxu0 %v1158
      %1293 = vmatprep.subr.mxu0 0.0
      %1294 = vmatpush1.msra.mxu0 %v1159
      %1295 = vmatprep.subr.mxu0 0.0
      %1296 = vmatpush1.msra.mxu0 %v1160
      %1297 = vmatprep.subr.mxu0 0.0
      %1298 = vmatpush1.msra.mxu0 %v1161
      %1299 = vmatprep.subr.mxu0 0.0
      %1300 = vmatpush1.msra.mxu0 %v1162
      %1301 = vmatprep.subr.mxu0 0.0
      %1302 = vmatpush1.msra.mxu0 %v1163
      %1303 = vmatprep.subr.mxu0 0.0
      %1304 = vmatpush1.msra.mxu0 %v1164
      %1305 = vmatprep.subr.mxu0 0.0
      %1306 = vmatpush1.msra.mxu0 %v1165
      %1307 = vmatprep.subr.mxu0 0.0
      %1308 = vmatpush1.msra.mxu0 %v1166
      %1309 = vmatprep.subr.mxu0 0.0
      %1310 = vmatpush1.msra.mxu0 %v1167
      %1311 = vmatprep.subr.mxu0 0.0
      %1312 = vmatpush1.msra.mxu0 %v1168
      %1313 = vmatprep.subr.mxu0 0.0
      %1314 = vmatpush1.msra.mxu0 %v1169
      %1315 = vmatprep.mubr.f32.mxu0 %v1202
      %1316 = vmatmul.mubr.f32.gmra.mrb[0].mxu0 %v1201
      %v1317 = vpop.f32.mrb[0].mxu0
      %v1318 = vadd.f32 0.0, %v1317
      %v1319 = vpop.f32.mrb[0].mxu0
      %1320 = vmatprep.mubr.f32.mxu0 %v1206
      %1321 = vmatmul.mubr.f32.gmra.mrb[0].mxu0 %v1205
      %v1322 = vpop.f32.mrb[0].mxu0
      %v1323 = vadd.f32 0.0, %v1322
      %v1324 = vpop.f32.mrb[0].mxu0
      %1325 = vmatprep.mubr.f32.mxu0 %v1210
      %1326 = vmatmul.mubr.f32.gmra.mrb[0].mxu0 %v1209
      %v1327 = vpop.f32.mrb[0].mxu0
      %v1328 = vadd.f32 0.0, %v1327
      %v1329 = vpop.f32.mrb[0].mxu0
      %1330 = vmatprep.mubr.f32.mxu0 %v1214
      %1331 = vmatmul.mubr.f32.gmra.mrb[0].mxu0 %v1213
      %v1332 = vpop.f32.mrb[0].mxu0
      %v1333 = vadd.f32 0.0, %v1332
      %v1334 = vpop.f32.mrb[0].mxu0
      %1335 = vmatprep.mubr.f32.mxu0 %v1218
      %1336 = vmatmul.mubr.f32.gmra.mrb[0].mxu0 %v1217
      %v1337 = vpop.f32.mrb[0].mxu0
      %v1338 = vadd.f32 0.0, %v1337
      %v1339 = vpop.f32.mrb[0].mxu0
      %1340 = vmatprep.mubr.f32.mxu0 %v1222
      %1341 = vmatmul.mubr.f32.gmra.mrb[0].mxu0 %v1221
      %v1342 = vpop.f32.mrb[0].mxu0
      %v1343 = vadd.f32 0.0, %v1342
      %v1344 = vpop.f32.mrb[0].mxu0
      %1345 = vmatprep.mubr.f32.mxu0 %v1226
      %1346 = vmatmul.mubr.f32.gmra.mrb[0].mxu0 %v1225
      %v1347 = vpop.f32.mrb[0].mxu0
      %v1348 = vadd.f32 0.0, %v1347
      %v1349 = vpop.f32.mrb[0].mxu0
      %1350 = vdwg.mxu0
      %1351 = vmatprep.subr.mxu0 0.0
      %1352 = vmatpush1.msra.mxu0 %v1170
      %1353 = vmatprep.subr.mxu0 0.0
      %1354 = vmatpush1.msra.mxu0 %v1171
      %1355 = vmatprep.subr.mxu0 0.0
      %1356 = vmatpush1.msra.mxu0 %v1172
      %1357 = vmatprep.subr.mxu0 0.0
      %1358 = vmatpush1.msra.mxu0 %v1173
      %1359 = vmatprep.subr.mxu0 0.0
      %1360 = vmatpush1.msra.mxu0 %v1174
      %1361 = vmatprep.subr.mxu0 0.0
      %1362 = vmatpush1.msra.mxu0 %v1175
      %1363 = vmatprep.subr.mxu0 0.0
      %1364 = vmatpush1.msra.mxu0 %v1176
      %1365 = vmatprep.subr.mxu0 0.0
      %1366 = vmatpush1.msra.mxu0 %v1177
      %1367 = vmatprep.subr.mxu0 0.0
      %1368 = vmatpush1.msra.mxu0 %v1178
      %1369 = vmatprep.subr.mxu0 0.0
      %1370 = vmatpush1.msra.mxu0 %v1179
      %1371 = vmatprep.subr.mxu0 0.0
      %1372 = vmatpush1.msra.mxu0 %v1180
      %1373 = vmatprep.subr.mxu0 0.0
      %1374 = vmatpush1.msra.mxu0 %v1181
      %1375 = vmatprep.subr.mxu0 0.0
      %1376 = vmatpush1.msra.mxu0 %v1182
      %1377 = vmatprep.subr.mxu0 0.0
      %1378 = vmatpush1.msra.mxu0 %v1183
      %1379 = vmatprep.subr.mxu0 0.0
      %1380 = vmatpush1.msra.mxu0 %v1184
      %1381 = vmatprep.subr.mxu0 0.0
      %1382 = vmatpush1.msra.mxu0 %v1185
      %1383 = vmatprep.subr.mxu0 0.0
      %1384 = vmatpush1.msra.mxu0 %v1186
      %1385 = vmatprep.subr.mxu0 0.0
      %1386 = vmatpush1.msra.mxu0 %v1187
      %1387 = vmatprep.subr.mxu0 0.0
      %1388 = vmatpush1.msra.mxu0 %v1188
      %1389 = vmatprep.subr.mxu0 0.0
      %1390 = vmatpush1.msra.mxu0 %v1189
      %1391 = vmatprep.subr.mxu0 0.0
      %1392 = vmatpush1.msra.mxu0 %v1190
      %1393 = vmatprep.subr.mxu0 0.0
      %1394 = vmatpush1.msra.mxu0 %v1191
      %1395 = vmatprep.subr.mxu0 0.0
      %1396 = vmatpush1.msra.mxu0 %v1192
      %1397 = vmatprep.subr.mxu0 0.0
      %1398 = vmatpush1.msra.mxu0 %v1193
      %1399 = vmatprep.subr.mxu0 0.0
      %1400 = vmatpush1.msra.mxu0 0.0
      %1401 = vmatprep.subr.mxu0 0.0
      %1402 = vmatpush1.msra.mxu0 0.0
      %1403 = vmatprep.subr.mxu0 0.0
      %1404 = vmatpush1.msra.mxu0 0.0
      %1405 = vmatprep.subr.mxu0 0.0
      %1406 = vmatpush1.msra.mxu0 0.0
      %1407 = vmatprep.subr.mxu0 0.0
      %1408 = vmatpush1.msra.mxu0 0.0
      %1409 = vmatprep.subr.mxu0 0.0
      %1410 = vmatpush1.msra.mxu0 0.0
      %1411 = vmatprep.subr.mxu0 0.0
      %1412 = vmatpush1.msra.mxu0 0.0
      %1413 = vmatprep.subr.mxu0 0.0
      %1414 = vmatpush1.msra.mxu0 0.0
      %1415 = vmatprep.mubr.f32.mxu0 %v1231
      %1416 = vmatmul.mubr.f32.gmra.mrb[0].mxu0 %v1203
      %v1417 = vpop.f32.mrb[0].mxu0
      %v1418 = vadd.f32 %v1318, %v1417
      %v1419 = vpop.f32.mrb[0].mxu0
      %1420 = vmatprep.mubr.f32.mxu0 %v1234
      %1421 = vmatmul.mubr.f32.gmra.mrb[0].mxu0 %v1207
      %v1422 = vpop.f32.mrb[0].mxu0
      %v1423 = vadd.f32 %v1323, %v1422
      %v1424 = vpop.f32.mrb[0].mxu0
      %1425 = vmatprep.mubr.f32.mxu0 %v1237
      %1426 = vmatmul.mubr.f32.gmra.mrb[0].mxu0 %v1211
      %v1427 = vpop.f32.mrb[0].mxu0
      %v1428 = vadd.f32 %v1328, %v1427
      %v1429 = vpop.f32.mrb[0].mxu0
      %1430 = vmatprep.mubr.f32.mxu0 %v1240
      %1431 = vmatmul.mubr.f32.gmra.mrb[0].mxu0 %v1215
      %v1432 = vpop.f32.mrb[0].mxu0
      %v1433 = vadd.f32 %v1333, %v1432
      %v1434 = vpop.f32.mrb[0].mxu0
      %1435 = vmatprep.mubr.f32.mxu0 %v1243
      %1436 = vmatmul.mubr.f32.gmra.mrb[0].mxu0 %v1219
      %v1437 = vpop.f32.mrb[0].mxu0
      %v1438 = vadd.f32 %v1338, %v1437
      %v1439 = vpop.f32.mrb[0].mxu0
      %1440 = vmatprep.mubr.f32.mxu0 %v1246
      %1441 = vmatmul.mubr.f32.gmra.mrb[0].mxu0 %v1223
      %v1442 = vpop.f32.mrb[0].mxu0
      %v1443 = vadd.f32 %v1343, %v1442
      %v1444 = vpop.f32.mrb[0].mxu0
      %1445 = vmatprep.mubr.f32.mxu0 %v1249
      %1446 = vmatmul.mubr.f32.gmra.mrb[0].mxu0 %v1227
      %v1447 = vpop.f32.mrb[0].mxu0
      %v1448 = vadd.f32 %v1348, %v1447
      %v1449 = vpop.f32.mrb[0].mxu0
      %1450 = vdwg.mxu0
      %v1451 = vld [vmem:[%s4] sm:$0xff]
      %v1452 = vld [vmem:[%s4 + $0x8] sm:$0xff]
      %v1453 = vld [vmem:[%s4 + $0x10] sm:$0xff]
      %v1454 = vld [vmem:[%s4 + $0x18] sm:$0xff]
      %v1455 = vld [vmem:[%s4 + $0x20] sm:$0xff]
      %v1456 = vld [vmem:[%s4 + $0x28] sm:$0xff]
      %v1457 = vld [vmem:[%s4 + $0x30] sm:$0xff]
      %v1459 = vsel %vm551, %v1418, 0
      %v1462 = vsel %vm551, %v1423, 0
      %v1465 = vsel %vm551, %v1428, 0
      %v1468 = vsel %vm551, %v1433, 0
      %v1471 = vsel %vm551, %v1438, 0
      %v1474 = vsel %vm551, %v1443, 0
      %v1477 = vsel %vm551, %v1448, 0
      %1479 = vmatprep.subr.mxu0 0.0
      %1480 = vmatpush1.msra.mxu0 %v1451
      %1481 = vmatprep.subr.mxu0 0.0
      %1482 = vmatpush1.msra.mxu0 %v1452
      %1483 = vmatprep.subr.mxu0 0.0
      %1484 = vmatpush1.msra.mxu0 %v1453
      %1485 = vmatprep.subr.mxu0 0.0
      %1486 = vmatpush1.msra.mxu0 %v1454
      %1487 = vmatprep.subr.mxu0 0.0
      %1488 = vmatpush1.msra.mxu0 %v1455
      %1489 = vmatprep.subr.mxu0 0.0
      %1490 = vmatpush1.msra.mxu0 %v1456
      %1491 = vmatprep.subr.mxu0 0.0
      %1492 = vmatpush1.msra.mxu0 %v1457
      %1493 = vmatprep.subr.mxu0 0.0
      %1494 = vmatpush1.msra.mxu0 0.0
      %1495 = vmatprep.subr.mxu0 0.0
      %1496 = vmatpush1.msra.mxu0 0.0
      %1497 = vmatprep.subr.mxu0 0.0
      %1498 = vmatpush1.msra.mxu0 0.0
      %1499 = vmatprep.subr.mxu0 0.0
      %1500 = vmatpush1.msra.mxu0 0.0
      %1501 = vmatprep.subr.mxu0 0.0
      %1502 = vmatpush1.msra.mxu0 0.0
      %1503 = vmatprep.subr.mxu0 0.0
      %1504 = vmatpush1.msra.mxu0 0.0
      %1505 = vmatprep.subr.mxu0 0.0
      %1506 = vmatpush1.msra.mxu0 0.0
      %1507 = vmatprep.subr.mxu0 0.0
      %1508 = vmatpush1.msra.mxu0 0.0
      %1509 = vmatprep.subr.mxu0 0.0
      %1510 = vmatpush1.msra.mxu0 0.0
      %1511 = vmatprep.subr.mxu0 0.0
      %1512 = vmatpush1.msra.mxu0 0.0
      %1513 = vmatprep.subr.mxu0 0.0
      %1514 = vmatpush1.msra.mxu0 0.0
      %1515 = vmatprep.subr.mxu0 0.0
      %1516 = vmatpush1.msra.mxu0 0.0
      %1517 = vmatprep.subr.mxu0 0.0
      %1518 = vmatpush1.msra.mxu0 0.0
      %1519 = vmatprep.subr.mxu0 0.0
      %1520 = vmatpush1.msra.mxu0 0.0
      %1521 = vmatprep.subr.mxu0 0.0
      %1522 = vmatpush1.msra.mxu0 0.0
      %1523 = vmatprep.subr.mxu0 0.0
      %1524 = vmatpush1.msra.mxu0 0.0
      %1525 = vmatprep.subr.mxu0 0.0
      %1526 = vmatpush1.msra.mxu0 0.0
      %1527 = vmatprep.subr.mxu0 0.0
      %1528 = vmatpush1.msra.mxu0 0.0
      %1529 = vmatprep.subr.mxu0 0.0
      %1530 = vmatpush1.msra.mxu0 0.0
      %1531 = vmatprep.subr.mxu0 0.0
      %1532 = vmatpush1.msra.mxu0 0.0
      %1533 = vmatprep.subr.mxu0 0.0
      %1534 = vmatpush1.msra.mxu0 0.0
      %1535 = vmatprep.subr.mxu0 0.0
      %1536 = vmatpush1.msra.mxu0 0.0
      %1537 = vmatprep.subr.mxu0 0.0
      %1538 = vmatpush1.msra.mxu0 0.0
      %1539 = vmatprep.subr.mxu0 0.0
      %1540 = vmatpush1.msra.mxu0 0.0
      %1541 = vmatprep.subr.mxu0 0.0
      %1542 = vmatpush1.msra.mxu0 0.0
      %1543 = vmatprep.mubr.f32.mxu0 0.0
      %1544 = vmatmul.mubr.f32.gmra.mrb[0].mxu0 %v1459
      %v1545 = vpop.f32.mrb[0].mxu0
      %v1546 = vadd.f32 0.0, %v1545
      %v1547 = vpop.f32.mrb[0].mxu0
      %1548 = vmatprep.mubr.f32.mxu0 0.0
      %1549 = vmatmul.mubr.f32.gmra.mrb[0].mxu0 %v1462
      %v1550 = vpop.f32.mrb[0].mxu0
      %v1551 = vadd.f32 0.0, %v1550
      %v1552 = vpop.f32.mrb[0].mxu0
      %1553 = vmatprep.mubr.f32.mxu0 0.0
      %1554 = vmatmul.mubr.f32.gmra.mrb[0].mxu0 %v1465
      %v1555 = vpop.f32.mrb[0].mxu0
      %v1556 = vadd.f32 0.0, %v1555
      %v1557 = vpop.f32.mrb[0].mxu0
      %1558 = vmatprep.mubr.f32.mxu0 0.0
      %1559 = vmatmul.mubr.f32.gmra.mrb[0].mxu0 %v1468
      %v1560 = vpop.f32.mrb[0].mxu0
      %v1561 = vadd.f32 0.0, %v1560
      %v1562 = vpop.f32.mrb[0].mxu0
      %1563 = vmatprep.mubr.f32.mxu0 0.0
      %1564 = vmatmul.mubr.f32.gmra.mrb[0].mxu0 %v1471
      %v1565 = vpop.f32.mrb[0].mxu0
      %v1566 = vadd.f32 0.0, %v1565
      %v1567 = vpop.f32.mrb[0].mxu0
      %1568 = vmatprep.mubr.f32.mxu0 0.0
      %1569 = vmatmul.mubr.f32.gmra.mrb[0].mxu0 %v1474
      %v1570 = vpop.f32.mrb[0].mxu0
      %v1571 = vadd.f32 0.0, %v1570
      %v1572 = vpop.f32.mrb[0].mxu0
      %1573 = vmatprep.mubr.f32.mxu0 0.0
      %1574 = vmatmul.mubr.f32.gmra.mrb[0].mxu0 %v1477
      %v1575 = vpop.f32.mrb[0].mxu0
      %v1576 = vadd.f32 0.0, %v1575
      %v1577 = vpop.f32.mrb[0].mxu0
      %1578 = vdwg.mxu0
      %1580 = vset.pattern.permute.xlu0 0
      %1581 = vperm.xlu0 %1580, %v1194
      %v1582 = vpop.permute.xlu0 %1581
      %1585 = vset.pattern.permute.xlu0 0
      %1586 = vperm.xlu0 %1585, %v1195
      %v1587 = vpop.permute.xlu0 %1586
      %1590 = vset.pattern.permute.xlu0 0
      %1591 = vperm.xlu0 %1590, %v1196
      %v1592 = vpop.permute.xlu0 %1591
      %1595 = vset.pattern.permute.xlu0 0
      %1596 = vperm.xlu0 %1595, %v1197
      %v1597 = vpop.permute.xlu0 %1596
      %1600 = vset.pattern.permute.xlu0 0
      %1601 = vperm.xlu0 %1600, %v1198
      %v1602 = vpop.permute.xlu0 %1601
      %1605 = vset.pattern.permute.xlu0 0
      %1606 = vperm.xlu0 %1605, %v1199
      %v1607 = vpop.permute.xlu0 %1606
      %1610 = vset.pattern.permute.xlu0 0
      %1611 = vperm.xlu0 %1610, %v1200
      %v1612 = vpop.permute.xlu0 %1611
      %v1614 = vadd.f32 %v1582, %v1546
      %v1615 = vadd.f32 %v1587, %v1551
      %v1616 = vadd.f32 %v1592, %v1556
      %v1617 = vadd.f32 %v1597, %v1561
      %v1618 = vadd.f32 %v1602, %v1566
      %v1619 = vadd.f32 %v1607, %v1571
      %v1620 = vadd.f32 %v1612, %v1576
      %s1621 = scalar_lea.vmem %s3, 224
      %v1622 = vld [vmem:[%s1621] sm:$0xff]
      %v1623 = vld [vmem:[%s1621 + $0x8] sm:$0xff]
      %v1624 = vld [vmem:[%s1621 + $0x10] sm:$0xff]
      %v1625 = vld [vmem:[%s1621 + $0x18] sm:$0xff]
      %v1626 = vld [vmem:[%s1621 + $0x20] sm:$0xff]
      %v1627 = vld [vmem:[%s1621 + $0x28] sm:$0xff]
      %v1628 = vld [vmem:[%s1621 + $0x30] sm:$0xff]
      %v1629 = vld [vmem:[%s1621 + $0x38] sm:$0xff]
      %v1630 = vld [vmem:[%s1621 + $0x40] sm:$0xff]
      %v1631 = vld [vmem:[%s1621 + $0x48] sm:$0xff]
      %v1632 = vld [vmem:[%s1621 + $0x50] sm:$0xff]
      %v1633 = vld [vmem:[%s1621 + $0x58] sm:$0xff]
      %v1634 = vld [vmem:[%s1621 + $0x60] sm:$0xff]
      %v1635 = vld [vmem:[%s1621 + $0x68] sm:$0xff]
      %v1636 = vld [vmem:[%s1621 + $0x70] sm:$0xff]
      %v1637 = vld [vmem:[%s1621 + $0x78] sm:$0xff]
      %v1638 = vld [vmem:[%s1621 + $0x80] sm:$0xff]
      %v1639 = vld [vmem:[%s1621 + $0x88] sm:$0xff]
      %v1640 = vld [vmem:[%s1621 + $0x90] sm:$0xff]
      %v1641 = vld [vmem:[%s1621 + $0x98] sm:$0xff]
      %v1642 = vld [vmem:[%s1621 + $0xa0] sm:$0xff]
      %v1643 = vld [vmem:[%s1621 + $0xa8] sm:$0xff]
      %v1644 = vld [vmem:[%s1621 + $0xb0] sm:$0xff]
      %v1645 = vld [vmem:[%s1621 + $0xb8] sm:$0xff]
      %v1646 = vld [vmem:[%s1621 + $0xc0] sm:$0xff]
      %v1647 = vld [vmem:[%s1621 + $0xc8] sm:$0xff]
      %v1648 = vld [vmem:[%s1621 + $0xd0] sm:$0xff]
      %v1649 = vld [vmem:[%s1621 + $0xd8] sm:$0xff]
      %v1651 = vsel %vm1229, %v1625, 0
      %v1654 = vsel %vm1229, %v1629, 0
      %v1657 = vsel %vm1229, %v1633, 0
      %v1660 = vsel %vm1229, %v1637, 0
      %v1663 = vsel %vm1229, %v1641, 0
      %v1666 = vsel %vm1229, %v1645, 0
      %v1669 = vsel %vm1229, %v1649, 0
      %1671 = vmatprep.subr.mxu0 0.0
      %1672 = vmatpush1.msra.mxu0 %v1138
      %1673 = vmatprep.subr.mxu0 0.0
      %1674 = vmatpush1.msra.mxu0 %v1139
      %1675 = vmatprep.subr.mxu0 0.0
      %1676 = vmatpush1.msra.mxu0 %v1140
      %1677 = vmatprep.subr.mxu0 0.0
      %1678 = vmatpush1.msra.mxu0 %v1141
      %1679 = vmatprep.subr.mxu0 0.0
      %1680 = vmatpush1.msra.mxu0 %v1142
      %1681 = vmatprep.subr.mxu0 0.0
      %1682 = vmatpush1.msra.mxu0 %v1143
      %1683 = vmatprep.subr.mxu0 0.0
      %1684 = vmatpush1.msra.mxu0 %v1144
      %1685 = vmatprep.subr.mxu0 0.0
      %1686 = vmatpush1.msra.mxu0 %v1145
      %1687 = vmatprep.subr.mxu0 0.0
      %1688 = vmatpush1.msra.mxu0 %v1146
      %1689 = vmatprep.subr.mxu0 0.0
      %1690 = vmatpush1.msra.mxu0 %v1147
      %1691 = vmatprep.subr.mxu0 0.0
      %1692 = vmatpush1.msra.mxu0 %v1148
      %1693 = vmatprep.subr.mxu0 0.0
      %1694 = vmatpush1.msra.mxu0 %v1149
      %1695 = vmatprep.subr.mxu0 0.0
      %1696 = vmatpush1.msra.mxu0 %v1150
      %1697 = vmatprep.subr.mxu0 0.0
      %1698 = vmatpush1.msra.mxu0 %v1151
      %1699 = vmatprep.subr.mxu0 0.0
      %1700 = vmatpush1.msra.mxu0 %v1152
      %1701 = vmatprep.subr.mxu0 0.0
      %1702 = vmatpush1.msra.mxu0 %v1153
      %1703 = vmatprep.subr.mxu0 0.0
      %1704 = vmatpush1.msra.mxu0 %v1154
      %1705 = vmatprep.subr.mxu0 0.0
      %1706 = vmatpush1.msra.mxu0 %v1155
      %1707 = vmatprep.subr.mxu0 0.0
      %1708 = vmatpush1.msra.mxu0 %v1156
      %1709 = vmatprep.subr.mxu0 0.0
      %1710 = vmatpush1.msra.mxu0 %v1157
      %1711 = vmatprep.subr.mxu0 0.0
      %1712 = vmatpush1.msra.mxu0 %v1158
      %1713 = vmatprep.subr.mxu0 0.0
      %1714 = vmatpush1.msra.mxu0 %v1159
      %1715 = vmatprep.subr.mxu0 0.0
      %1716 = vmatpush1.msra.mxu0 %v1160
      %1717 = vmatprep.subr.mxu0 0.0
      %1718 = vmatpush1.msra.mxu0 %v1161
      %1719 = vmatprep.subr.mxu0 0.0
      %1720 = vmatpush1.msra.mxu0 %v1162
      %1721 = vmatprep.subr.mxu0 0.0
      %1722 = vmatpush1.msra.mxu0 %v1163
      %1723 = vmatprep.subr.mxu0 0.0
      %1724 = vmatpush1.msra.mxu0 %v1164
      %1725 = vmatprep.subr.mxu0 0.0
      %1726 = vmatpush1.msra.mxu0 %v1165
      %1727 = vmatprep.subr.mxu0 0.0
      %1728 = vmatpush1.msra.mxu0 %v1166
      %1729 = vmatprep.subr.mxu0 0.0
      %1730 = vmatpush1.msra.mxu0 %v1167
      %1731 = vmatprep.subr.mxu0 0.0
      %1732 = vmatpush1.msra.mxu0 %v1168
      %1733 = vmatprep.subr.mxu0 0.0
      %1734 = vmatpush1.msra.mxu0 %v1169
      %1735 = vmatprep.mubr.f32.mxu0 %v1623
      %1736 = vmatmul.mubr.f32.gmra.mrb[0].mxu0 %v1622
      %v1737 = vpop.f32.mrb[0].mxu0
      %v1738 = vadd.f32 0.0, %v1737
      %v1739 = vpop.f32.mrb[0].mxu0
      %1740 = vmatprep.mubr.f32.mxu0 %v1627
      %1741 = vmatmul.mubr.f32.gmra.mrb[0].mxu0 %v1626
      %v1742 = vpop.f32.mrb[0].mxu0
      %v1743 = vadd.f32 0.0, %v1742
      %v1744 = vpop.f32.mrb[0].mxu0
      %1745 = vmatprep.mubr.f32.mxu0 %v1631
      %1746 = vmatmul.mubr.f32.gmra.mrb[0].mxu0 %v1630
      %v1747 = vpop.f32.mrb[0].mxu0
      %v1748 = vadd.f32 0.0, %v1747
      %v1749 = vpop.f32.mrb[0].mxu0
      %1750 = vmatprep.mubr.f32.mxu0 %v1635
      %1751 = vmatmul.mubr.f32.gmra.mrb[0].mxu0 %v1634
      %v1752 = vpop.f32.mrb[0].mxu0
      %v1753 = vadd.f32 0.0, %v1752
      %v1754 = vpop.f32.mrb[0].mxu0
      %1755 = vmatprep.mubr.f32.mxu0 %v1639
      %1756 = vmatmul.mubr.f32.gmra.mrb[0].mxu0 %v1638
      %v1757 = vpop.f32.mrb[0].mxu0
      %v1758 = vadd.f32 0.0, %v1757
      %v1759 = vpop.f32.mrb[0].mxu0
      %1760 = vmatprep.mubr.f32.mxu0 %v1643
      %1761 = vmatmul.mubr.f32.gmra.mrb[0].mxu0 %v1642
      %v1762 = vpop.f32.mrb[0].mxu0
      %v1763 = vadd.f32 0.0, %v1762
      %v1764 = vpop.f32.mrb[0].mxu0
      %1765 = vmatprep.mubr.f32.mxu0 %v1647
      %1766 = vmatmul.mubr.f32.gmra.mrb[0].mxu0 %v1646
      %v1767 = vpop.f32.mrb[0].mxu0
      %v1768 = vadd.f32 0.0, %v1767
      %v1769 = vpop.f32.mrb[0].mxu0
      %1770 = vdwg.mxu0
      %1771 = vmatprep.subr.mxu0 0.0
      %1772 = vmatpush1.msra.mxu0 %v1170
      %1773 = vmatprep.subr.mxu0 0.0
      %1774 = vmatpush1.msra.mxu0 %v1171
      %1775 = vmatprep.subr.mxu0 0.0
      %1776 = vmatpush1.msra.mxu0 %v1172
      %1777 = vmatprep.subr.mxu0 0.0
      %1778 = vmatpush1.msra.mxu0 %v1173
      %1779 = vmatprep.subr.mxu0 0.0
      %1780 = vmatpush1.msra.mxu0 %v1174
      %1781 = vmatprep.subr.mxu0 0.0
      %1782 = vmatpush1.msra.mxu0 %v1175
      %1783 = vmatprep.subr.mxu0 0.0
      %1784 = vmatpush1.msra.mxu0 %v1176
      %1785 = vmatprep.subr.mxu0 0.0
      %1786 = vmatpush1.msra.mxu0 %v1177
      %1787 = vmatprep.subr.mxu0 0.0
      %1788 = vmatpush1.msra.mxu0 %v1178
      %1789 = vmatprep.subr.mxu0 0.0
      %1790 = vmatpush1.msra.mxu0 %v1179
      %1791 = vmatprep.subr.mxu0 0.0
      %1792 = vmatpush1.msra.mxu0 %v1180
      %1793 = vmatprep.subr.mxu0 0.0
      %1794 = vmatpush1.msra.mxu0 %v1181
      %1795 = vmatprep.subr.mxu0 0.0
      %1796 = vmatpush1.msra.mxu0 %v1182
      %1797 = vmatprep.subr.mxu0 0.0
      %1798 = vmatpush1.msra.mxu0 %v1183
      %1799 = vmatprep.subr.mxu0 0.0
      %1800 = vmatpush1.msra.mxu0 %v1184
      %1801 = vmatprep.subr.mxu0 0.0
      %1802 = vmatpush1.msra.mxu0 %v1185
      %1803 = vmatprep.subr.mxu0 0.0
      %1804 = vmatpush1.msra.mxu0 %v1186
      %1805 = vmatprep.subr.mxu0 0.0
      %1806 = vmatpush1.msra.mxu0 %v1187
      %1807 = vmatprep.subr.mxu0 0.0
      %1808 = vmatpush1.msra.mxu0 %v1188
      %1809 = vmatprep.subr.mxu0 0.0
      %1810 = vmatpush1.msra.mxu0 %v1189
      %1811 = vmatprep.subr.mxu0 0.0
      %1812 = vmatpush1.msra.mxu0 %v1190
      %1813 = vmatprep.subr.mxu0 0.0
      %1814 = vmatpush1.msra.mxu0 %v1191
      %1815 = vmatprep.subr.mxu0 0.0
      %1816 = vmatpush1.msra.mxu0 %v1192
      %1817 = vmatprep.subr.mxu0 0.0
      %1818 = vmatpush1.msra.mxu0 %v1193
      %1819 = vmatprep.subr.mxu0 0.0
      %1820 = vmatpush1.msra.mxu0 0.0
      %1821 = vmatprep.subr.mxu0 0.0
      %1822 = vmatpush1.msra.mxu0 0.0
      %1823 = vmatprep.subr.mxu0 0.0
      %1824 = vmatpush1.msra.mxu0 0.0
      %1825 = vmatprep.subr.mxu0 0.0
      %1826 = vmatpush1.msra.mxu0 0.0
      %1827 = vmatprep.subr.mxu0 0.0
      %1828 = vmatpush1.msra.mxu0 0.0
      %1829 = vmatprep.subr.mxu0 0.0
      %1830 = vmatpush1.msra.mxu0 0.0
      %1831 = vmatprep.subr.mxu0 0.0
      %1832 = vmatpush1.msra.mxu0 0.0
      %1833 = vmatprep.subr.mxu0 0.0
      %1834 = vmatpush1.msra.mxu0 0.0
      %1835 = vmatprep.mubr.f32.mxu0 %v1651
      %1836 = vmatmul.mubr.f32.gmra.mrb[0].mxu0 %v1624
      %v1837 = vpop.f32.mrb[0].mxu0
      %v1838 = vadd.f32 %v1738, %v1837
      %v1839 = vpop.f32.mrb[0].mxu0
      %1840 = vmatprep.mubr.f32.mxu0 %v1654
      %1841 = vmatmul.mubr.f32.gmra.mrb[0].mxu0 %v1628
      %v1842 = vpop.f32.mrb[0].mxu0
      %v1843 = vadd.f32 %v1743, %v1842
      %v1844 = vpop.f32.mrb[0].mxu0
      %1845 = vmatprep.mubr.f32.mxu0 %v1657
      %1846 = vmatmul.mubr.f32.gmra.mrb[0].mxu0 %v1632
      %v1847 = vpop.f32.mrb[0].mxu0
      %v1848 = vadd.f32 %v1748, %v1847
      %v1849 = vpop.f32.mrb[0].mxu0
      %1850 = vmatprep.mubr.f32.mxu0 %v1660
      %1851 = vmatmul.mubr.f32.gmra.mrb[0].mxu0 %v1636
      %v1852 = vpop.f32.mrb[0].mxu0
      %v1853 = vadd.f32 %v1753, %v1852
      %v1854 = vpop.f32.mrb[0].mxu0
      %1855 = vmatprep.mubr.f32.mxu0 %v1663
      %1856 = vmatmul.mubr.f32.gmra.mrb[0].mxu0 %v1640
      %v1857 = vpop.f32.mrb[0].mxu0
      %v1858 = vadd.f32 %v1758, %v1857
      %v1859 = vpop.f32.mrb[0].mxu0
      %1860 = vmatprep.mubr.f32.mxu0 %v1666
      %1861 = vmatmul.mubr.f32.gmra.mrb[0].mxu0 %v1644
      %v1862 = vpop.f32.mrb[0].mxu0
      %v1863 = vadd.f32 %v1763, %v1862
      %v1864 = vpop.f32.mrb[0].mxu0
      %1865 = vmatprep.mubr.f32.mxu0 %v1669
      %1866 = vmatmul.mubr.f32.gmra.mrb[0].mxu0 %v1648
      %v1867 = vpop.f32.mrb[0].mxu0
      %v1868 = vadd.f32 %v1768, %v1867
      %v1869 = vpop.f32.mrb[0].mxu0
      %1870 = vdwg.mxu0
      %s1871 = scalar_lea.vmem %s4, 56
      %v1872 = vld [vmem:[%s1871] sm:$0xff]
      %v1873 = vld [vmem:[%s1871 + $0x8] sm:$0xff]
      %v1874 = vld [vmem:[%s1871 + $0x10] sm:$0xff]
      %v1875 = vld [vmem:[%s1871 + $0x18] sm:$0xff]
      %v1876 = vld [vmem:[%s1871 + $0x20] sm:$0xff]
      %v1877 = vld [vmem:[%s1871 + $0x28] sm:$0xff]
      %v1878 = vld [vmem:[%s1871 + $0x30] sm:$0xff]
      %v1880 = vsel %vm551, %v1838, 0
      %v1883 = vsel %vm551, %v1843, 0
      %v1886 = vsel %vm551, %v1848, 0
      %v1889 = vsel %vm551, %v1853, 0
      %v1892 = vsel %vm551, %v1858, 0
      %v1895 = vsel %vm551, %v1863, 0
      %v1898 = vsel %vm551, %v1868, 0
      %1900 = vmatprep.subr.mxu0 0.0
      %1901 = vmatpush1.msra.mxu0 %v1872
      %1902 = vmatprep.subr.mxu0 0.0
      %1903 = vmatpush1.msra.mxu0 %v1873
      %1904 = vmatprep.subr.mxu0 0.0
      %1905 = vmatpush1.msra.mxu0 %v1874
      %1906 = vmatprep.subr.mxu0 0.0
      %1907 = vmatpush1.msra.mxu0 %v1875
      %1908 = vmatprep.subr.mxu0 0.0
      %1909 = vmatpush1.msra.mxu0 %v1876
      %1910 = vmatprep.subr.mxu0 0.0
      %1911 = vmatpush1.msra.mxu0 %v1877
      %1912 = vmatprep.subr.mxu0 0.0
      %1913 = vmatpush1.msra.mxu0 %v1878
      %1914 = vmatprep.subr.mxu0 0.0
      %1915 = vmatpush1.msra.mxu0 0.0
      %1916 = vmatprep.subr.mxu0 0.0
      %1917 = vmatpush1.msra.mxu0 0.0
      %1918 = vmatprep.subr.mxu0 0.0
      %1919 = vmatpush1.msra.mxu0 0.0
      %1920 = vmatprep.subr.mxu0 0.0
      %1921 = vmatpush1.msra.mxu0 0.0
      %1922 = vmatprep.subr.mxu0 0.0
      %1923 = vmatpush1.msra.mxu0 0.0
      %1924 = vmatprep.subr.mxu0 0.0
      %1925 = vmatpush1.msra.mxu0 0.0
      %1926 = vmatprep.subr.mxu0 0.0
      %1927 = vmatpush1.msra.mxu0 0.0
      %1928 = vmatprep.subr.mxu0 0.0
      %1929 = vmatpush1.msra.mxu0 0.0
      %1930 = vmatprep.subr.mxu0 0.0
      %1931 = vmatpush1.msra.mxu0 0.0
      %1932 = vmatprep.subr.mxu0 0.0
      %1933 = vmatpush1.msra.mxu0 0.0
      %1934 = vmatprep.subr.mxu0 0.0
      %1935 = vmatpush1.msra.mxu0 0.0
      %1936 = vmatprep.subr.mxu0 0.0
      %1937 = vmatpush1.msra.mxu0 0.0
      %1938 = vmatprep.subr.mxu0 0.0
      %1939 = vmatpush1.msra.mxu0 0.0
      %1940 = vmatprep.subr.mxu0 0.0
      %1941 = vmatpush1.msra.mxu0 0.0
      %1942 = vmatprep.subr.mxu0 0.0
      %1943 = vmatpush1.msra.mxu0 0.0
      %1944 = vmatprep.subr.mxu0 0.0
      %1945 = vmatpush1.msra.mxu0 0.0
      %1946 = vmatprep.subr.mxu0 0.0
      %1947 = vmatpush1.msra.mxu0 0.0
      %1948 = vmatprep.subr.mxu0 0.0
      %1949 = vmatpush1.msra.mxu0 0.0
      %1950 = vmatprep.subr.mxu0 0.0
      %1951 = vmatpush1.msra.mxu0 0.0
      %1952 = vmatprep.subr.mxu0 0.0
      %1953 = vmatpush1.msra.mxu0 0.0
      %1954 = vmatprep.subr.mxu0 0.0
      %1955 = vmatpush1.msra.mxu0 0.0
      %1956 = vmatprep.subr.mxu0 0.0
      %1957 = vmatpush1.msra.mxu0 0.0
      %1958 = vmatprep.subr.mxu0 0.0
      %1959 = vmatpush1.msra.mxu0 0.0
      %1960 = vmatprep.subr.mxu0 0.0
      %1961 = vmatpush1.msra.mxu0 0.0
      %1962 = vmatprep.subr.mxu0 0.0
      %1963 = vmatpush1.msra.mxu0 0.0
      %1964 = vmatprep.mubr.f32.mxu0 0.0
      %1965 = vmatmul.mubr.f32.gmra.mrb[0].mxu0 %v1880
      %v1966 = vpop.f32.mrb[0].mxu0
      %v1967 = vadd.f32 0.0, %v1966
      %v1968 = vpop.f32.mrb[0].mxu0
      %1969 = vmatprep.mubr.f32.mxu0 0.0
      %1970 = vmatmul.mubr.f32.gmra.mrb[0].mxu0 %v1883
      %v1971 = vpop.f32.mrb[0].mxu0
      %v1972 = vadd.f32 0.0, %v1971
      %v1973 = vpop.f32.mrb[0].mxu0
      %1974 = vmatprep.mubr.f32.mxu0 0.0
      %1975 = vmatmul.mubr.f32.gmra.mrb[0].mxu0 %v1886
      %v1976 = vpop.f32.mrb[0].mxu0
      %v1977 = vadd.f32 0.0, %v1976
      %v1978 = vpop.f32.mrb[0].mxu0
      %1979 = vmatprep.mubr.f32.mxu0 0.0
      %1980 = vmatmul.mubr.f32.gmra.mrb[0].mxu0 %v1889
      %v1981 = vpop.f32.mrb[0].mxu0
      %v1982 = vadd.f32 0.0, %v1981
      %v1983 = vpop.f32.mrb[0].mxu0
      %1984 = vmatprep.mubr.f32.mxu0 0.0
      %1985 = vmatmul.mubr.f32.gmra.mrb[0].mxu0 %v1892
      %v1986 = vpop.f32.mrb[0].mxu0
      %v1987 = vadd.f32 0.0, %v1986
      %v1988 = vpop.f32.mrb[0].mxu0
      %1989 = vmatprep.mubr.f32.mxu0 0.0
      %1990 = vmatmul.mubr.f32.gmra.mrb[0].mxu0 %v1895
      %v1991 = vpop.f32.mrb[0].mxu0
      %v1992 = vadd.f32 0.0, %v1991
      %v1993 = vpop.f32.mrb[0].mxu0
      %1994 = vmatprep.mubr.f32.mxu0 0.0
      %1995 = vmatmul.mubr.f32.gmra.mrb[0].mxu0 %v1898
      %v1996 = vpop.f32.mrb[0].mxu0
      %v1997 = vadd.f32 0.0, %v1996
      %v1998 = vpop.f32.mrb[0].mxu0
      %1999 = vdwg.mxu0
      %v2000 = vadd.f32 %v1614, %v1967
      %v2001 = vadd.f32 %v1615, %v1972
      %v2002 = vadd.f32 %v1616, %v1977
      %v2003 = vadd.f32 %v1617, %v1982
      %v2004 = vadd.f32 %v1618, %v1987
      %v2005 = vadd.f32 %v1619, %v1992
      %v2006 = vadd.f32 %v1620, %v1997
      %v2007 = vxor.u32 %v2000, 2147483648
      %v2008 = vxor.u32 %v2001, 2147483648
      %v2009 = vxor.u32 %v2002, 2147483648
      %v2010 = vxor.u32 %v2003, 2147483648
      %v2011 = vxor.u32 %v2004, 2147483648
      %v2012 = vxor.u32 %v2005, 2147483648
      %v2013 = vxor.u32 %v2006, 2147483648
      %v2014 = vmul.f32 %v2007, 1.442695
      %v2015 = vpow.pop %v2014
      %v2016 = vmul.f32 %v2008, 1.442695
      %v2017 = vpow.pop %v2016
      %v2018 = vmul.f32 %v2009, 1.442695
      %v2019 = vpow.pop %v2018
      %v2020 = vmul.f32 %v2010, 1.442695
      %v2021 = vpow.pop %v2020
      %v2022 = vmul.f32 %v2011, 1.442695
      %v2023 = vpow.pop %v2022
      %v2024 = vmul.f32 %v2012, 1.442695
      %v2025 = vpow.pop %v2024
      %v2026 = vmul.f32 %v2013, 1.442695
      %v2027 = vpow.pop %v2026
      %v2028 = vadd.f32 %v2015, 1.0
      %v2029 = vadd.f32 %v2017, 1.0
      %v2030 = vadd.f32 %v2019, 1.0
      %v2031 = vadd.f32 %v2021, 1.0
      %v2032 = vadd.f32 %v2023, 1.0
      %v2033 = vadd.f32 %v2025, 1.0
      %v2034 = vadd.f32 %v2027, 1.0
      %v2035 = vrcp.pop %v2028
      %v2036 = vmul.f32 1.0, %v2035
      %v2037 = vrcp.pop %v2029
      %v2038 = vmul.f32 1.0, %v2037
      %v2039 = vrcp.pop %v2030
      %v2040 = vmul.f32 1.0, %v2039
      %v2041 = vrcp.pop %v2031
      %v2042 = vmul.f32 1.0, %v2041
      %v2043 = vrcp.pop %v2032
      %v2044 = vmul.f32 1.0, %v2043
      %v2045 = vrcp.pop %v2033
      %v2046 = vmul.f32 1.0, %v2045
      %v2047 = vrcp.pop %v2034
      %v2048 = vmul.f32 1.0, %v2047
      %v2049 = vmul.f32 %v2000, %v2036
      %v2050 = vmul.f32 %v2001, %v2038
      %v2051 = vmul.f32 %v2002, %v2040
      %v2052 = vmul.f32 %v2003, %v2042
      %v2053 = vmul.f32 %v2004, %v2044
      %v2054 = vmul.f32 %v2005, %v2046
      %v2055 = vmul.f32 %v2006, %v2048
      %v2056 = vld [vmem:[%s8] sm:$0xff]
      %v2057 = vld [vmem:[%s8 + $0x8] sm:$0xff]
      %v2058 = vld [vmem:[%s8 + $0x10] sm:$0xff]
      %v2059 = vld [vmem:[%s8 + $0x18] sm:$0xff]
      %v2060 = vld [vmem:[%s8 + $0x20] sm:$0xff]
      %v2061 = vld [vmem:[%s8 + $0x28] sm:$0xff]
      %v2062 = vld [vmem:[%s8 + $0x30] sm:$0xff]
      %v2063 = vld [vmem:[%s8 + $0x38] sm:$0xff]
      %v2064 = vld [vmem:[%s6] sm:$0xff]
      %v2065 = vld [vmem:[%s6 + $0x8] sm:$0xff]
      %v2066 = vld [vmem:[%s6 + $0x10] sm:$0xff]
      %v2067 = vld [vmem:[%s6 + $0x18] sm:$0xff]
      %v2068 = vld [vmem:[%s6 + $0x20] sm:$0xff]
      %v2069 = vld [vmem:[%s6 + $0x28] sm:$0xff]
      %v2070 = vld [vmem:[%s6 + $0x30] sm:$0xff]
      %v2071 = vld [vmem:[%s6 + $0x38] sm:$0xff]
      %v2073 = vsel %vm551, %v2064, 0
      %v2076 = vsel %vm551, %v2065, 0
      %v2079 = vsel %vm551, %v2066, 0
      %v2082 = vsel %vm551, %v2067, 0
      %v2085 = vsel %vm551, %v2068, 0
      %v2088 = vsel %vm551, %v2069, 0
      %v2091 = vsel %vm551, %v2070, 0
      %v2094 = vsel %vm551, %v2071, 0
      %2096 = vmatprep.subr.mxu0 0.0
      %2097 = vmatpush1.msra.mxu0 %v2049
      %2098 = vmatprep.subr.mxu0 0.0
      %2099 = vmatpush1.msra.mxu0 %v2050
      %2100 = vmatprep.subr.mxu0 0.0
      %2101 = vmatpush1.msra.mxu0 %v2051
      %2102 = vmatprep.subr.mxu0 0.0
      %2103 = vmatpush1.msra.mxu0 %v2052
      %2104 = vmatprep.subr.mxu0 0.0
      %2105 = vmatpush1.msra.mxu0 %v2053
      %2106 = vmatprep.subr.mxu0 0.0
      %2107 = vmatpush1.msra.mxu0 %v2054
      %2108 = vmatprep.subr.mxu0 0.0
      %2109 = vmatpush1.msra.mxu0 %v2055
      %2110 = vmatprep.subr.mxu0 0.0
      %2111 = vmatpush1.msra.mxu0 0.0
      %2112 = vmatprep.subr.mxu0 0.0
      %2113 = vmatpush1.msra.mxu0 0.0
      %2114 = vmatprep.subr.mxu0 0.0
      %2115 = vmatpush1.msra.mxu0 0.0
      %2116 = vmatprep.subr.mxu0 0.0
      %2117 = vmatpush1.msra.mxu0 0.0
      %2118 = vmatprep.subr.mxu0 0.0
      %2119 = vmatpush1.msra.mxu0 0.0
      %2120 = vmatprep.subr.mxu0 0.0
      %2121 = vmatpush1.msra.mxu0 0.0
      %2122 = vmatprep.subr.mxu0 0.0
      %2123 = vmatpush1.msra.mxu0 0.0
      %2124 = vmatprep.subr.mxu0 0.0
      %2125 = vmatpush1.msra.mxu0 0.0
      %2126 = vmatprep.subr.mxu0 0.0
      %2127 = vmatpush1.msra.mxu0 0.0
      %2128 = vmatprep.subr.mxu0 0.0
      %2129 = vmatpush1.msra.mxu0 0.0
      %2130 = vmatprep.subr.mxu0 0.0
      %2131 = vmatpush1.msra.mxu0 0.0
      %2132 = vmatprep.subr.mxu0 0.0
      %2133 = vmatpush1.msra.mxu0 0.0
      %2134 = vmatprep.subr.mxu0 0.0
      %2135 = vmatpush1.msra.mxu0 0.0
      %2136 = vmatprep.subr.mxu0 0.0
      %2137 = vmatpush1.msra.mxu0 0.0
      %2138 = vmatprep.subr.mxu0 0.0
      %2139 = vmatpush1.msra.mxu0 0.0
      %2140 = vmatprep.subr.mxu0 0.0
      %2141 = vmatpush1.msra.mxu0 0.0
      %2142 = vmatprep.subr.mxu0 0.0
      %2143 = vmatpush1.msra.mxu0 0.0
      %2144 = vmatprep.subr.mxu0 0.0
      %2145 = vmatpush1.msra.mxu0 0.0
      %2146 = vmatprep.subr.mxu0 0.0
      %2147 = vmatpush1.msra.mxu0 0.0
      %2148 = vmatprep.subr.mxu0 0.0
      %2149 = vmatpush1.msra.mxu0 0.0
      %2150 = vmatprep.subr.mxu0 0.0
      %2151 = vmatpush1.msra.mxu0 0.0
      %2152 = vmatprep.subr.mxu0 0.0
      %2153 = vmatpush1.msra.mxu0 0.0
      %2154 = vmatprep.subr.mxu0 0.0
      %2155 = vmatpush1.msra.mxu0 0.0
      %2156 = vmatprep.subr.mxu0 0.0
      %2157 = vmatpush1.msra.mxu0 0.0
      %2158 = vmatprep.subr.mxu0 0.0
      %2159 = vmatpush1.msra.mxu0 0.0
      %2160 = vmatprep.mubr.f32.mxu0 0.0
      %2161 = vmatmul.mubr.f32.gmra.mrb[0].mxu0 %v2073
      %v2162 = vpop.f32.mrb[0].mxu0
      %v2163 = vadd.f32 0.0, %v2162
      %v2164 = vpop.f32.mrb[0].mxu0
      %2165 = vmatprep.mubr.f32.mxu0 0.0
      %2166 = vmatmul.mubr.f32.gmra.mrb[0].mxu0 %v2076
      %v2167 = vpop.f32.mrb[0].mxu0
      %v2168 = vadd.f32 0.0, %v2167
      %v2169 = vpop.f32.mrb[0].mxu0
      %2170 = vmatprep.mubr.f32.mxu0 0.0
      %2171 = vmatmul.mubr.f32.gmra.mrb[0].mxu0 %v2079
      %v2172 = vpop.f32.mrb[0].mxu0
      %v2173 = vadd.f32 0.0, %v2172
      %v2174 = vpop.f32.mrb[0].mxu0
      %2175 = vmatprep.mubr.f32.mxu0 0.0
      %2176 = vmatmul.mubr.f32.gmra.mrb[0].mxu0 %v2082
      %v2177 = vpop.f32.mrb[0].mxu0
      %v2178 = vadd.f32 0.0, %v2177
      %v2179 = vpop.f32.mrb[0].mxu0
      %2180 = vmatprep.mubr.f32.mxu0 0.0
      %2181 = vmatmul.mubr.f32.gmra.mrb[0].mxu0 %v2085
      %v2182 = vpop.f32.mrb[0].mxu0
      %v2183 = vadd.f32 0.0, %v2182
      %v2184 = vpop.f32.mrb[0].mxu0
      %2185 = vmatprep.mubr.f32.mxu0 0.0
      %2186 = vmatmul.mubr.f32.gmra.mrb[0].mxu0 %v2088
      %v2187 = vpop.f32.mrb[0].mxu0
      %v2188 = vadd.f32 0.0, %v2187
      %v2189 = vpop.f32.mrb[0].mxu0
      %2190 = vmatprep.mubr.f32.mxu0 0.0
      %2191 = vmatmul.mubr.f32.gmra.mrb[0].mxu0 %v2091
      %v2192 = vpop.f32.mrb[0].mxu0
      %v2193 = vadd.f32 0.0, %v2192
      %v2194 = vpop.f32.mrb[0].mxu0
      %2195 = vmatprep.mubr.f32.mxu0 0.0
      %2196 = vmatmul.mubr.f32.gmra.mrb[0].mxu0 %v2094
      %v2197 = vpop.f32.mrb[0].mxu0
      %v2198 = vadd.f32 0.0, %v2197
      %v2199 = vpop.f32.mrb[0].mxu0
      %2200 = vdwg.mxu0
      %v2201 = vld [vmem:[%s7] sm:$0xff]
      %v2202 = vld [vmem:[%s7 + $0x8] sm:$0x3f]
      %vm2203 = vcmask 113664
      %v2205 = vsel %vm2203, %v2163, 0
      %v2208 = vsel %vm2203, %v2168, 0
      %v2211 = vsel %vm2203, %v2173, 0
      %v2214 = vsel %vm2203, %v2178, 0
      %v2217 = vsel %vm2203, %v2183, 0
      %v2220 = vsel %vm2203, %v2188, 0
      %v2223 = vsel %vm2203, %v2193, 0
      %v2226 = vsel %vm2203, %v2198, 0
      %vm2228 = vcmask 1045504
      %v2230 = vsel %vm2228, %v2202, 0
      %2232 = vmatprep.subr.mxu0 0.0
      %2233 = vmatpush1.msra.mxu0 %v2201
      %2234 = vmatprep.subr.mxu0 0.0
      %2235 = vmatpush1.msra.mxu0 %v2230
      %2236 = vmatprep.subr.mxu0 0.0
      %2237 = vmatpush1.msra.mxu0 0.0
      %2238 = vmatprep.subr.mxu0 0.0
      %2239 = vmatpush1.msra.mxu0 0.0
      %2240 = vmatprep.subr.mxu0 0.0
      %2241 = vmatpush1.msra.mxu0 0.0
      %2242 = vmatprep.subr.mxu0 0.0
      %2243 = vmatpush1.msra.mxu0 0.0
      %2244 = vmatprep.subr.mxu0 0.0
      %2245 = vmatpush1.msra.mxu0 0.0
      %2246 = vmatprep.subr.mxu0 0.0
      %2247 = vmatpush1.msra.mxu0 0.0
      %2248 = vmatprep.subr.mxu0 0.0
      %2249 = vmatpush1.msra.mxu0 0.0
      %2250 = vmatprep.subr.mxu0 0.0
      %2251 = vmatpush1.msra.mxu0 0.0
      %2252 = vmatprep.subr.mxu0 0.0
      %2253 = vmatpush1.msra.mxu0 0.0
      %2254 = vmatprep.subr.mxu0 0.0
      %2255 = vmatpush1.msra.mxu0 0.0
      %2256 = vmatprep.subr.mxu0 0.0
      %2257 = vmatpush1.msra.mxu0 0.0
      %2258 = vmatprep.subr.mxu0 0.0
      %2259 = vmatpush1.msra.mxu0 0.0
      %2260 = vmatprep.subr.mxu0 0.0
      %2261 = vmatpush1.msra.mxu0 0.0
      %2262 = vmatprep.subr.mxu0 0.0
      %2263 = vmatpush1.msra.mxu0 0.0
      %2264 = vmatprep.subr.mxu0 0.0
      %2265 = vmatpush1.msra.mxu0 0.0
      %2266 = vmatprep.subr.mxu0 0.0
      %2267 = vmatpush1.msra.mxu0 0.0
      %2268 = vmatprep.subr.mxu0 0.0
      %2269 = vmatpush1.msra.mxu0 0.0
      %2270 = vmatprep.subr.mxu0 0.0
      %2271 = vmatpush1.msra.mxu0 0.0
      %2272 = vmatprep.subr.mxu0 0.0
      %2273 = vmatpush1.msra.mxu0 0.0
      %2274 = vmatprep.subr.mxu0 0.0
      %2275 = vmatpush1.msra.mxu0 0.0
      %2276 = vmatprep.subr.mxu0 0.0
      %2277 = vmatpush1.msra.mxu0 0.0
      %2278 = vmatprep.subr.mxu0 0.0
      %2279 = vmatpush1.msra.mxu0 0.0
      %2280 = vmatprep.subr.mxu0 0.0
      %2281 = vmatpush1.msra.mxu0 0.0
      %2282 = vmatprep.subr.mxu0 0.0
      %2283 = vmatpush1.msra.mxu0 0.0
      %2284 = vmatprep.subr.mxu0 0.0
      %2285 = vmatpush1.msra.mxu0 0.0
      %2286 = vmatprep.subr.mxu0 0.0
      %2287 = vmatpush1.msra.mxu0 0.0
      %2288 = vmatprep.subr.mxu0 0.0
      %2289 = vmatpush1.msra.mxu0 0.0
      %2290 = vmatprep.subr.mxu0 0.0
      %2291 = vmatpush1.msra.mxu0 0.0
      %2292 = vmatprep.subr.mxu0 0.0
      %2293 = vmatpush1.msra.mxu0 0.0
      %2294 = vmatprep.subr.mxu0 0.0
      %2295 = vmatpush1.msra.mxu0 0.0
      %2296 = vmatprep.mubr.f32.mxu0 0.0
      %2297 = vmatmul.mubr.f32.gmra.mrb[0].mxu0 %v2205
      %v2298 = vpop.f32.mrb[0].mxu0
      %v2299 = vadd.f32 0.0, %v2298
      %v2300 = vpop.f32.mrb[0].mxu0
      %2301 = vmatprep.mubr.f32.mxu0 0.0
      %2302 = vmatmul.mubr.f32.gmra.mrb[0].mxu0 %v2208
      %v2303 = vpop.f32.mrb[0].mxu0
      %v2304 = vadd.f32 0.0, %v2303
      %v2305 = vpop.f32.mrb[0].mxu0
      %2306 = vmatprep.mubr.f32.mxu0 0.0
      %2307 = vmatmul.mubr.f32.gmra.mrb[0].mxu0 %v2211
      %v2308 = vpop.f32.mrb[0].mxu0
      %v2309 = vadd.f32 0.0, %v2308
      %v2310 = vpop.f32.mrb[0].mxu0
      %2311 = vmatprep.mubr.f32.mxu0 0.0
      %2312 = vmatmul.mubr.f32.gmra.mrb[0].mxu0 %v2214
      %v2313 = vpop.f32.mrb[0].mxu0
      %v2314 = vadd.f32 0.0, %v2313
      %v2315 = vpop.f32.mrb[0].mxu0
      %2316 = vmatprep.mubr.f32.mxu0 0.0
      %2317 = vmatmul.mubr.f32.gmra.mrb[0].mxu0 %v2217
      %v2318 = vpop.f32.mrb[0].mxu0
      %v2319 = vadd.f32 0.0, %v2318
      %v2320 = vpop.f32.mrb[0].mxu0
      %2321 = vmatprep.mubr.f32.mxu0 0.0
      %2322 = vmatmul.mubr.f32.gmra.mrb[0].mxu0 %v2220
      %v2323 = vpop.f32.mrb[0].mxu0
      %v2324 = vadd.f32 0.0, %v2323
      %v2325 = vpop.f32.mrb[0].mxu0
      %2326 = vmatprep.mubr.f32.mxu0 0.0
      %2327 = vmatmul.mubr.f32.gmra.mrb[0].mxu0 %v2223
      %v2328 = vpop.f32.mrb[0].mxu0
      %v2329 = vadd.f32 0.0, %v2328
      %v2330 = vpop.f32.mrb[0].mxu0
      %2331 = vmatprep.mubr.f32.mxu0 0.0
      %2332 = vmatmul.mubr.f32.gmra.mrb[0].mxu0 %v2226
      %v2333 = vpop.f32.mrb[0].mxu0
      %v2334 = vadd.f32 0.0, %v2333
      %v2335 = vpop.f32.mrb[0].mxu0
      %2336 = vdwg.mxu0
      %2338 = vset.pattern.permute.xlu0 0
      %2339 = vperm.xlu0 %2338, %v2056
      %v2340 = vpop.permute.xlu0 %2339
      %2343 = vset.pattern.permute.xlu0 0
      %2344 = vperm.xlu0 %2343, %v2057
      %v2345 = vpop.permute.xlu0 %2344
      %2348 = vset.pattern.permute.xlu0 0
      %2349 = vperm.xlu0 %2348, %v2058
      %v2350 = vpop.permute.xlu0 %2349
      %2353 = vset.pattern.permute.xlu0 0
      %2354 = vperm.xlu0 %2353, %v2059
      %v2355 = vpop.permute.xlu0 %2354
      %2358 = vset.pattern.permute.xlu0 0
      %2359 = vperm.xlu0 %2358, %v2060
      %v2360 = vpop.permute.xlu0 %2359
      %2363 = vset.pattern.permute.xlu0 0
      %2364 = vperm.xlu0 %2363, %v2061
      %v2365 = vpop.permute.xlu0 %2364
      %2368 = vset.pattern.permute.xlu0 0
      %2369 = vperm.xlu0 %2368, %v2062
      %v2370 = vpop.permute.xlu0 %2369
      %2373 = vset.pattern.permute.xlu0 0
      %2374 = vperm.xlu0 %2373, %v2063
      %v2375 = vpop.permute.xlu0 %2374
      %v2377 = vadd.f32 %v2340, %v2299
      %v2378 = vadd.f32 %v2345, %v2304
      %v2379 = vadd.f32 %v2350, %v2309
      %v2380 = vadd.f32 %v2355, %v2314
      %v2381 = vadd.f32 %v2360, %v2319
      %v2382 = vadd.f32 %v2365, %v2324
      %v2383 = vadd.f32 %v2370, %v2329
      %v2384 = vadd.f32 %v2375, %v2334
      %s2385 = scalar_lea.vmem %s6, 64
      %v2386 = vld [vmem:[%s2385] sm:$0xff]
      %v2387 = vld [vmem:[%s2385 + $0x8] sm:$0xff]
      %v2388 = vld [vmem:[%s2385 + $0x10] sm:$0xff]
      %v2389 = vld [vmem:[%s2385 + $0x18] sm:$0xff]
      %v2390 = vld [vmem:[%s2385 + $0x20] sm:$0xff]
      %v2391 = vld [vmem:[%s2385 + $0x28] sm:$0xff]
      %v2392 = vld [vmem:[%s2385 + $0x30] sm:$0xff]
      %v2393 = vld [vmem:[%s2385 + $0x38] sm:$0xff]
      %v2395 = vsel %vm551, %v2386, 0
      %v2398 = vsel %vm551, %v2387, 0
      %v2401 = vsel %vm551, %v2388, 0
      %v2404 = vsel %vm551, %v2389, 0
      %v2407 = vsel %vm551, %v2390, 0
      %v2410 = vsel %vm551, %v2391, 0
      %v2413 = vsel %vm551, %v2392, 0
      %v2416 = vsel %vm551, %v2393, 0
      %2418 = vmatprep.subr.mxu0 0.0
      %2419 = vmatpush1.msra.mxu0 %v2049
      %2420 = vmatprep.subr.mxu0 0.0
      %2421 = vmatpush1.msra.mxu0 %v2050
      %2422 = vmatprep.subr.mxu0 0.0
      %2423 = vmatpush1.msra.mxu0 %v2051
      %2424 = vmatprep.subr.mxu0 0.0
      %2425 = vmatpush1.msra.mxu0 %v2052
      %2426 = vmatprep.subr.mxu0 0.0
      %2427 = vmatpush1.msra.mxu0 %v2053
      %2428 = vmatprep.subr.mxu0 0.0
      %2429 = vmatpush1.msra.mxu0 %v2054
      %2430 = vmatprep.subr.mxu0 0.0
      %2431 = vmatpush1.msra.mxu0 %v2055
      %2432 = vmatprep.subr.mxu0 0.0
      %2433 = vmatpush1.msra.mxu0 0.0
      %2434 = vmatprep.subr.mxu0 0.0
      %2435 = vmatpush1.msra.mxu0 0.0
      %2436 = vmatprep.subr.mxu0 0.0
      %2437 = vmatpush1.msra.mxu0 0.0
      %2438 = vmatprep.subr.mxu0 0.0
      %2439 = vmatpush1.msra.mxu0 0.0
      %2440 = vmatprep.subr.mxu0 0.0
      %2441 = vmatpush1.msra.mxu0 0.0
      %2442 = vmatprep.subr.mxu0 0.0
      %2443 = vmatpush1.msra.mxu0 0.0
      %2444 = vmatprep.subr.mxu0 0.0
      %2445 = vmatpush1.msra.mxu0 0.0
      %2446 = vmatprep.subr.mxu0 0.0
      %2447 = vmatpush1.msra.mxu0 0.0
      %2448 = vmatprep.subr.mxu0 0.0
      %2449 = vmatpush1.msra.mxu0 0.0
      %2450 = vmatprep.subr.mxu0 0.0
      %2451 = vmatpush1.msra.mxu0 0.0
      %2452 = vmatprep.subr.mxu0 0.0
      %2453 = vmatpush1.msra.mxu0 0.0
      %2454 = vmatprep.subr.mxu0 0.0
      %2455 = vmatpush1.msra.mxu0 0.0
      %2456 = vmatprep.subr.mxu0 0.0
      %2457 = vmatpush1.msra.mxu0 0.0
      %2458 = vmatprep.subr.mxu0 0.0
      %2459 = vmatpush1.msra.mxu0 0.0
      %2460 = vmatprep.subr.mxu0 0.0
      %2461 = vmatpush1.msra.mxu0 0.0
      %2462 = vmatprep.subr.mxu0 0.0
      %2463 = vmatpush1.msra.mxu0 0.0
      %2464 = vmatprep.subr.mxu0 0.0
      %2465 = vmatpush1.msra.mxu0 0.0
      %2466 = vmatprep.subr.mxu0 0.0
      %2467 = vmatpush1.msra.mxu0 0.0
      %2468 = vmatprep.subr.mxu0 0.0
      %2469 = vmatpush1.msra.mxu0 0.0
      %2470 = vmatprep.subr.mxu0 0.0
      %2471 = vmatpush1.msra.mxu0 0.0
      %2472 = vmatprep.subr.mxu0 0.0
      %2473 = vmatpush1.msra.mxu0 0.0
      %2474 = vmatprep.subr.mxu0 0.0
      %2475 = vmatpush1.msra.mxu0 0.0
      %2476 = vmatprep.subr.mxu0 0.0
      %2477 = vmatpush1.msra.mxu0 0.0
      %2478 = vmatprep.subr.mxu0 0.0
      %2479 = vmatpush1.msra.mxu0 0.0
      %2480 = vmatprep.subr.mxu0 0.0
      %2481 = vmatpush1.msra.mxu0 0.0
      %2482 = vmatprep.mubr.f32.mxu0 0.0
      %2483 = vmatmul.mubr.f32.gmra.mrb[0].mxu0 %v2395
      %v2484 = vpop.f32.mrb[0].mxu0
      %v2485 = vadd.f32 0.0, %v2484
      %v2486 = vpop.f32.mrb[0].mxu0
      %2487 = vmatprep.mubr.f32.mxu0 0.0
      %2488 = vmatmul.mubr.f32.gmra.mrb[0].mxu0 %v2398
      %v2489 = vpop.f32.mrb[0].mxu0
      %v2490 = vadd.f32 0.0, %v2489
      %v2491 = vpop.f32.mrb[0].mxu0
      %2492 = vmatprep.mubr.f32.mxu0 0.0
      %2493 = vmatmul.mubr.f32.gmra.mrb[0].mxu0 %v2401
      %v2494 = vpop.f32.mrb[0].mxu0
      %v2495 = vadd.f32 0.0, %v2494
      %v2496 = vpop.f32.mrb[0].mxu0
      %2497 = vmatprep.mubr.f32.mxu0 0.0
      %2498 = vmatmul.mubr.f32.gmra.mrb[0].mxu0 %v2404
      %v2499 = vpop.f32.mrb[0].mxu0
      %v2500 = vadd.f32 0.0, %v2499
      %v2501 = vpop.f32.mrb[0].mxu0
      %2502 = vmatprep.mubr.f32.mxu0 0.0
      %2503 = vmatmul.mubr.f32.gmra.mrb[0].mxu0 %v2407
      %v2504 = vpop.f32.mrb[0].mxu0
      %v2505 = vadd.f32 0.0, %v2504
      %v2506 = vpop.f32.mrb[0].mxu0
      %2507 = vmatprep.mubr.f32.mxu0 0.0
      %2508 = vmatmul.mubr.f32.gmra.mrb[0].mxu0 %v2410
      %v2509 = vpop.f32.mrb[0].mxu0
      %v2510 = vadd.f32 0.0, %v2509
      %v2511 = vpop.f32.mrb[0].mxu0
      %2512 = vmatprep.mubr.f32.mxu0 0.0
      %2513 = vmatmul.mubr.f32.gmra.mrb[0].mxu0 %v2413
      %v2514 = vpop.f32.mrb[0].mxu0
      %v2515 = vadd.f32 0.0, %v2514
      %v2516 = vpop.f32.mrb[0].mxu0
      %2517 = vmatprep.mubr.f32.mxu0 0.0
      %2518 = vmatmul.mubr.f32.gmra.mrb[0].mxu0 %v2416
      %v2519 = vpop.f32.mrb[0].mxu0
      %v2520 = vadd.f32 0.0, %v2519
      %v2521 = vpop.f32.mrb[0].mxu0
      %2522 = vdwg.mxu0
      %s2523 = scalar_lea.vmem %s7, 16
      %v2524 = vld [vmem:[%s2523] sm:$0xff]
      %v2525 = vld [vmem:[%s2523 + $0x8] sm:$0x3f]
      %v2527 = vsel %vm2203, %v2485, 0
      %v2530 = vsel %vm2203, %v2490, 0
      %v2533 = vsel %vm2203, %v2495, 0
      %v2536 = vsel %vm2203, %v2500, 0
      %v2539 = vsel %vm2203, %v2505, 0
      %v2542 = vsel %vm2203, %v2510, 0
      %v2545 = vsel %vm2203, %v2515, 0
      %v2548 = vsel %vm2203, %v2520, 0
      %v2551 = vsel %vm2228, %v2525, 0
      %2553 = vmatprep.subr.mxu0 0.0
      %2554 = vmatpush1.msra.mxu0 %v2524
      %2555 = vmatprep.subr.mxu0 0.0
      %2556 = vmatpush1.msra.mxu0 %v2551
      %2557 = vmatprep.subr.mxu0 0.0
      %2558 = vmatpush1.msra.mxu0 0.0
      %2559 = vmatprep.subr.mxu0 0.0
      %2560 = vmatpush1.msra.mxu0 0.0
      %2561 = vmatprep.subr.mxu0 0.0
      %2562 = vmatpush1.msra.mxu0 0.0
      %2563 = vmatprep.subr.mxu0 0.0
      %2564 = vmatpush1.msra.mxu0 0.0
      %2565 = vmatprep.subr.mxu0 0.0
      %2566 = vmatpush1.msra.mxu0 0.0
      %2567 = vmatprep.subr.mxu0 0.0
      %2568 = vmatpush1.msra.mxu0 0.0
      %2569 = vmatprep.subr.mxu0 0.0
      %2570 = vmatpush1.msra.mxu0 0.0
      %2571 = vmatprep.subr.mxu0 0.0
      %2572 = vmatpush1.msra.mxu0 0.0
      %2573 = vmatprep.subr.mxu0 0.0
      %2574 = vmatpush1.msra.mxu0 0.0
      %2575 = vmatprep.subr.mxu0 0.0
      %2576 = vmatpush1.msra.mxu0 0.0
      %2577 = vmatprep.subr.mxu0 0.0
      %2578 = vmatpush1.msra.mxu0 0.0
      %2579 = vmatprep.subr.mxu0 0.0
      %2580 = vmatpush1.msra.mxu0 0.0
      %2581 = vmatprep.subr.mxu0 0.0
      %2582 = vmatpush1.msra.mxu0 0.0
      %2583 = vmatprep.subr.mxu0 0.0
      %2584 = vmatpush1.msra.mxu0 0.0
      %2585 = vmatprep.subr.mxu0 0.0
      %2586 = vmatpush1.msra.mxu0 0.0
      %2587 = vmatprep.subr.mxu0 0.0
      %2588 = vmatpush1.msra.mxu0 0.0
      %2589 = vmatprep.subr.mxu0 0.0
      %2590 = vmatpush1.msra.mxu0 0.0
      %2591 = vmatprep.subr.mxu0 0.0
      %2592 = vmatpush1.msra.mxu0 0.0
      %2593 = vmatprep.subr.mxu0 0.0
      %2594 = vmatpush1.msra.mxu0 0.0
      %2595 = vmatprep.subr.mxu0 0.0
      %2596 = vmatpush1.msra.mxu0 0.0
      %2597 = vmatprep.subr.mxu0 0.0
      %2598 = vmatpush1.msra.mxu0 0.0
      %2599 = vmatprep.subr.mxu0 0.0
      %2600 = vmatpush1.msra.mxu0 0.0
      %2601 = vmatprep.subr.mxu0 0.0
      %2602 = vmatpush1.msra.mxu0 0.0
      %2603 = vmatprep.subr.mxu0 0.0
      %2604 = vmatpush1.msra.mxu0 0.0
      %2605 = vmatprep.subr.mxu0 0.0
      %2606 = vmatpush1.msra.mxu0 0.0
      %2607 = vmatprep.subr.mxu0 0.0
      %2608 = vmatpush1.msra.mxu0 0.0
      %2609 = vmatprep.subr.mxu0 0.0
      %2610 = vmatpush1.msra.mxu0 0.0
      %2611 = vmatprep.subr.mxu0 0.0
      %2612 = vmatpush1.msra.mxu0 0.0
      %2613 = vmatprep.subr.mxu0 0.0
      %2614 = vmatpush1.msra.mxu0 0.0
      %2615 = vmatprep.subr.mxu0 0.0
      %2616 = vmatpush1.msra.mxu0 0.0
      %2617 = vmatprep.mubr.f32.mxu0 0.0
      %2618 = vmatmul.mubr.f32.gmra.mrb[0].mxu0 %v2527
      %v2619 = vpop.f32.mrb[0].mxu0
      %v2620 = vadd.f32 0.0, %v2619
      %v2621 = vpop.f32.mrb[0].mxu0
      %2622 = vmatprep.mubr.f32.mxu0 0.0
      %2623 = vmatmul.mubr.f32.gmra.mrb[0].mxu0 %v2530
      %v2624 = vpop.f32.mrb[0].mxu0
      %v2625 = vadd.f32 0.0, %v2624
      %v2626 = vpop.f32.mrb[0].mxu0
      %2627 = vmatprep.mubr.f32.mxu0 0.0
      %2628 = vmatmul.mubr.f32.gmra.mrb[0].mxu0 %v2533
      %v2629 = vpop.f32.mrb[0].mxu0
      %v2630 = vadd.f32 0.0, %v2629
      %v2631 = vpop.f32.mrb[0].mxu0
      %2632 = vmatprep.mubr.f32.mxu0 0.0
      %2633 = vmatmul.mubr.f32.gmra.mrb[0].mxu0 %v2536
      %v2634 = vpop.f32.mrb[0].mxu0
      %v2635 = vadd.f32 0.0, %v2634
      %v2636 = vpop.f32.mrb[0].mxu0
      %2637 = vmatprep.mubr.f32.mxu0 0.0
      %2638 = vmatmul.mubr.f32.gmra.mrb[0].mxu0 %v2539
      %v2639 = vpop.f32.mrb[0].mxu0
      %v2640 = vadd.f32 0.0, %v2639
      %v2641 = vpop.f32.mrb[0].mxu0
      %2642 = vmatprep.mubr.f32.mxu0 0.0
      %2643 = vmatmul.mubr.f32.gmra.mrb[0].mxu0 %v2542
      %v2644 = vpop.f32.mrb[0].mxu0
      %v2645 = vadd.f32 0.0, %v2644
      %v2646 = vpop.f32.mrb[0].mxu0
      %2647 = vmatprep.mubr.f32.mxu0 0.0
      %2648 = vmatmul.mubr.f32.gmra.mrb[0].mxu0 %v2545
      %v2649 = vpop.f32.mrb[0].mxu0
      %v2650 = vadd.f32 0.0, %v2649
      %v2651 = vpop.f32.mrb[0].mxu0
      %2652 = vmatprep.mubr.f32.mxu0 0.0
      %2653 = vmatmul.mubr.f32.gmra.mrb[0].mxu0 %v2548
      %v2654 = vpop.f32.mrb[0].mxu0
      %v2655 = vadd.f32 0.0, %v2654
      %v2656 = vpop.f32.mrb[0].mxu0
      %2657 = vdwg.mxu0
      %v2658 = vadd.f32 %v2377, %v2620
      %v2659 = vadd.f32 %v2378, %v2625
      %v2660 = vadd.f32 %v2379, %v2630
      %v2661 = vadd.f32 %v2380, %v2635
      %v2662 = vadd.f32 %v2381, %v2640
      %v2663 = vadd.f32 %v2382, %v2645
      %v2664 = vadd.f32 %v2383, %v2650
      %v2665 = vadd.f32 %v2384, %v2655
      %v2666 = vxor.u32 %v2658, 2147483648
      %v2667 = vxor.u32 %v2659, 2147483648
      %v2668 = vxor.u32 %v2660, 2147483648
      %v2669 = vxor.u32 %v2661, 2147483648
      %v2670 = vxor.u32 %v2662, 2147483648
      %v2671 = vxor.u32 %v2663, 2147483648
      %v2672 = vxor.u32 %v2664, 2147483648
      %v2673 = vxor.u32 %v2665, 2147483648
      %v2674 = vmul.f32 %v2666, 1.442695
      %v2675 = vpow.pop %v2674
      %v2676 = vmul.f32 %v2667, 1.442695
      %v2677 = vpow.pop %v2676
      %v2678 = vmul.f32 %v2668, 1.442695
      %v2679 = vpow.pop %v2678
      %v2680 = vmul.f32 %v2669, 1.442695
      %v2681 = vpow.pop %v2680
      %v2682 = vmul.f32 %v2670, 1.442695
      %v2683 = vpow.pop %v2682
      %v2684 = vmul.f32 %v2671, 1.442695
      %v2685 = vpow.pop %v2684
      %v2686 = vmul.f32 %v2672, 1.442695
      %v2687 = vpow.pop %v2686
      %v2688 = vmul.f32 %v2673, 1.442695
      %v2689 = vpow.pop %v2688
      %v2690 = vadd.f32 %v2675, 1.0
      %v2691 = vadd.f32 %v2677, 1.0
      %v2692 = vadd.f32 %v2679, 1.0
      %v2693 = vadd.f32 %v2681, 1.0
      %v2694 = vadd.f32 %v2683, 1.0
      %v2695 = vadd.f32 %v2685, 1.0
      %v2696 = vadd.f32 %v2687, 1.0
      %v2697 = vadd.f32 %v2689, 1.0
      %v2698 = vrcp.pop %v2690
      %v2699 = vmul.f32 1.0, %v2698
      %v2700 = vrcp.pop %v2691
      %v2701 = vmul.f32 1.0, %v2700
      %v2702 = vrcp.pop %v2692
      %v2703 = vmul.f32 1.0, %v2702
      %v2704 = vrcp.pop %v2693
      %v2705 = vmul.f32 1.0, %v2704
      %v2706 = vrcp.pop %v2694
      %v2707 = vmul.f32 1.0, %v2706
      %v2708 = vrcp.pop %v2695
      %v2709 = vmul.f32 1.0, %v2708
      %v2710 = vrcp.pop %v2696
      %v2711 = vmul.f32 1.0, %v2710
      %v2712 = vrcp.pop %v2697
      %v2713 = vmul.f32 1.0, %v2712
      %v2714 = vmul.f32 %v2658, %v2699
      %v2715 = vmul.f32 %v2659, %v2701
      %v2716 = vmul.f32 %v2660, %v2703
      %v2717 = vmul.f32 %v2661, %v2705
      %v2718 = vmul.f32 %v2662, %v2707
      %v2719 = vmul.f32 %v2663, %v2709
      %v2720 = vmul.f32 %v2664, %v2711
      %v2721 = vmul.f32 %v2665, %v2713
      %v2722 = vld [vmem:[%s11] sm:$0xff]
      %v2723 = vld [vmem:[%s11 + $0x8] sm:$0xff]
      %v2724 = vld [vmem:[%s11 + $0x10] sm:$0xff]
      %v2725 = vld [vmem:[%s11 + $0x18] sm:$0xff]
      %v2726 = vld [vmem:[%s11 + $0x20] sm:$0xff]
      %v2727 = vld [vmem:[%s11 + $0x28] sm:$0xff]
      %v2728 = vld [vmem:[%s11 + $0x30] sm:$0xff]
      %v2729 = vld [vmem:[%s9] sm:$0xff]
      %v2730 = vld [vmem:[%s9 + $0x8] sm:$0xff]
      %v2731 = vld [vmem:[%s9 + $0x10] sm:$0xff]
      %v2732 = vld [vmem:[%s9 + $0x18] sm:$0xff]
      %v2733 = vld [vmem:[%s9 + $0x20] sm:$0xff]
      %v2734 = vld [vmem:[%s9 + $0x28] sm:$0xff]
      %v2735 = vld [vmem:[%s9 + $0x30] sm:$0xff]
      %v2737 = vsel %vm1229, %v2729, 0
      %v2740 = vsel %vm1229, %v2730, 0
      %v2743 = vsel %vm1229, %v2731, 0
      %v2746 = vsel %vm1229, %v2732, 0
      %v2749 = vsel %vm1229, %v2733, 0
      %v2752 = vsel %vm1229, %v2734, 0
      %v2755 = vsel %vm1229, %v2735, 0
      %2757 = vmatprep.subr.mxu0 0.0
      %2758 = vmatpush1.msra.mxu0 %v2714
      %2759 = vmatprep.subr.mxu0 0.0
      %2760 = vmatpush1.msra.mxu0 %v2715
      %2761 = vmatprep.subr.mxu0 0.0
      %2762 = vmatpush1.msra.mxu0 %v2716
      %2763 = vmatprep.subr.mxu0 0.0
      %2764 = vmatpush1.msra.mxu0 %v2717
      %2765 = vmatprep.subr.mxu0 0.0
      %2766 = vmatpush1.msra.mxu0 %v2718
      %2767 = vmatprep.subr.mxu0 0.0
      %2768 = vmatpush1.msra.mxu0 %v2719
      %2769 = vmatprep.subr.mxu0 0.0
      %2770 = vmatpush1.msra.mxu0 %v2720
      %2771 = vmatprep.subr.mxu0 0.0
      %2772 = vmatpush1.msra.mxu0 %v2721
      %2773 = vmatprep.subr.mxu0 0.0
      %2774 = vmatpush1.msra.mxu0 0.0
      %2775 = vmatprep.subr.mxu0 0.0
      %2776 = vmatpush1.msra.mxu0 0.0
      %2777 = vmatprep.subr.mxu0 0.0
      %2778 = vmatpush1.msra.mxu0 0.0
      %2779 = vmatprep.subr.mxu0 0.0
      %2780 = vmatpush1.msra.mxu0 0.0
      %2781 = vmatprep.subr.mxu0 0.0
      %2782 = vmatpush1.msra.mxu0 0.0
      %2783 = vmatprep.subr.mxu0 0.0
      %2784 = vmatpush1.msra.mxu0 0.0
      %2785 = vmatprep.subr.mxu0 0.0
      %2786 = vmatpush1.msra.mxu0 0.0
      %2787 = vmatprep.subr.mxu0 0.0
      %2788 = vmatpush1.msra.mxu0 0.0
      %2789 = vmatprep.subr.mxu0 0.0
      %2790 = vmatpush1.msra.mxu0 0.0
      %2791 = vmatprep.subr.mxu0 0.0
      %2792 = vmatpush1.msra.mxu0 0.0
      %2793 = vmatprep.subr.mxu0 0.0
      %2794 = vmatpush1.msra.mxu0 0.0
      %2795 = vmatprep.subr.mxu0 0.0
      %2796 = vmatpush1.msra.mxu0 0.0
      %2797 = vmatprep.subr.mxu0 0.0
      %2798 = vmatpush1.msra.mxu0 0.0
      %2799 = vmatprep.subr.mxu0 0.0
      %2800 = vmatpush1.msra.mxu0 0.0
      %2801 = vmatprep.subr.mxu0 0.0
      %2802 = vmatpush1.msra.mxu0 0.0
      %2803 = vmatprep.subr.mxu0 0.0
      %2804 = vmatpush1.msra.mxu0 0.0
      %2805 = vmatprep.subr.mxu0 0.0
      %2806 = vmatpush1.msra.mxu0 0.0
      %2807 = vmatprep.subr.mxu0 0.0
      %2808 = vmatpush1.msra.mxu0 0.0
      %2809 = vmatprep.subr.mxu0 0.0
      %2810 = vmatpush1.msra.mxu0 0.0
      %2811 = vmatprep.subr.mxu0 0.0
      %2812 = vmatpush1.msra.mxu0 0.0
      %2813 = vmatprep.subr.mxu0 0.0
      %2814 = vmatpush1.msra.mxu0 0.0
      %2815 = vmatprep.subr.mxu0 0.0
      %2816 = vmatpush1.msra.mxu0 0.0
      %2817 = vmatprep.subr.mxu0 0.0
      %2818 = vmatpush1.msra.mxu0 0.0
      %2819 = vmatprep.subr.mxu0 0.0
      %2820 = vmatpush1.msra.mxu0 0.0
      %2821 = vmatprep.mubr.f32.mxu0 0.0
      %2822 = vmatmul.mubr.f32.gmra.mrb[0].mxu0 %v2737
      %v2823 = vpop.f32.mrb[0].mxu0
      %v2824 = vadd.f32 0.0, %v2823
      %v2825 = vpop.f32.mrb[0].mxu0
      %2826 = vmatprep.mubr.f32.mxu0 0.0
      %2827 = vmatmul.mubr.f32.gmra.mrb[0].mxu0 %v2740
      %v2828 = vpop.f32.mrb[0].mxu0
      %v2829 = vadd.f32 0.0, %v2828
      %v2830 = vpop.f32.mrb[0].mxu0
      %2831 = vmatprep.mubr.f32.mxu0 0.0
      %2832 = vmatmul.mubr.f32.gmra.mrb[0].mxu0 %v2743
      %v2833 = vpop.f32.mrb[0].mxu0
      %v2834 = vadd.f32 0.0, %v2833
      %v2835 = vpop.f32.mrb[0].mxu0
      %2836 = vmatprep.mubr.f32.mxu0 0.0
      %2837 = vmatmul.mubr.f32.gmra.mrb[0].mxu0 %v2746
      %v2838 = vpop.f32.mrb[0].mxu0
      %v2839 = vadd.f32 0.0, %v2838
      %v2840 = vpop.f32.mrb[0].mxu0
      %2841 = vmatprep.mubr.f32.mxu0 0.0
      %2842 = vmatmul.mubr.f32.gmra.mrb[0].mxu0 %v2749
      %v2843 = vpop.f32.mrb[0].mxu0
      %v2844 = vadd.f32 0.0, %v2843
      %v2845 = vpop.f32.mrb[0].mxu0
      %2846 = vmatprep.mubr.f32.mxu0 0.0
      %2847 = vmatmul.mubr.f32.gmra.mrb[0].mxu0 %v2752
      %v2848 = vpop.f32.mrb[0].mxu0
      %v2849 = vadd.f32 0.0, %v2848
      %v2850 = vpop.f32.mrb[0].mxu0
      %2851 = vmatprep.mubr.f32.mxu0 0.0
      %2852 = vmatmul.mubr.f32.gmra.mrb[0].mxu0 %v2755
      %v2853 = vpop.f32.mrb[0].mxu0
      %v2854 = vadd.f32 0.0, %v2853
      %v2855 = vpop.f32.mrb[0].mxu0
      %2856 = vdwg.mxu0
      %v2857 = vld [vmem:[%s10] sm:$0xf]
      %vm2858 = vcmask 31744
      %v2860 = vsel %vm2858, %v2824, 0
      %v2863 = vsel %vm2858, %v2829, 0
      %v2866 = vsel %vm2858, %v2834, 0
      %v2869 = vsel %vm2858, %v2839, 0
      %v2872 = vsel %vm2858, %v2844, 0
      %v2875 = vsel %vm2858, %v2849, 0
      %v2878 = vsel %vm2858, %v2854, 0
      %vm2880 = vcmask 1043456
      %v2882 = vsel %vm2880, %v2857, 0
      %2884 = vmatprep.subr.mxu0 0.0
      %2885 = vmatpush1.msra.mxu0 %v2882
      %2886 = vmatprep.subr.mxu0 0.0
      %2887 = vmatpush1.msra.mxu0 0.0
      %2888 = vmatprep.subr.mxu0 0.0
      %2889 = vmatpush1.msra.mxu0 0.0
      %2890 = vmatprep.subr.mxu0 0.0
      %2891 = vmatpush1.msra.mxu0 0.0
      %2892 = vmatprep.subr.mxu0 0.0
      %2893 = vmatpush1.msra.mxu0 0.0
      %2894 = vmatprep.subr.mxu0 0.0
      %2895 = vmatpush1.msra.mxu0 0.0
      %2896 = vmatprep.subr.mxu0 0.0
      %2897 = vmatpush1.msra.mxu0 0.0
      %2898 = vmatprep.subr.mxu0 0.0
      %2899 = vmatpush1.msra.mxu0 0.0
      %2900 = vmatprep.subr.mxu0 0.0
      %2901 = vmatpush1.msra.mxu0 0.0
      %2902 = vmatprep.subr.mxu0 0.0
      %2903 = vmatpush1.msra.mxu0 0.0
      %2904 = vmatprep.subr.mxu0 0.0
      %2905 = vmatpush1.msra.mxu0 0.0
      %2906 = vmatprep.subr.mxu0 0.0
      %2907 = vmatpush1.msra.mxu0 0.0
      %2908 = vmatprep.subr.mxu0 0.0
      %2909 = vmatpush1.msra.mxu0 0.0
      %2910 = vmatprep.subr.mxu0 0.0
      %2911 = vmatpush1.msra.mxu0 0.0
      %2912 = vmatprep.subr.mxu0 0.0
      %2913 = vmatpush1.msra.mxu0 0.0
      %2914 = vmatprep.subr.mxu0 0.0
      %2915 = vmatpush1.msra.mxu0 0.0
      %2916 = vmatprep.subr.mxu0 0.0
      %2917 = vmatpush1.msra.mxu0 0.0
      %2918 = vmatprep.subr.mxu0 0.0
      %2919 = vmatpush1.msra.mxu0 0.0
      %2920 = vmatprep.subr.mxu0 0.0
      %2921 = vmatpush1.msra.mxu0 0.0
      %2922 = vmatprep.subr.mxu0 0.0
      %2923 = vmatpush1.msra.mxu0 0.0
      %2924 = vmatprep.subr.mxu0 0.0
      %2925 = vmatpush1.msra.mxu0 0.0
      %2926 = vmatprep.subr.mxu0 0.0
      %2927 = vmatpush1.msra.mxu0 0.0
      %2928 = vmatprep.subr.mxu0 0.0
      %2929 = vmatpush1.msra.mxu0 0.0
      %2930 = vmatprep.subr.mxu0 0.0
      %2931 = vmatpush1.msra.mxu0 0.0
      %2932 = vmatprep.subr.mxu0 0.0
      %2933 = vmatpush1.msra.mxu0 0.0
      %2934 = vmatprep.subr.mxu0 0.0
      %2935 = vmatpush1.msra.mxu0 0.0
      %2936 = vmatprep.subr.mxu0 0.0
      %2937 = vmatpush1.msra.mxu0 0.0
      %2938 = vmatprep.subr.mxu0 0.0
      %2939 = vmatpush1.msra.mxu0 0.0
      %2940 = vmatprep.subr.mxu0 0.0
      %2941 = vmatpush1.msra.mxu0 0.0
      %2942 = vmatprep.subr.mxu0 0.0
      %2943 = vmatpush1.msra.mxu0 0.0
      %2944 = vmatprep.subr.mxu0 0.0
      %2945 = vmatpush1.msra.mxu0 0.0
      %2946 = vmatprep.subr.mxu0 0.0
      %2947 = vmatpush1.msra.mxu0 0.0
      %2948 = vmatprep.mubr.f32.mxu0 0.0
      %2949 = vmatmul.mubr.f32.gmra.mrb[0].mxu0 %v2860
      %v2950 = vpop.f32.mrb[0].mxu0
      %v2951 = vadd.f32 0.0, %v2950
      %v2952 = vpop.f32.mrb[0].mxu0
      %2953 = vmatprep.mubr.f32.mxu0 0.0
      %2954 = vmatmul.mubr.f32.gmra.mrb[0].mxu0 %v2863
      %v2955 = vpop.f32.mrb[0].mxu0
      %v2956 = vadd.f32 0.0, %v2955
      %v2957 = vpop.f32.mrb[0].mxu0
      %2958 = vmatprep.mubr.f32.mxu0 0.0
      %2959 = vmatmul.mubr.f32.gmra.mrb[0].mxu0 %v2866
      %v2960 = vpop.f32.mrb[0].mxu0
      %v2961 = vadd.f32 0.0, %v2960
      %v2962 = vpop.f32.mrb[0].mxu0
      %2963 = vmatprep.mubr.f32.mxu0 0.0
      %2964 = vmatmul.mubr.f32.gmra.mrb[0].mxu0 %v2869
      %v2965 = vpop.f32.mrb[0].mxu0
      %v2966 = vadd.f32 0.0, %v2965
      %v2967 = vpop.f32.mrb[0].mxu0
      %2968 = vmatprep.mubr.f32.mxu0 0.0
      %2969 = vmatmul.mubr.f32.gmra.mrb[0].mxu0 %v2872
      %v2970 = vpop.f32.mrb[0].mxu0
      %v2971 = vadd.f32 0.0, %v2970
      %v2972 = vpop.f32.mrb[0].mxu0
      %2973 = vmatprep.mubr.f32.mxu0 0.0
      %2974 = vmatmul.mubr.f32.gmra.mrb[0].mxu0 %v2875
      %v2975 = vpop.f32.mrb[0].mxu0
      %v2976 = vadd.f32 0.0, %v2975
      %v2977 = vpop.f32.mrb[0].mxu0
      %2978 = vmatprep.mubr.f32.mxu0 0.0
      %2979 = vmatmul.mubr.f32.gmra.mrb[0].mxu0 %v2878
      %v2980 = vpop.f32.mrb[0].mxu0
      %v2981 = vadd.f32 0.0, %v2980
      %v2982 = vpop.f32.mrb[0].mxu0
      %2983 = vdwg.mxu0
      %2985 = vset.pattern.permute.xlu0 0
      %2986 = vperm.xlu0 %2985, %v2722
      %v2987 = vpop.permute.xlu0 %2986
      %2990 = vset.pattern.permute.xlu0 0
      %2991 = vperm.xlu0 %2990, %v2723
      %v2992 = vpop.permute.xlu0 %2991
      %2995 = vset.pattern.permute.xlu0 0
      %2996 = vperm.xlu0 %2995, %v2724
      %v2997 = vpop.permute.xlu0 %2996
      %3000 = vset.pattern.permute.xlu0 0
      %3001 = vperm.xlu0 %3000, %v2725
      %v3002 = vpop.permute.xlu0 %3001
      %3005 = vset.pattern.permute.xlu0 0
      %3006 = vperm.xlu0 %3005, %v2726
      %v3007 = vpop.permute.xlu0 %3006
      %3010 = vset.pattern.permute.xlu0 0
      %3011 = vperm.xlu0 %3010, %v2727
      %v3012 = vpop.permute.xlu0 %3011
      %3015 = vset.pattern.permute.xlu0 0
      %3016 = vperm.xlu0 %3015, %v2728
      %v3017 = vpop.permute.xlu0 %3016
      %v3019 = vadd.f32 %v2987, %v2951
      %v3020 = vadd.f32 %v2992, %v2956
      %v3021 = vadd.f32 %v2997, %v2961
      %v3022 = vadd.f32 %v3002, %v2966
      %v3023 = vadd.f32 %v3007, %v2971
      %v3024 = vadd.f32 %v3012, %v2976
      %v3025 = vadd.f32 %v3017, %v2981
      %s3026 = scalar_lea.vmem %s9, 56
      %v3027 = vld [vmem:[%s3026] sm:$0xff]
      %v3028 = vld [vmem:[%s3026 + $0x8] sm:$0xff]
      %v3029 = vld [vmem:[%s3026 + $0x10] sm:$0xff]
      %v3030 = vld [vmem:[%s3026 + $0x18] sm:$0xff]
      %v3031 = vld [vmem:[%s3026 + $0x20] sm:$0xff]
      %v3032 = vld [vmem:[%s3026 + $0x28] sm:$0xff]
      %v3033 = vld [vmem:[%s3026 + $0x30] sm:$0xff]
      %v3035 = vsel %vm1229, %v3027, 0
      %v3038 = vsel %vm1229, %v3028, 0
      %v3041 = vsel %vm1229, %v3029, 0
      %v3044 = vsel %vm1229, %v3030, 0
      %v3047 = vsel %vm1229, %v3031, 0
      %v3050 = vsel %vm1229, %v3032, 0
      %v3053 = vsel %vm1229, %v3033, 0
      %3055 = vmatprep.subr.mxu0 0.0
      %3056 = vmatpush1.msra.mxu0 %v2714
      %3057 = vmatprep.subr.mxu0 0.0
      %3058 = vmatpush1.msra.mxu0 %v2715
      %3059 = vmatprep.subr.mxu0 0.0
      %3060 = vmatpush1.msra.mxu0 %v2716
      %3061 = vmatprep.subr.mxu0 0.0
      %3062 = vmatpush1.msra.mxu0 %v2717
      %3063 = vmatprep.subr.mxu0 0.0
      %3064 = vmatpush1.msra.mxu0 %v2718
      %3065 = vmatprep.subr.mxu0 0.0
      %3066 = vmatpush1.msra.mxu0 %v2719
      %3067 = vmatprep.subr.mxu0 0.0
      %3068 = vmatpush1.msra.mxu0 %v2720
      %3069 = vmatprep.subr.mxu0 0.0
      %3070 = vmatpush1.msra.mxu0 %v2721
      %3071 = vmatprep.subr.mxu0 0.0
      %3072 = vmatpush1.msra.mxu0 0.0
      %3073 = vmatprep.subr.mxu0 0.0
      %3074 = vmatpush1.msra.mxu0 0.0
      %3075 = vmatprep.subr.mxu0 0.0
      %3076 = vmatpush1.msra.mxu0 0.0
      %3077 = vmatprep.subr.mxu0 0.0
      %3078 = vmatpush1.msra.mxu0 0.0
      %3079 = vmatprep.subr.mxu0 0.0
      %3080 = vmatpush1.msra.mxu0 0.0
      %3081 = vmatprep.subr.mxu0 0.0
      %3082 = vmatpush1.msra.mxu0 0.0
      %3083 = vmatprep.subr.mxu0 0.0
      %3084 = vmatpush1.msra.mxu0 0.0
      %3085 = vmatprep.subr.mxu0 0.0
      %3086 = vmatpush1.msra.mxu0 0.0
      %3087 = vmatprep.subr.mxu0 0.0
      %3088 = vmatpush1.msra.mxu0 0.0
      %3089 = vmatprep.subr.mxu0 0.0
      %3090 = vmatpush1.msra.mxu0 0.0
      %3091 = vmatprep.subr.mxu0 0.0
      %3092 = vmatpush1.msra.mxu0 0.0
      %3093 = vmatprep.subr.mxu0 0.0
      %3094 = vmatpush1.msra.mxu0 0.0
      %3095 = vmatprep.subr.mxu0 0.0
      %3096 = vmatpush1.msra.mxu0 0.0
      %3097 = vmatprep.subr.mxu0 0.0
      %3098 = vmatpush1.msra.mxu0 0.0
      %3099 = vmatprep.subr.mxu0 0.0
      %3100 = vmatpush1.msra.mxu0 0.0
      %3101 = vmatprep.subr.mxu0 0.0
      %3102 = vmatpush1.msra.mxu0 0.0
      %3103 = vmatprep.subr.mxu0 0.0
      %3104 = vmatpush1.msra.mxu0 0.0
      %3105 = vmatprep.subr.mxu0 0.0
      %3106 = vmatpush1.msra.mxu0 0.0
      %3107 = vmatprep.subr.mxu0 0.0
      %3108 = vmatpush1.msra.mxu0 0.0
      %3109 = vmatprep.subr.mxu0 0.0
      %3110 = vmatpush1.msra.mxu0 0.0
      %3111 = vmatprep.subr.mxu0 0.0
      %3112 = vmatpush1.msra.mxu0 0.0
      %3113 = vmatprep.subr.mxu0 0.0
      %3114 = vmatpush1.msra.mxu0 0.0
      %3115 = vmatprep.subr.mxu0 0.0
      %3116 = vmatpush1.msra.mxu0 0.0
      %3117 = vmatprep.subr.mxu0 0.0
      %3118 = vmatpush1.msra.mxu0 0.0
      %3119 = vmatprep.mubr.f32.mxu0 0.0
      %3120 = vmatmul.mubr.f32.gmra.mrb[0].mxu0 %v3035
      %v3121 = vpop.f32.mrb[0].mxu0
      %v3122 = vadd.f32 0.0, %v3121
      %v3123 = vpop.f32.mrb[0].mxu0
      %3124 = vmatprep.mubr.f32.mxu0 0.0
      %3125 = vmatmul.mubr.f32.gmra.mrb[0].mxu0 %v3038
      %v3126 = vpop.f32.mrb[0].mxu0
      %v3127 = vadd.f32 0.0, %v3126
      %v3128 = vpop.f32.mrb[0].mxu0
      %3129 = vmatprep.mubr.f32.mxu0 0.0
      %3130 = vmatmul.mubr.f32.gmra.mrb[0].mxu0 %v3041
      %v3131 = vpop.f32.mrb[0].mxu0
      %v3132 = vadd.f32 0.0, %v3131
      %v3133 = vpop.f32.mrb[0].mxu0
      %3134 = vmatprep.mubr.f32.mxu0 0.0
      %3135 = vmatmul.mubr.f32.gmra.mrb[0].mxu0 %v3044
      %v3136 = vpop.f32.mrb[0].mxu0
      %v3137 = vadd.f32 0.0, %v3136
      %v3138 = vpop.f32.mrb[0].mxu0
      %3139 = vmatprep.mubr.f32.mxu0 0.0
      %3140 = vmatmul.mubr.f32.gmra.mrb[0].mxu0 %v3047
      %v3141 = vpop.f32.mrb[0].mxu0
      %v3142 = vadd.f32 0.0, %v3141
      %v3143 = vpop.f32.mrb[0].mxu0
      %3144 = vmatprep.mubr.f32.mxu0 0.0
      %3145 = vmatmul.mubr.f32.gmra.mrb[0].mxu0 %v3050
      %v3146 = vpop.f32.mrb[0].mxu0
      %v3147 = vadd.f32 0.0, %v3146
      %v3148 = vpop.f32.mrb[0].mxu0
      %3149 = vmatprep.mubr.f32.mxu0 0.0
      %3150 = vmatmul.mubr.f32.gmra.mrb[0].mxu0 %v3053
      %v3151 = vpop.f32.mrb[0].mxu0
      %v3152 = vadd.f32 0.0, %v3151
      %v3153 = vpop.f32.mrb[0].mxu0
      %3154 = vdwg.mxu0
      %s3155 = scalar_lea.vmem %s10, 4
      %v3156 = vld [vmem:[%s3155] sm:$0xf]
      %v3158 = vsel %vm2858, %v3122, 0
      %v3161 = vsel %vm2858, %v3127, 0
      %v3164 = vsel %vm2858, %v3132, 0
      %v3167 = vsel %vm2858, %v3137, 0
      %v3170 = vsel %vm2858, %v3142, 0
      %v3173 = vsel %vm2858, %v3147, 0
      %v3176 = vsel %vm2858, %v3152, 0
      %v3179 = vsel %vm2880, %v3156, 0
      %3181 = vmatprep.subr.mxu0 0.0
      %3182 = vmatpush1.msra.mxu0 %v3179
      %3183 = vmatprep.subr.mxu0 0.0
      %3184 = vmatpush1.msra.mxu0 0.0
      %3185 = vmatprep.subr.mxu0 0.0
      %3186 = vmatpush1.msra.mxu0 0.0
      %3187 = vmatprep.subr.mxu0 0.0
      %3188 = vmatpush1.msra.mxu0 0.0
      %3189 = vmatprep.subr.mxu0 0.0
      %3190 = vmatpush1.msra.mxu0 0.0
      %3191 = vmatprep.subr.mxu0 0.0
      %3192 = vmatpush1.msra.mxu0 0.0
      %3193 = vmatprep.subr.mxu0 0.0
      %3194 = vmatpush1.msra.mxu0 0.0
      %3195 = vmatprep.subr.mxu0 0.0
      %3196 = vmatpush1.msra.mxu0 0.0
      %3197 = vmatprep.subr.mxu0 0.0
      %3198 = vmatpush1.msra.mxu0 0.0
      %3199 = vmatprep.subr.mxu0 0.0
      %3200 = vmatpush1.msra.mxu0 0.0
      %3201 = vmatprep.subr.mxu0 0.0
      %3202 = vmatpush1.msra.mxu0 0.0
      %3203 = vmatprep.subr.mxu0 0.0
      %3204 = vmatpush1.msra.mxu0 0.0
      %3205 = vmatprep.subr.mxu0 0.0
      %3206 = vmatpush1.msra.mxu0 0.0
      %3207 = vmatprep.subr.mxu0 0.0
      %3208 = vmatpush1.msra.mxu0 0.0
      %3209 = vmatprep.subr.mxu0 0.0
      %3210 = vmatpush1.msra.mxu0 0.0
      %3211 = vmatprep.subr.mxu0 0.0
      %3212 = vmatpush1.msra.mxu0 0.0
      %3213 = vmatprep.subr.mxu0 0.0
      %3214 = vmatpush1.msra.mxu0 0.0
      %3215 = vmatprep.subr.mxu0 0.0
      %3216 = vmatpush1.msra.mxu0 0.0
      %3217 = vmatprep.subr.mxu0 0.0
      %3218 = vmatpush1.msra.mxu0 0.0
      %3219 = vmatprep.subr.mxu0 0.0
      %3220 = vmatpush1.msra.mxu0 0.0
      %3221 = vmatprep.subr.mxu0 0.0
      %3222 = vmatpush1.msra.mxu0 0.0
      %3223 = vmatprep.subr.mxu0 0.0
      %3224 = vmatpush1.msra.mxu0 0.0
      %3225 = vmatprep.subr.mxu0 0.0
      %3226 = vmatpush1.msra.mxu0 0.0
      %3227 = vmatprep.subr.mxu0 0.0
      %3228 = vmatpush1.msra.mxu0 0.0
      %3229 = vmatprep.subr.mxu0 0.0
      %3230 = vmatpush1.msra.mxu0 0.0
      %3231 = vmatprep.subr.mxu0 0.0
      %3232 = vmatpush1.msra.mxu0 0.0
      %3233 = vmatprep.subr.mxu0 0.0
      %3234 = vmatpush1.msra.mxu0 0.0
      %3235 = vmatprep.subr.mxu0 0.0
      %3236 = vmatpush1.msra.mxu0 0.0
      %3237 = vmatprep.subr.mxu0 0.0
      %3238 = vmatpush1.msra.mxu0 0.0
      %3239 = vmatprep.subr.mxu0 0.0
      %3240 = vmatpush1.msra.mxu0 0.0
      %3241 = vmatprep.subr.mxu0 0.0
      %3242 = vmatpush1.msra.mxu0 0.0
      %3243 = vmatprep.subr.mxu0 0.0
      %3244 = vmatpush1.msra.mxu0 0.0
      %3245 = vmatprep.mubr.f32.mxu0 0.0
      %3246 = vmatmul.mubr.f32.gmra.mrb[0].mxu0 %v3158
      %v3247 = vpop.f32.mrb[0].mxu0
      %v3248 = vadd.f32 0.0, %v3247
      %v3249 = vpop.f32.mrb[0].mxu0
      %3250 = vmatprep.mubr.f32.mxu0 0.0
      %3251 = vmatmul.mubr.f32.gmra.mrb[0].mxu0 %v3161
      %v3252 = vpop.f32.mrb[0].mxu0
      %v3253 = vadd.f32 0.0, %v3252
      %v3254 = vpop.f32.mrb[0].mxu0
      %3255 = vmatprep.mubr.f32.mxu0 0.0
      %3256 = vmatmul.mubr.f32.gmra.mrb[0].mxu0 %v3164
      %v3257 = vpop.f32.mrb[0].mxu0
      %v3258 = vadd.f32 0.0, %v3257
      %v3259 = vpop.f32.mrb[0].mxu0
      %3260 = vmatprep.mubr.f32.mxu0 0.0
      %3261 = vmatmul.mubr.f32.gmra.mrb[0].mxu0 %v3167
      %v3262 = vpop.f32.mrb[0].mxu0
      %v3263 = vadd.f32 0.0, %v3262
      %v3264 = vpop.f32.mrb[0].mxu0
      %3265 = vmatprep.mubr.f32.mxu0 0.0
      %3266 = vmatmul.mubr.f32.gmra.mrb[0].mxu0 %v3170
      %v3267 = vpop.f32.mrb[0].mxu0
      %v3268 = vadd.f32 0.0, %v3267
      %v3269 = vpop.f32.mrb[0].mxu0
      %3270 = vmatprep.mubr.f32.mxu0 0.0
      %3271 = vmatmul.mubr.f32.gmra.mrb[0].mxu0 %v3173
      %v3272 = vpop.f32.mrb[0].mxu0
      %v3273 = vadd.f32 0.0, %v3272
      %v3274 = vpop.f32.mrb[0].mxu0
      %3275 = vmatprep.mubr.f32.mxu0 0.0
      %3276 = vmatmul.mubr.f32.gmra.mrb[0].mxu0 %v3176
      %v3277 = vpop.f32.mrb[0].mxu0
      %v3278 = vadd.f32 0.0, %v3277
      %v3279 = vpop.f32.mrb[0].mxu0
      %3280 = vdwg.mxu0
      %v3281 = vadd.f32 %v3019, %v3248
      %v3282 = vadd.f32 %v3020, %v3253
      %v3283 = vadd.f32 %v3021, %v3258
      %v3284 = vadd.f32 %v3022, %v3263
      %v3285 = vadd.f32 %v3023, %v3268
      %v3286 = vadd.f32 %v3024, %v3273
      %v3287 = vadd.f32 %v3025, %v3278
      %v3288 = vxor.u32 %v3281, 2147483648
      %v3289 = vxor.u32 %v3282, 2147483648
      %v3290 = vxor.u32 %v3283, 2147483648
      %v3291 = vxor.u32 %v3284, 2147483648
      %v3292 = vxor.u32 %v3285, 2147483648
      %v3293 = vxor.u32 %v3286, 2147483648
      %v3294 = vxor.u32 %v3287, 2147483648
      %v3295 = vmul.f32 %v3288, 1.442695
      %v3296 = vpow.pop %v3295
      %v3297 = vmul.f32 %v3289, 1.442695
      %v3298 = vpow.pop %v3297
      %v3299 = vmul.f32 %v3290, 1.442695
      %v3300 = vpow.pop %v3299
      %v3301 = vmul.f32 %v3291, 1.442695
      %v3302 = vpow.pop %v3301
      %v3303 = vmul.f32 %v3292, 1.442695
      %v3304 = vpow.pop %v3303
      %v3305 = vmul.f32 %v3293, 1.442695
      %v3306 = vpow.pop %v3305
      %v3307 = vmul.f32 %v3294, 1.442695
      %v3308 = vpow.pop %v3307
      %v3309 = vadd.f32 %v3296, 1.0
      %v3310 = vadd.f32 %v3298, 1.0
      %v3311 = vadd.f32 %v3300, 1.0
      %v3312 = vadd.f32 %v3302, 1.0
      %v3313 = vadd.f32 %v3304, 1.0
      %v3314 = vadd.f32 %v3306, 1.0
      %v3315 = vadd.f32 %v3308, 1.0
      %v3316 = vrcp.pop %v3309
      %v3317 = vmul.f32 1.0, %v3316
      %v3318 = vrcp.pop %v3310
      %v3319 = vmul.f32 1.0, %v3318
      %v3320 = vrcp.pop %v3311
      %v3321 = vmul.f32 1.0, %v3320
      %v3322 = vrcp.pop %v3312
      %v3323 = vmul.f32 1.0, %v3322
      %v3324 = vrcp.pop %v3313
      %v3325 = vmul.f32 1.0, %v3324
      %v3326 = vrcp.pop %v3314
      %v3327 = vmul.f32 1.0, %v3326
      %v3328 = vrcp.pop %v3315
      %v3329 = vmul.f32 1.0, %v3328
      %v3330 = vmul.f32 %v3281, %v3317
      %v3331 = vmul.f32 %v3282, %v3319
      %v3332 = vmul.f32 %v3283, %v3321
      %v3333 = vmul.f32 %v3284, %v3323
      %v3334 = vmul.f32 %v3285, %v3325
      %v3335 = vmul.f32 %v3286, %v3327
      %v3336 = vmul.f32 %v3287, %v3329
      %v3337 = vld [vmem:[%s14] sm:$0xff]
      %v3338 = vld [vmem:[%s14 + $0x8] sm:$0xff]
      %v3339 = vld [vmem:[%s14 + $0x10] sm:$0xff]
      %v3340 = vld [vmem:[%s14 + $0x18] sm:$0xff]
      %v3341 = vld [vmem:[%s14 + $0x20] sm:$0xff]
      %v3342 = vld [vmem:[%s14 + $0x28] sm:$0xff]
      %v3343 = vld [vmem:[%s14 + $0x30] sm:$0xff]
      %v3344 = vld [vmem:[%s14 + $0x38] sm:$0xff]
      %v3345 = vld [vmem:[%s14 + $0x40] sm:$0xff]
      %v3346 = vld [vmem:[%s14 + $0x48] sm:$0xff]
      %v3347 = vld [vmem:[%s14 + $0x50] sm:$0xff]
      %v3348 = vld [vmem:[%s14 + $0x58] sm:$0xff]
      %v3349 = vld [vmem:[%s14 + $0x60] sm:$0xff]
      %v3350 = vld [vmem:[%s14 + $0x68] sm:$0xff]
      %v3351 = vld [vmem:[%s14 + $0x70] sm:$0xff]
      %v3352 = vld [vmem:[%s14 + $0x78] sm:$0xff]
      %v3353 = vld [vmem:[%s14 + $0x80] sm:$0xff]
      %v3354 = vld [vmem:[%s14 + $0x88] sm:$0xff]
      %v3355 = vld [vmem:[%s14 + $0x90] sm:$0xff]
      %v3356 = vld [vmem:[%s14 + $0x98] sm:$0xff]
      %v3357 = vld [vmem:[%s14 + $0xa0] sm:$0xff]
      %v3358 = vld [vmem:[%s14 + $0xa8] sm:$0xff]
      %v3359 = vld [vmem:[%s14 + $0xb0] sm:$0xff]
      %v3360 = vld [vmem:[%s14 + $0xb8] sm:$0xff]
      %v3361 = vld [vmem:[%s14 + $0xc0] sm:$0xff]
      %v3362 = vld [vmem:[%s14 + $0xc8] sm:$0xff]
      %v3363 = vld [vmem:[%s14 + $0xd0] sm:$0xff]
      %v3364 = vld [vmem:[%s14 + $0xd8] sm:$0xff]
      %v3365 = vld [vmem:[%s14 + $0xe0] sm:$0xff]
      %v3366 = vld [vmem:[%s14 + $0xe8] sm:$0xff]
      %v3367 = vld [vmem:[%s14 + $0xf0] sm:$0xff]
      %v3368 = vld [vmem:[%s14 + $0xf8] sm:$0xff]
      %v3369 = vld [vmem:[%s14 + $0x100] sm:$0xff]
      %v3370 = vld [vmem:[%s14 + $0x108] sm:$0xff]
      %v3371 = vld [vmem:[%s14 + $0x110] sm:$0xff]
      %v3372 = vld [vmem:[%s14 + $0x118] sm:$0xff]
      %v3373 = vld [vmem:[%s14 + $0x120] sm:$0xff]
      %v3374 = vld [vmem:[%s14 + $0x128] sm:$0xff]
      %v3375 = vld [vmem:[%s14 + $0x130] sm:$0xff]
      %v3376 = vld [vmem:[%s14 + $0x138] sm:$0xff]
      %v3377 = vld [vmem:[%s14 + $0x140] sm:$0xff]
      %v3378 = vld [vmem:[%s14 + $0x148] sm:$0xff]
      %v3379 = vld [vmem:[%s14 + $0x150] sm:$0xff]
      %v3380 = vld [vmem:[%s14 + $0x158] sm:$0xff]
      %v3381 = vld [vmem:[%s14 + $0x160] sm:$0xff]
      %v3382 = vld [vmem:[%s14 + $0x168] sm:$0xff]
      %v3383 = vld [vmem:[%s14 + $0x170] sm:$0xff]
      %v3384 = vld [vmem:[%s14 + $0x178] sm:$0xff]
      %v3385 = vld [vmem:[%s14 + $0x180] sm:$0xff]
      %v3386 = vld [vmem:[%s14 + $0x188] sm:$0xff]
      %v3387 = vld [vmem:[%s14 + $0x190] sm:$0xff]
      %v3388 = vld [vmem:[%s14 + $0x198] sm:$0xff]
      %v3389 = vld [vmem:[%s14 + $0x1a0] sm:$0xff]
      %v3390 = vld [vmem:[%s14 + $0x1a8] sm:$0xff]
      %v3391 = vld [vmem:[%s12] sm:$0xff]
      %v3392 = vld [vmem:[%s12 + $0x8] sm:$0xff]
      %v3393 = vld [vmem:[%s12 + $0x10] sm:$0xff]
      %v3394 = vld [vmem:[%s12 + $0x18] sm:$0xff]
      %v3395 = vld [vmem:[%s12 + $0x20] sm:$0xff]
      %v3396 = vld [vmem:[%s12 + $0x28] sm:$0xff]
      %v3397 = vld [vmem:[%s12 + $0x30] sm:$0xff]
      %v3398 = vld [vmem:[%s12 + $0x38] sm:$0xff]
      %v3399 = vld [vmem:[%s12 + $0x40] sm:$0xff]
      %v3400 = vld [vmem:[%s12 + $0x48] sm:$0xff]
      %v3401 = vld [vmem:[%s12 + $0x50] sm:$0xff]
      %v3402 = vld [vmem:[%s12 + $0x58] sm:$0xff]
      %v3403 = vld [vmem:[%s12 + $0x60] sm:$0xff]
      %v3404 = vld [vmem:[%s12 + $0x68] sm:$0xff]
      %v3405 = vld [vmem:[%s12 + $0x70] sm:$0xff]
      %v3406 = vld [vmem:[%s12 + $0x78] sm:$0xff]
      %v3407 = vld [vmem:[%s12 + $0x80] sm:$0xff]
      %v3408 = vld [vmem:[%s12 + $0x88] sm:$0xff]
      %v3409 = vld [vmem:[%s12 + $0x90] sm:$0xff]
      %v3410 = vld [vmem:[%s12 + $0x98] sm:$0xff]
      %v3411 = vld [vmem:[%s12 + $0xa0] sm:$0xff]
      %v3412 = vld [vmem:[%s12 + $0xa8] sm:$0xff]
      %v3413 = vld [vmem:[%s12 + $0xb0] sm:$0xff]
      %v3414 = vld [vmem:[%s12 + $0xb8] sm:$0xff]
      %v3415 = vld [vmem:[%s12 + $0xc0] sm:$0xff]
      %v3416 = vld [vmem:[%s12 + $0xc8] sm:$0xff]
      %v3417 = vld [vmem:[%s12 + $0xd0] sm:$0xff]
      %v3418 = vld [vmem:[%s12 + $0xd8] sm:$0xff]
      %v3419 = vld [vmem:[%s12 + $0xe0] sm:$0xff]
      %v3420 = vld [vmem:[%s12 + $0xe8] sm:$0xff]
      %v3421 = vld [vmem:[%s12 + $0xf0] sm:$0xff]
      %v3422 = vld [vmem:[%s12 + $0xf8] sm:$0xff]
      %v3423 = vld [vmem:[%s12 + $0x100] sm:$0xff]
      %v3424 = vld [vmem:[%s12 + $0x108] sm:$0xff]
      %v3425 = vld [vmem:[%s12 + $0x110] sm:$0xff]
      %v3426 = vld [vmem:[%s12 + $0x118] sm:$0xff]
      %v3427 = vld [vmem:[%s12 + $0x120] sm:$0xff]
      %v3428 = vld [vmem:[%s12 + $0x128] sm:$0xff]
      %v3429 = vld [vmem:[%s12 + $0x130] sm:$0xff]
      %v3430 = vld [vmem:[%s12 + $0x138] sm:$0xff]
      %v3431 = vld [vmem:[%s12 + $0x140] sm:$0xff]
      %v3432 = vld [vmem:[%s12 + $0x148] sm:$0xff]
      %v3433 = vld [vmem:[%s12 + $0x150] sm:$0xff]
      %v3434 = vld [vmem:[%s12 + $0x158] sm:$0xff]
      %v3435 = vld [vmem:[%s12 + $0x160] sm:$0xff]
      %v3436 = vld [vmem:[%s12 + $0x168] sm:$0xff]
      %v3437 = vld [vmem:[%s12 + $0x170] sm:$0xff]
      %v3438 = vld [vmem:[%s12 + $0x178] sm:$0xff]
      %v3439 = vld [vmem:[%s12 + $0x180] sm:$0xff]
      %v3440 = vld [vmem:[%s12 + $0x188] sm:$0xff]
      %v3441 = vld [vmem:[%s12 + $0x190] sm:$0xff]
      %v3442 = vld [vmem:[%s12 + $0x198] sm:$0xff]
      %v3443 = vld [vmem:[%s12 + $0x1a0] sm:$0xff]
      %v3444 = vld [vmem:[%s12 + $0x1a8] sm:$0xff]
      %v3446 = vsel %vm551, %v3391, 0
      %v3449 = vsel %vm551, %v3392, 0
      %v3452 = vsel %vm551, %v3393, 0
      %v3455 = vsel %vm551, %v3394, 0
      %v3458 = vsel %vm551, %v3395, 0
      %v3461 = vsel %vm551, %v3396, 0
      %v3464 = vsel %vm551, %v3397, 0
      %v3467 = vsel %vm551, %v3398, 0
      %v3470 = vsel %vm551, %v3399, 0
      %v3473 = vsel %vm551, %v3400, 0
      %v3476 = vsel %vm551, %v3401, 0
      %v3479 = vsel %vm551, %v3402, 0
      %v3482 = vsel %vm551, %v3403, 0
      %v3485 = vsel %vm551, %v3404, 0
      %v3488 = vsel %vm551, %v3405, 0
      %v3491 = vsel %vm551, %v3406, 0
      %v3494 = vsel %vm551, %v3407, 0
      %v3497 = vsel %vm551, %v3408, 0
      %v3500 = vsel %vm551, %v3409, 0
      %v3503 = vsel %vm551, %v3410, 0
      %v3506 = vsel %vm551, %v3411, 0
      %v3509 = vsel %vm551, %v3412, 0
      %v3512 = vsel %vm551, %v3413, 0
      %v3515 = vsel %vm551, %v3414, 0
      %v3518 = vsel %vm551, %v3415, 0
      %v3521 = vsel %vm551, %v3416, 0
      %v3524 = vsel %vm551, %v3417, 0
      %v3527 = vsel %vm551, %v3418, 0
      %v3530 = vsel %vm551, %v3419, 0
      %v3533 = vsel %vm551, %v3420, 0
      %v3536 = vsel %vm551, %v3421, 0
      %v3539 = vsel %vm551, %v3422, 0
      %v3542 = vsel %vm551, %v3423, 0
      %v3545 = vsel %vm551, %v3424, 0
      %v3548 = vsel %vm551, %v3425, 0
      %v3551 = vsel %vm551, %v3426, 0
      %v3554 = vsel %vm551, %v3427, 0
      %v3557 = vsel %vm551, %v3428, 0
      %v3560 = vsel %vm551, %v3429, 0
      %v3563 = vsel %vm551, %v3430, 0
      %v3566 = vsel %vm551, %v3431, 0
      %v3569 = vsel %vm551, %v3432, 0
      %v3572 = vsel %vm551, %v3433, 0
      %v3575 = vsel %vm551, %v3434, 0
      %v3578 = vsel %vm551, %v3435, 0
      %v3581 = vsel %vm551, %v3436, 0
      %v3584 = vsel %vm551, %v3437, 0
      %v3587 = vsel %vm551, %v3438, 0
      %v3590 = vsel %vm551, %v3439, 0
      %v3593 = vsel %vm551, %v3440, 0
      %v3596 = vsel %vm551, %v3441, 0
      %v3599 = vsel %vm551, %v3442, 0
      %v3602 = vsel %vm551, %v3443, 0
      %v3605 = vsel %vm551, %v3444, 0
      %3607 = vmatprep.subr.mxu0 0.0
      %3608 = vmatpush1.msra.mxu0 %v3330
      %3609 = vmatprep.subr.mxu0 0.0
      %3610 = vmatpush1.msra.mxu0 %v3331
      %3611 = vmatprep.subr.mxu0 0.0
      %3612 = vmatpush1.msra.mxu0 %v3332
      %3613 = vmatprep.subr.mxu0 0.0
      %3614 = vmatpush1.msra.mxu0 %v3333
      %3615 = vmatprep.subr.mxu0 0.0
      %3616 = vmatpush1.msra.mxu0 %v3334
      %3617 = vmatprep.subr.mxu0 0.0
      %3618 = vmatpush1.msra.mxu0 %v3335
      %3619 = vmatprep.subr.mxu0 0.0
      %3620 = vmatpush1.msra.mxu0 %v3336
      %3621 = vmatprep.subr.mxu0 0.0
      %3622 = vmatpush1.msra.mxu0 0.0
      %3623 = vmatprep.subr.mxu0 0.0
      %3624 = vmatpush1.msra.mxu0 0.0
      %3625 = vmatprep.subr.mxu0 0.0
      %3626 = vmatpush1.msra.mxu0 0.0
      %3627 = vmatprep.subr.mxu0 0.0
      %3628 = vmatpush1.msra.mxu0 0.0
      %3629 = vmatprep.subr.mxu0 0.0
      %3630 = vmatpush1.msra.mxu0 0.0
      %3631 = vmatprep.subr.mxu0 0.0
      %3632 = vmatpush1.msra.mxu0 0.0
      %3633 = vmatprep.subr.mxu0 0.0
      %3634 = vmatpush1.msra.mxu0 0.0
      %3635 = vmatprep.subr.mxu0 0.0
      %3636 = vmatpush1.msra.mxu0 0.0
      %3637 = vmatprep.subr.mxu0 0.0
      %3638 = vmatpush1.msra.mxu0 0.0
      %3639 = vmatprep.subr.mxu0 0.0
      %3640 = vmatpush1.msra.mxu0 0.0
      %3641 = vmatprep.subr.mxu0 0.0
      %3642 = vmatpush1.msra.mxu0 0.0
      %3643 = vmatprep.subr.mxu0 0.0
      %3644 = vmatpush1.msra.mxu0 0.0
      %3645 = vmatprep.subr.mxu0 0.0
      %3646 = vmatpush1.msra.mxu0 0.0
      %3647 = vmatprep.subr.mxu0 0.0
      %3648 = vmatpush1.msra.mxu0 0.0
      %3649 = vmatprep.subr.mxu0 0.0
      %3650 = vmatpush1.msra.mxu0 0.0
      %3651 = vmatprep.subr.mxu0 0.0
      %3652 = vmatpush1.msra.mxu0 0.0
      %3653 = vmatprep.subr.mxu0 0.0
      %3654 = vmatpush1.msra.mxu0 0.0
      %3655 = vmatprep.subr.mxu0 0.0
      %3656 = vmatpush1.msra.mxu0 0.0
      %3657 = vmatprep.subr.mxu0 0.0
      %3658 = vmatpush1.msra.mxu0 0.0
      %3659 = vmatprep.subr.mxu0 0.0
      %3660 = vmatpush1.msra.mxu0 0.0
      %3661 = vmatprep.subr.mxu0 0.0
      %3662 = vmatpush1.msra.mxu0 0.0
      %3663 = vmatprep.subr.mxu0 0.0
      %3664 = vmatpush1.msra.mxu0 0.0
      %3665 = vmatprep.subr.mxu0 0.0
      %3666 = vmatpush1.msra.mxu0 0.0
      %3667 = vmatprep.subr.mxu0 0.0
      %3668 = vmatpush1.msra.mxu0 0.0
      %3669 = vmatprep.subr.mxu0 0.0
      %3670 = vmatpush1.msra.mxu0 0.0
      %3671 = vmatprep.mubr.f32.mxu0 0.0
      %3672 = vmatmul.mubr.f32.gmra.mrb[0].mxu0 %v3446
      %v3673 = vpop.f32.mrb[0].mxu0
      %v3674 = vadd.f32 0.0, %v3673
      %v3675 = vpop.f32.mrb[0].mxu0
      %3676 = vmatprep.mubr.f32.mxu0 0.0
      %3677 = vmatmul.mubr.f32.gmra.mrb[0].mxu0 %v3449
      %v3678 = vpop.f32.mrb[0].mxu0
      %v3679 = vadd.f32 0.0, %v3678
      %v3680 = vpop.f32.mrb[0].mxu0
      %3681 = vmatprep.mubr.f32.mxu0 0.0
      %3682 = vmatmul.mubr.f32.gmra.mrb[0].mxu0 %v3452
      %v3683 = vpop.f32.mrb[0].mxu0
      %v3684 = vadd.f32 0.0, %v3683
      %v3685 = vpop.f32.mrb[0].mxu0
      %3686 = vmatprep.mubr.f32.mxu0 0.0
      %3687 = vmatmul.mubr.f32.gmra.mrb[0].mxu0 %v3455
      %v3688 = vpop.f32.mrb[0].mxu0
      %v3689 = vadd.f32 0.0, %v3688
      %v3690 = vpop.f32.mrb[0].mxu0
      %3691 = vmatprep.mubr.f32.mxu0 0.0
      %3692 = vmatmul.mubr.f32.gmra.mrb[0].mxu0 %v3458
      %v3693 = vpop.f32.mrb[0].mxu0
      %v3694 = vadd.f32 0.0, %v3693
      %v3695 = vpop.f32.mrb[0].mxu0
      %3696 = vmatprep.mubr.f32.mxu0 0.0
      %3697 = vmatmul.mubr.f32.gmra.mrb[0].mxu0 %v3461
      %v3698 = vpop.f32.mrb[0].mxu0
      %v3699 = vadd.f32 0.0, %v3698
      %v3700 = vpop.f32.mrb[0].mxu0
      %3701 = vmatprep.mubr.f32.mxu0 0.0
      %3702 = vmatmul.mubr.f32.gmra.mrb[0].mxu0 %v3464
      %v3703 = vpop.f32.mrb[0].mxu0
      %v3704 = vadd.f32 0.0, %v3703
      %v3705 = vpop.f32.mrb[0].mxu0
      %3706 = vmatprep.mubr.f32.mxu0 0.0
      %3707 = vmatmul.mubr.f32.gmra.mrb[0].mxu0 %v3467
      %v3708 = vpop.f32.mrb[0].mxu0
      %v3709 = vadd.f32 0.0, %v3708
      %v3710 = vpop.f32.mrb[0].mxu0
      %3711 = vmatprep.mubr.f32.mxu0 0.0
      %3712 = vmatmul.mubr.f32.gmra.mrb[0].mxu0 %v3470
      %v3713 = vpop.f32.mrb[0].mxu0
      %v3714 = vadd.f32 0.0, %v3713
      %v3715 = vpop.f32.mrb[0].mxu0
      %3716 = vmatprep.mubr.f32.mxu0 0.0
      %3717 = vmatmul.mubr.f32.gmra.mrb[0].mxu0 %v3473
      %v3718 = vpop.f32.mrb[0].mxu0
      %v3719 = vadd.f32 0.0, %v3718
      %v3720 = vpop.f32.mrb[0].mxu0
      %3721 = vmatprep.mubr.f32.mxu0 0.0
      %3722 = vmatmul.mubr.f32.gmra.mrb[0].mxu0 %v3476
      %v3723 = vpop.f32.mrb[0].mxu0
      %v3724 = vadd.f32 0.0, %v3723
      %v3725 = vpop.f32.mrb[0].mxu0
      %3726 = vmatprep.mubr.f32.mxu0 0.0
      %3727 = vmatmul.mubr.f32.gmra.mrb[0].mxu0 %v3479
      %v3728 = vpop.f32.mrb[0].mxu0
      %v3729 = vadd.f32 0.0, %v3728
      %v3730 = vpop.f32.mrb[0].mxu0
      %3731 = vmatprep.mubr.f32.mxu0 0.0
      %3732 = vmatmul.mubr.f32.gmra.mrb[0].mxu0 %v3482
      %v3733 = vpop.f32.mrb[0].mxu0
      %v3734 = vadd.f32 0.0, %v3733
      %v3735 = vpop.f32.mrb[0].mxu0
      %3736 = vmatprep.mubr.f32.mxu0 0.0
      %3737 = vmatmul.mubr.f32.gmra.mrb[0].mxu0 %v3485
      %v3738 = vpop.f32.mrb[0].mxu0
      %v3739 = vadd.f32 0.0, %v3738
      %v3740 = vpop.f32.mrb[0].mxu0
      %3741 = vmatprep.mubr.f32.mxu0 0.0
      %3742 = vmatmul.mubr.f32.gmra.mrb[0].mxu0 %v3488
      %v3743 = vpop.f32.mrb[0].mxu0
      %v3744 = vadd.f32 0.0, %v3743
      %v3745 = vpop.f32.mrb[0].mxu0
      %3746 = vmatprep.mubr.f32.mxu0 0.0
      %3747 = vmatmul.mubr.f32.gmra.mrb[0].mxu0 %v3491
      %v3748 = vpop.f32.mrb[0].mxu0
      %v3749 = vadd.f32 0.0, %v3748
      %v3750 = vpop.f32.mrb[0].mxu0
      %3751 = vmatprep.mubr.f32.mxu0 0.0
      %3752 = vmatmul.mubr.f32.gmra.mrb[0].mxu0 %v3494
      %v3753 = vpop.f32.mrb[0].mxu0
      %v3754 = vadd.f32 0.0, %v3753
      %v3755 = vpop.f32.mrb[0].mxu0
      %3756 = vmatprep.mubr.f32.mxu0 0.0
      %3757 = vmatmul.mubr.f32.gmra.mrb[0].mxu0 %v3497
      %v3758 = vpop.f32.mrb[0].mxu0
      %v3759 = vadd.f32 0.0, %v3758
      %v3760 = vpop.f32.mrb[0].mxu0
      %3761 = vmatprep.mubr.f32.mxu0 0.0
      %3762 = vmatmul.mubr.f32.gmra.mrb[0].mxu0 %v3500
      %v3763 = vpop.f32.mrb[0].mxu0
      %v3764 = vadd.f32 0.0, %v3763
      %v3765 = vpop.f32.mrb[0].mxu0
      %3766 = vmatprep.mubr.f32.mxu0 0.0
      %3767 = vmatmul.mubr.f32.gmra.mrb[0].mxu0 %v3503
      %v3768 = vpop.f32.mrb[0].mxu0
      %v3769 = vadd.f32 0.0, %v3768
      %v3770 = vpop.f32.mrb[0].mxu0
      %3771 = vmatprep.mubr.f32.mxu0 0.0
      %3772 = vmatmul.mubr.f32.gmra.mrb[0].mxu0 %v3506
      %v3773 = vpop.f32.mrb[0].mxu0
      %v3774 = vadd.f32 0.0, %v3773
      %v3775 = vpop.f32.mrb[0].mxu0
      %3776 = vmatprep.mubr.f32.mxu0 0.0
      %3777 = vmatmul.mubr.f32.gmra.mrb[0].mxu0 %v3509
      %v3778 = vpop.f32.mrb[0].mxu0
      %v3779 = vadd.f32 0.0, %v3778
      %v3780 = vpop.f32.mrb[0].mxu0
      %3781 = vmatprep.mubr.f32.mxu0 0.0
      %3782 = vmatmul.mubr.f32.gmra.mrb[0].mxu0 %v3512
      %v3783 = vpop.f32.mrb[0].mxu0
      %v3784 = vadd.f32 0.0, %v3783
      %v3785 = vpop.f32.mrb[0].mxu0
      %3786 = vmatprep.mubr.f32.mxu0 0.0
      %3787 = vmatmul.mubr.f32.gmra.mrb[0].mxu0 %v3515
      %v3788 = vpop.f32.mrb[0].mxu0
      %v3789 = vadd.f32 0.0, %v3788
      %v3790 = vpop.f32.mrb[0].mxu0
      %3791 = vmatprep.mubr.f32.mxu0 0.0
      %3792 = vmatmul.mubr.f32.gmra.mrb[0].mxu0 %v3518
      %v3793 = vpop.f32.mrb[0].mxu0
      %v3794 = vadd.f32 0.0, %v3793
      %v3795 = vpop.f32.mrb[0].mxu0
      %3796 = vmatprep.mubr.f32.mxu0 0.0
      %3797 = vmatmul.mubr.f32.gmra.mrb[0].mxu0 %v3521
      %v3798 = vpop.f32.mrb[0].mxu0
      %v3799 = vadd.f32 0.0, %v3798
      %v3800 = vpop.f32.mrb[0].mxu0
      %3801 = vmatprep.mubr.f32.mxu0 0.0
      %3802 = vmatmul.mubr.f32.gmra.mrb[0].mxu0 %v3524
      %v3803 = vpop.f32.mrb[0].mxu0
      %v3804 = vadd.f32 0.0, %v3803
      %v3805 = vpop.f32.mrb[0].mxu0
      %3806 = vmatprep.mubr.f32.mxu0 0.0
      %3807 = vmatmul.mubr.f32.gmra.mrb[0].mxu0 %v3527
      %v3808 = vpop.f32.mrb[0].mxu0
      %v3809 = vadd.f32 0.0, %v3808
      %v3810 = vpop.f32.mrb[0].mxu0
      %3811 = vmatprep.mubr.f32.mxu0 0.0
      %3812 = vmatmul.mubr.f32.gmra.mrb[0].mxu0 %v3530
      %v3813 = vpop.f32.mrb[0].mxu0
      %v3814 = vadd.f32 0.0, %v3813
      %v3815 = vpop.f32.mrb[0].mxu0
      %3816 = vmatprep.mubr.f32.mxu0 0.0
      %3817 = vmatmul.mubr.f32.gmra.mrb[0].mxu0 %v3533
      %v3818 = vpop.f32.mrb[0].mxu0
      %v3819 = vadd.f32 0.0, %v3818
      %v3820 = vpop.f32.mrb[0].mxu0
      %3821 = vmatprep.mubr.f32.mxu0 0.0
      %3822 = vmatmul.mubr.f32.gmra.mrb[0].mxu0 %v3536
      %v3823 = vpop.f32.mrb[0].mxu0
      %v3824 = vadd.f32 0.0, %v3823
      %v3825 = vpop.f32.mrb[0].mxu0
      %3826 = vmatprep.mubr.f32.mxu0 0.0
      %3827 = vmatmul.mubr.f32.gmra.mrb[0].mxu0 %v3539
      %v3828 = vpop.f32.mrb[0].mxu0
      %v3829 = vadd.f32 0.0, %v3828
      %v3830 = vpop.f32.mrb[0].mxu0
      %3831 = vmatprep.mubr.f32.mxu0 0.0
      %3832 = vmatmul.mubr.f32.gmra.mrb[0].mxu0 %v3542
      %v3833 = vpop.f32.mrb[0].mxu0
      %v3834 = vadd.f32 0.0, %v3833
      %v3835 = vpop.f32.mrb[0].mxu0
      %3836 = vmatprep.mubr.f32.mxu0 0.0
      %3837 = vmatmul.mubr.f32.gmra.mrb[0].mxu0 %v3545
      %v3838 = vpop.f32.mrb[0].mxu0
      %v3839 = vadd.f32 0.0, %v3838
      %v3840 = vpop.f32.mrb[0].mxu0
      %3841 = vmatprep.mubr.f32.mxu0 0.0
      %3842 = vmatmul.mubr.f32.gmra.mrb[0].mxu0 %v3548
      %v3843 = vpop.f32.mrb[0].mxu0
      %v3844 = vadd.f32 0.0, %v3843
      %v3845 = vpop.f32.mrb[0].mxu0
      %3846 = vmatprep.mubr.f32.mxu0 0.0
      %3847 = vmatmul.mubr.f32.gmra.mrb[0].mxu0 %v3551
      %v3848 = vpop.f32.mrb[0].mxu0
      %v3849 = vadd.f32 0.0, %v3848
      %v3850 = vpop.f32.mrb[0].mxu0
      %3851 = vmatprep.mubr.f32.mxu0 0.0
      %3852 = vmatmul.mubr.f32.gmra.mrb[0].mxu0 %v3554
      %v3853 = vpop.f32.mrb[0].mxu0
      %v3854 = vadd.f32 0.0, %v3853
      %v3855 = vpop.f32.mrb[0].mxu0
      %3856 = vmatprep.mubr.f32.mxu0 0.0
      %3857 = vmatmul.mubr.f32.gmra.mrb[0].mxu0 %v3557
      %v3858 = vpop.f32.mrb[0].mxu0
      %v3859 = vadd.f32 0.0, %v3858
      %v3860 = vpop.f32.mrb[0].mxu0
      %3861 = vmatprep.mubr.f32.mxu0 0.0
      %3862 = vmatmul.mubr.f32.gmra.mrb[0].mxu0 %v3560
      %v3863 = vpop.f32.mrb[0].mxu0
      %v3864 = vadd.f32 0.0, %v3863
      %v3865 = vpop.f32.mrb[0].mxu0
      %3866 = vmatprep.mubr.f32.mxu0 0.0
      %3867 = vmatmul.mubr.f32.gmra.mrb[0].mxu0 %v3563
      %v3868 = vpop.f32.mrb[0].mxu0
      %v3869 = vadd.f32 0.0, %v3868
      %v3870 = vpop.f32.mrb[0].mxu0
      %3871 = vmatprep.mubr.f32.mxu0 0.0
      %3872 = vmatmul.mubr.f32.gmra.mrb[0].mxu0 %v3566
      %v3873 = vpop.f32.mrb[0].mxu0
      %v3874 = vadd.f32 0.0, %v3873
      %v3875 = vpop.f32.mrb[0].mxu0
      %3876 = vmatprep.mubr.f32.mxu0 0.0
      %3877 = vmatmul.mubr.f32.gmra.mrb[0].mxu0 %v3569
      %v3878 = vpop.f32.mrb[0].mxu0
      %v3879 = vadd.f32 0.0, %v3878
      %v3880 = vpop.f32.mrb[0].mxu0
      %3881 = vmatprep.mubr.f32.mxu0 0.0
      %3882 = vmatmul.mubr.f32.gmra.mrb[0].mxu0 %v3572
      %v3883 = vpop.f32.mrb[0].mxu0
      %v3884 = vadd.f32 0.0, %v3883
      %v3885 = vpop.f32.mrb[0].mxu0
      %3886 = vmatprep.mubr.f32.mxu0 0.0
      %3887 = vmatmul.mubr.f32.gmra.mrb[0].mxu0 %v3575
      %v3888 = vpop.f32.mrb[0].mxu0
      %v3889 = vadd.f32 0.0, %v3888
      %v3890 = vpop.f32.mrb[0].mxu0
      %3891 = vmatprep.mubr.f32.mxu0 0.0
      %3892 = vmatmul.mubr.f32.gmra.mrb[0].mxu0 %v3578
      %v3893 = vpop.f32.mrb[0].mxu0
      %v3894 = vadd.f32 0.0, %v3893
      %v3895 = vpop.f32.mrb[0].mxu0
      %3896 = vmatprep.mubr.f32.mxu0 0.0
      %3897 = vmatmul.mubr.f32.gmra.mrb[0].mxu0 %v3581
      %v3898 = vpop.f32.mrb[0].mxu0
      %v3899 = vadd.f32 0.0, %v3898
      %v3900 = vpop.f32.mrb[0].mxu0
      %3901 = vmatprep.mubr.f32.mxu0 0.0
      %3902 = vmatmul.mubr.f32.gmra.mrb[0].mxu0 %v3584
      %v3903 = vpop.f32.mrb[0].mxu0
      %v3904 = vadd.f32 0.0, %v3903
      %v3905 = vpop.f32.mrb[0].mxu0
      %3906 = vmatprep.mubr.f32.mxu0 0.0
      %3907 = vmatmul.mubr.f32.gmra.mrb[0].mxu0 %v3587
      %v3908 = vpop.f32.mrb[0].mxu0
      %v3909 = vadd.f32 0.0, %v3908
      %v3910 = vpop.f32.mrb[0].mxu0
      %3911 = vmatprep.mubr.f32.mxu0 0.0
      %3912 = vmatmul.mubr.f32.gmra.mrb[0].mxu0 %v3590
      %v3913 = vpop.f32.mrb[0].mxu0
      %v3914 = vadd.f32 0.0, %v3913
      %v3915 = vpop.f32.mrb[0].mxu0
      %3916 = vmatprep.mubr.f32.mxu0 0.0
      %3917 = vmatmul.mubr.f32.gmra.mrb[0].mxu0 %v3593
      %v3918 = vpop.f32.mrb[0].mxu0
      %v3919 = vadd.f32 0.0, %v3918
      %v3920 = vpop.f32.mrb[0].mxu0
      %3921 = vmatprep.mubr.f32.mxu0 0.0
      %3922 = vmatmul.mubr.f32.gmra.mrb[0].mxu0 %v3596
      %v3923 = vpop.f32.mrb[0].mxu0
      %v3924 = vadd.f32 0.0, %v3923
      %v3925 = vpop.f32.mrb[0].mxu0
      %3926 = vmatprep.mubr.f32.mxu0 0.0
      %3927 = vmatmul.mubr.f32.gmra.mrb[0].mxu0 %v3599
      %v3928 = vpop.f32.mrb[0].mxu0
      %v3929 = vadd.f32 0.0, %v3928
      %v3930 = vpop.f32.mrb[0].mxu0
      %3931 = vmatprep.mubr.f32.mxu0 0.0
      %3932 = vmatmul.mubr.f32.gmra.mrb[0].mxu0 %v3602
      %v3933 = vpop.f32.mrb[0].mxu0
      %v3934 = vadd.f32 0.0, %v3933
      %v3935 = vpop.f32.mrb[0].mxu0
      %3936 = vmatprep.mubr.f32.mxu0 0.0
      %3937 = vmatmul.mubr.f32.gmra.mrb[0].mxu0 %v3605
      %v3938 = vpop.f32.mrb[0].mxu0
      %v3939 = vadd.f32 0.0, %v3938
      %v3940 = vpop.f32.mrb[0].mxu0
      %3941 = vdwg.mxu0
      %v3942 = vld [vmem:[%s13] sm:$0xff]
      %v3943 = vld [vmem:[%s13 + $0x8] sm:$0x3f]
      %v3945 = vsel %vm2203, %v3674, 0
      %v3948 = vsel %vm2203, %v3679, 0
      %v3951 = vsel %vm2203, %v3684, 0
      %v3954 = vsel %vm2203, %v3689, 0
      %v3957 = vsel %vm2203, %v3694, 0
      %v3960 = vsel %vm2203, %v3699, 0
      %v3963 = vsel %vm2203, %v3704, 0
      %v3966 = vsel %vm2203, %v3709, 0
      %v3969 = vsel %vm2203, %v3714, 0
      %v3972 = vsel %vm2203, %v3719, 0
      %v3975 = vsel %vm2203, %v3724, 0
      %v3978 = vsel %vm2203, %v3729, 0
      %v3981 = vsel %vm2203, %v3734, 0
      %v3984 = vsel %vm2203, %v3739, 0
      %v3987 = vsel %vm2203, %v3744, 0
      %v3990 = vsel %vm2203, %v3749, 0
      %v3993 = vsel %vm2203, %v3754, 0
      %v3996 = vsel %vm2203, %v3759, 0
      %v3999 = vsel %vm2203, %v3764, 0
      %v4002 = vsel %vm2203, %v3769, 0
      %v4005 = vsel %vm2203, %v3774, 0
      %v4008 = vsel %vm2203, %v3779, 0
      %v4011 = vsel %vm2203, %v3784, 0
      %v4014 = vsel %vm2203, %v3789, 0
      %v4017 = vsel %vm2203, %v3794, 0
      %v4020 = vsel %vm2203, %v3799, 0
      %v4023 = vsel %vm2203, %v3804, 0
      %v4026 = vsel %vm2203, %v3809, 0
      %v4029 = vsel %vm2203, %v3814, 0
      %v4032 = vsel %vm2203, %v3819, 0
      %v4035 = vsel %vm2203, %v3824, 0
      %v4038 = vsel %vm2203, %v3829, 0
      %v4041 = vsel %vm2203, %v3834, 0
      %v4044 = vsel %vm2203, %v3839, 0
      %v4047 = vsel %vm2203, %v3844, 0
      %v4050 = vsel %vm2203, %v3849, 0
      %v4053 = vsel %vm2203, %v3854, 0
      %v4056 = vsel %vm2203, %v3859, 0
      %v4059 = vsel %vm2203, %v3864, 0
      %v4062 = vsel %vm2203, %v3869, 0
      %v4065 = vsel %vm2203, %v3874, 0
      %v4068 = vsel %vm2203, %v3879, 0
      %v4071 = vsel %vm2203, %v3884, 0
      %v4074 = vsel %vm2203, %v3889, 0
      %v4077 = vsel %vm2203, %v3894, 0
      %v4080 = vsel %vm2203, %v3899, 0
      %v4083 = vsel %vm2203, %v3904, 0
      %v4086 = vsel %vm2203, %v3909, 0
      %v4089 = vsel %vm2203, %v3914, 0
      %v4092 = vsel %vm2203, %v3919, 0
      %v4095 = vsel %vm2203, %v3924, 0
      %v4098 = vsel %vm2203, %v3929, 0
      %v4101 = vsel %vm2203, %v3934, 0
      %v4104 = vsel %vm2203, %v3939, 0
      %v4107 = vsel %vm2228, %v3943, 0
      %4109 = vmatprep.subr.mxu0 0.0
      %4110 = vmatpush1.msra.mxu0 %v3942
      %4111 = vmatprep.subr.mxu0 0.0
      %4112 = vmatpush1.msra.mxu0 %v4107
      %4113 = vmatprep.subr.mxu0 0.0
      %4114 = vmatpush1.msra.mxu0 0.0
      %4115 = vmatprep.subr.mxu0 0.0
      %4116 = vmatpush1.msra.mxu0 0.0
      %4117 = vmatprep.subr.mxu0 0.0
      %4118 = vmatpush1.msra.mxu0 0.0
      %4119 = vmatprep.subr.mxu0 0.0
      %4120 = vmatpush1.msra.mxu0 0.0
      %4121 = vmatprep.subr.mxu0 0.0
      %4122 = vmatpush1.msra.mxu0 0.0
      %4123 = vmatprep.subr.mxu0 0.0
      %4124 = vmatpush1.msra.mxu0 0.0
      %4125 = vmatprep.subr.mxu0 0.0
      %4126 = vmatpush1.msra.mxu0 0.0
      %4127 = vmatprep.subr.mxu0 0.0
      %4128 = vmatpush1.msra.mxu0 0.0
      %4129 = vmatprep.subr.mxu0 0.0
      %4130 = vmatpush1.msra.mxu0 0.0
      %4131 = vmatprep.subr.mxu0 0.0
      %4132 = vmatpush1.msra.mxu0 0.0
      %4133 = vmatprep.subr.mxu0 0.0
      %4134 = vmatpush1.msra.mxu0 0.0
      %4135 = vmatprep.subr.mxu0 0.0
      %4136 = vmatpush1.msra.mxu0 0.0
      %4137 = vmatprep.subr.mxu0 0.0
      %4138 = vmatpush1.msra.mxu0 0.0
      %4139 = vmatprep.subr.mxu0 0.0
      %4140 = vmatpush1.msra.mxu0 0.0
      %4141 = vmatprep.subr.mxu0 0.0
      %4142 = vmatpush1.msra.mxu0 0.0
      %4143 = vmatprep.subr.mxu0 0.0
      %4144 = vmatpush1.msra.mxu0 0.0
      %4145 = vmatprep.subr.mxu0 0.0
      %4146 = vmatpush1.msra.mxu0 0.0
      %4147 = vmatprep.subr.mxu0 0.0
      %4148 = vmatpush1.msra.mxu0 0.0
      %4149 = vmatprep.subr.mxu0 0.0
      %4150 = vmatpush1.msra.mxu0 0.0
      %4151 = vmatprep.subr.mxu0 0.0
      %4152 = vmatpush1.msra.mxu0 0.0
      %4153 = vmatprep.subr.mxu0 0.0
      %4154 = vmatpush1.msra.mxu0 0.0
      %4155 = vmatprep.subr.mxu0 0.0
      %4156 = vmatpush1.msra.mxu0 0.0
      %4157 = vmatprep.subr.mxu0 0.0
      %4158 = vmatpush1.msra.mxu0 0.0
      %4159 = vmatprep.subr.mxu0 0.0
      %4160 = vmatpush1.msra.mxu0 0.0
      %4161 = vmatprep.subr.mxu0 0.0
      %4162 = vmatpush1.msra.mxu0 0.0
      %4163 = vmatprep.subr.mxu0 0.0
      %4164 = vmatpush1.msra.mxu0 0.0
      %4165 = vmatprep.subr.mxu0 0.0
      %4166 = vmatpush1.msra.mxu0 0.0
      %4167 = vmatprep.subr.mxu0 0.0
      %4168 = vmatpush1.msra.mxu0 0.0
      %4169 = vmatprep.subr.mxu0 0.0
      %4170 = vmatpush1.msra.mxu0 0.0
      %4171 = vmatprep.subr.mxu0 0.0
      %4172 = vmatpush1.msra.mxu0 0.0
      %4173 = vmatprep.mubr.f32.mxu0 0.0
      %4174 = vmatmul.mubr.f32.gmra.mrb[0].mxu0 %v3945
      %v4175 = vpop.f32.mrb[0].mxu0
      %v4176 = vadd.f32 0.0, %v4175
      %v4177 = vpop.f32.mrb[0].mxu0
      %4178 = vmatprep.mubr.f32.mxu0 0.0
      %4179 = vmatmul.mubr.f32.gmra.mrb[0].mxu0 %v3948
      %v4180 = vpop.f32.mrb[0].mxu0
      %v4181 = vadd.f32 0.0, %v4180
      %v4182 = vpop.f32.mrb[0].mxu0
      %4183 = vmatprep.mubr.f32.mxu0 0.0
      %4184 = vmatmul.mubr.f32.gmra.mrb[0].mxu0 %v3951
      %v4185 = vpop.f32.mrb[0].mxu0
      %v4186 = vadd.f32 0.0, %v4185
      %v4187 = vpop.f32.mrb[0].mxu0
      %4188 = vmatprep.mubr.f32.mxu0 0.0
      %4189 = vmatmul.mubr.f32.gmra.mrb[0].mxu0 %v3954
      %v4190 = vpop.f32.mrb[0].mxu0
      %v4191 = vadd.f32 0.0, %v4190
      %v4192 = vpop.f32.mrb[0].mxu0
      %4193 = vmatprep.mubr.f32.mxu0 0.0
      %4194 = vmatmul.mubr.f32.gmra.mrb[0].mxu0 %v3957
      %v4195 = vpop.f32.mrb[0].mxu0
      %v4196 = vadd.f32 0.0, %v4195
      %v4197 = vpop.f32.mrb[0].mxu0
      %4198 = vmatprep.mubr.f32.mxu0 0.0
      %4199 = vmatmul.mubr.f32.gmra.mrb[0].mxu0 %v3960
      %v4200 = vpop.f32.mrb[0].mxu0
      %v4201 = vadd.f32 0.0, %v4200
      %v4202 = vpop.f32.mrb[0].mxu0
      %4203 = vmatprep.mubr.f32.mxu0 0.0
      %4204 = vmatmul.mubr.f32.gmra.mrb[0].mxu0 %v3963
      %v4205 = vpop.f32.mrb[0].mxu0
      %v4206 = vadd.f32 0.0, %v4205
      %v4207 = vpop.f32.mrb[0].mxu0
      %4208 = vmatprep.mubr.f32.mxu0 0.0
      %4209 = vmatmul.mubr.f32.gmra.mrb[0].mxu0 %v3966
      %v4210 = vpop.f32.mrb[0].mxu0
      %v4211 = vadd.f32 0.0, %v4210
      %v4212 = vpop.f32.mrb[0].mxu0
      %4213 = vmatprep.mubr.f32.mxu0 0.0
      %4214 = vmatmul.mubr.f32.gmra.mrb[0].mxu0 %v3969
      %v4215 = vpop.f32.mrb[0].mxu0
      %v4216 = vadd.f32 0.0, %v4215
      %v4217 = vpop.f32.mrb[0].mxu0
      %4218 = vmatprep.mubr.f32.mxu0 0.0
      %4219 = vmatmul.mubr.f32.gmra.mrb[0].mxu0 %v3972
      %v4220 = vpop.f32.mrb[0].mxu0
      %v4221 = vadd.f32 0.0, %v4220
      %v4222 = vpop.f32.mrb[0].mxu0
      %4223 = vmatprep.mubr.f32.mxu0 0.0
      %4224 = vmatmul.mubr.f32.gmra.mrb[0].mxu0 %v3975
      %v4225 = vpop.f32.mrb[0].mxu0
      %v4226 = vadd.f32 0.0, %v4225
      %v4227 = vpop.f32.mrb[0].mxu0
      %4228 = vmatprep.mubr.f32.mxu0 0.0
      %4229 = vmatmul.mubr.f32.gmra.mrb[0].mxu0 %v3978
      %v4230 = vpop.f32.mrb[0].mxu0
      %v4231 = vadd.f32 0.0, %v4230
      %v4232 = vpop.f32.mrb[0].mxu0
      %4233 = vmatprep.mubr.f32.mxu0 0.0
      %4234 = vmatmul.mubr.f32.gmra.mrb[0].mxu0 %v3981
      %v4235 = vpop.f32.mrb[0].mxu0
      %v4236 = vadd.f32 0.0, %v4235
      %v4237 = vpop.f32.mrb[0].mxu0
      %4238 = vmatprep.mubr.f32.mxu0 0.0
      %4239 = vmatmul.mubr.f32.gmra.mrb[0].mxu0 %v3984
      %v4240 = vpop.f32.mrb[0].mxu0
      %v4241 = vadd.f32 0.0, %v4240
      %v4242 = vpop.f32.mrb[0].mxu0
      %4243 = vmatprep.mubr.f32.mxu0 0.0
      %4244 = vmatmul.mubr.f32.gmra.mrb[0].mxu0 %v3987
      %v4245 = vpop.f32.mrb[0].mxu0
      %v4246 = vadd.f32 0.0, %v4245
      %v4247 = vpop.f32.mrb[0].mxu0
      %4248 = vmatprep.mubr.f32.mxu0 0.0
      %4249 = vmatmul.mubr.f32.gmra.mrb[0].mxu0 %v3990
      %v4250 = vpop.f32.mrb[0].mxu0
      %v4251 = vadd.f32 0.0, %v4250
      %v4252 = vpop.f32.mrb[0].mxu0
      %4253 = vmatprep.mubr.f32.mxu0 0.0
      %4254 = vmatmul.mubr.f32.gmra.mrb[0].mxu0 %v3993
      %v4255 = vpop.f32.mrb[0].mxu0
      %v4256 = vadd.f32 0.0, %v4255
      %v4257 = vpop.f32.mrb[0].mxu0
      %4258 = vmatprep.mubr.f32.mxu0 0.0
      %4259 = vmatmul.mubr.f32.gmra.mrb[0].mxu0 %v3996
      %v4260 = vpop.f32.mrb[0].mxu0
      %v4261 = vadd.f32 0.0, %v4260
      %v4262 = vpop.f32.mrb[0].mxu0
      %4263 = vmatprep.mubr.f32.mxu0 0.0
      %4264 = vmatmul.mubr.f32.gmra.mrb[0].mxu0 %v3999
      %v4265 = vpop.f32.mrb[0].mxu0
      %v4266 = vadd.f32 0.0, %v4265
      %v4267 = vpop.f32.mrb[0].mxu0
      %4268 = vmatprep.mubr.f32.mxu0 0.0
      %4269 = vmatmul.mubr.f32.gmra.mrb[0].mxu0 %v4002
      %v4270 = vpop.f32.mrb[0].mxu0
      %v4271 = vadd.f32 0.0, %v4270
      %v4272 = vpop.f32.mrb[0].mxu0
      %4273 = vmatprep.mubr.f32.mxu0 0.0
      %4274 = vmatmul.mubr.f32.gmra.mrb[0].mxu0 %v4005
      %v4275 = vpop.f32.mrb[0].mxu0
      %v4276 = vadd.f32 0.0, %v4275
      %v4277 = vpop.f32.mrb[0].mxu0
      %4278 = vmatprep.mubr.f32.mxu0 0.0
      %4279 = vmatmul.mubr.f32.gmra.mrb[0].mxu0 %v4008
      %v4280 = vpop.f32.mrb[0].mxu0
      %v4281 = vadd.f32 0.0, %v4280
      %v4282 = vpop.f32.mrb[0].mxu0
      %4283 = vmatprep.mubr.f32.mxu0 0.0
      %4284 = vmatmul.mubr.f32.gmra.mrb[0].mxu0 %v4011
      %v4285 = vpop.f32.mrb[0].mxu0
      %v4286 = vadd.f32 0.0, %v4285
      %v4287 = vpop.f32.mrb[0].mxu0
      %4288 = vmatprep.mubr.f32.mxu0 0.0
      %4289 = vmatmul.mubr.f32.gmra.mrb[0].mxu0 %v4014
      %v4290 = vpop.f32.mrb[0].mxu0
      %v4291 = vadd.f32 0.0, %v4290
      %v4292 = vpop.f32.mrb[0].mxu0
      %4293 = vmatprep.mubr.f32.mxu0 0.0
      %4294 = vmatmul.mubr.f32.gmra.mrb[0].mxu0 %v4017
      %v4295 = vpop.f32.mrb[0].mxu0
      %v4296 = vadd.f32 0.0, %v4295
      %v4297 = vpop.f32.mrb[0].mxu0
      %4298 = vmatprep.mubr.f32.mxu0 0.0
      %4299 = vmatmul.mubr.f32.gmra.mrb[0].mxu0 %v4020
      %v4300 = vpop.f32.mrb[0].mxu0
      %v4301 = vadd.f32 0.0, %v4300
      %v4302 = vpop.f32.mrb[0].mxu0
      %4303 = vmatprep.mubr.f32.mxu0 0.0
      %4304 = vmatmul.mubr.f32.gmra.mrb[0].mxu0 %v4023
      %v4305 = vpop.f32.mrb[0].mxu0
      %v4306 = vadd.f32 0.0, %v4305
      %v4307 = vpop.f32.mrb[0].mxu0
      %4308 = vmatprep.mubr.f32.mxu0 0.0
      %4309 = vmatmul.mubr.f32.gmra.mrb[0].mxu0 %v4026
      %v4310 = vpop.f32.mrb[0].mxu0
      %v4311 = vadd.f32 0.0, %v4310
      %v4312 = vpop.f32.mrb[0].mxu0
      %4313 = vmatprep.mubr.f32.mxu0 0.0
      %4314 = vmatmul.mubr.f32.gmra.mrb[0].mxu0 %v4029
      %v4315 = vpop.f32.mrb[0].mxu0
      %v4316 = vadd.f32 0.0, %v4315
      %v4317 = vpop.f32.mrb[0].mxu0
      %4318 = vmatprep.mubr.f32.mxu0 0.0
      %4319 = vmatmul.mubr.f32.gmra.mrb[0].mxu0 %v4032
      %v4320 = vpop.f32.mrb[0].mxu0
      %v4321 = vadd.f32 0.0, %v4320
      %v4322 = vpop.f32.mrb[0].mxu0
      %4323 = vmatprep.mubr.f32.mxu0 0.0
      %4324 = vmatmul.mubr.f32.gmra.mrb[0].mxu0 %v4035
      %v4325 = vpop.f32.mrb[0].mxu0
      %v4326 = vadd.f32 0.0, %v4325
      %v4327 = vpop.f32.mrb[0].mxu0
      %4328 = vmatprep.mubr.f32.mxu0 0.0
      %4329 = vmatmul.mubr.f32.gmra.mrb[0].mxu0 %v4038
      %v4330 = vpop.f32.mrb[0].mxu0
      %v4331 = vadd.f32 0.0, %v4330
      %v4332 = vpop.f32.mrb[0].mxu0
      %4333 = vmatprep.mubr.f32.mxu0 0.0
      %4334 = vmatmul.mubr.f32.gmra.mrb[0].mxu0 %v4041
      %v4335 = vpop.f32.mrb[0].mxu0
      %v4336 = vadd.f32 0.0, %v4335
      %v4337 = vpop.f32.mrb[0].mxu0
      %4338 = vmatprep.mubr.f32.mxu0 0.0
      %4339 = vmatmul.mubr.f32.gmra.mrb[0].mxu0 %v4044
      %v4340 = vpop.f32.mrb[0].mxu0
      %v4341 = vadd.f32 0.0, %v4340
      %v4342 = vpop.f32.mrb[0].mxu0
      %4343 = vmatprep.mubr.f32.mxu0 0.0
      %4344 = vmatmul.mubr.f32.gmra.mrb[0].mxu0 %v4047
      %v4345 = vpop.f32.mrb[0].mxu0
      %v4346 = vadd.f32 0.0, %v4345
      %v4347 = vpop.f32.mrb[0].mxu0
      %4348 = vmatprep.mubr.f32.mxu0 0.0
      %4349 = vmatmul.mubr.f32.gmra.mrb[0].mxu0 %v4050
      %v4350 = vpop.f32.mrb[0].mxu0
      %v4351 = vadd.f32 0.0, %v4350
      %v4352 = vpop.f32.mrb[0].mxu0
      %4353 = vmatprep.mubr.f32.mxu0 0.0
      %4354 = vmatmul.mubr.f32.gmra.mrb[0].mxu0 %v4053
      %v4355 = vpop.f32.mrb[0].mxu0
      %v4356 = vadd.f32 0.0, %v4355
      %v4357 = vpop.f32.mrb[0].mxu0
      %4358 = vmatprep.mubr.f32.mxu0 0.0
      %4359 = vmatmul.mubr.f32.gmra.mrb[0].mxu0 %v4056
      %v4360 = vpop.f32.mrb[0].mxu0
      %v4361 = vadd.f32 0.0, %v4360
      %v4362 = vpop.f32.mrb[0].mxu0
      %4363 = vmatprep.mubr.f32.mxu0 0.0
      %4364 = vmatmul.mubr.f32.gmra.mrb[0].mxu0 %v4059
      %v4365 = vpop.f32.mrb[0].mxu0
      %v4366 = vadd.f32 0.0, %v4365
      %v4367 = vpop.f32.mrb[0].mxu0
      %4368 = vmatprep.mubr.f32.mxu0 0.0
      %4369 = vmatmul.mubr.f32.gmra.mrb[0].mxu0 %v4062
      %v4370 = vpop.f32.mrb[0].mxu0
      %v4371 = vadd.f32 0.0, %v4370
      %v4372 = vpop.f32.mrb[0].mxu0
      %4373 = vmatprep.mubr.f32.mxu0 0.0
      %4374 = vmatmul.mubr.f32.gmra.mrb[0].mxu0 %v4065
      %v4375 = vpop.f32.mrb[0].mxu0
      %v4376 = vadd.f32 0.0, %v4375
      %v4377 = vpop.f32.mrb[0].mxu0
      %4378 = vmatprep.mubr.f32.mxu0 0.0
      %4379 = vmatmul.mubr.f32.gmra.mrb[0].mxu0 %v4068
      %v4380 = vpop.f32.mrb[0].mxu0
      %v4381 = vadd.f32 0.0, %v4380
      %v4382 = vpop.f32.mrb[0].mxu0
      %4383 = vmatprep.mubr.f32.mxu0 0.0
      %4384 = vmatmul.mubr.f32.gmra.mrb[0].mxu0 %v4071
      %v4385 = vpop.f32.mrb[0].mxu0
      %v4386 = vadd.f32 0.0, %v4385
      %v4387 = vpop.f32.mrb[0].mxu0
      %4388 = vmatprep.mubr.f32.mxu0 0.0
      %4389 = vmatmul.mubr.f32.gmra.mrb[0].mxu0 %v4074
      %v4390 = vpop.f32.mrb[0].mxu0
      %v4391 = vadd.f32 0.0, %v4390
      %v4392 = vpop.f32.mrb[0].mxu0
      %4393 = vmatprep.mubr.f32.mxu0 0.0
      %4394 = vmatmul.mubr.f32.gmra.mrb[0].mxu0 %v4077
      %v4395 = vpop.f32.mrb[0].mxu0
      %v4396 = vadd.f32 0.0, %v4395
      %v4397 = vpop.f32.mrb[0].mxu0
      %4398 = vmatprep.mubr.f32.mxu0 0.0
      %4399 = vmatmul.mubr.f32.gmra.mrb[0].mxu0 %v4080
      %v4400 = vpop.f32.mrb[0].mxu0
      %v4401 = vadd.f32 0.0, %v4400
      %v4402 = vpop.f32.mrb[0].mxu0
      %4403 = vmatprep.mubr.f32.mxu0 0.0
      %4404 = vmatmul.mubr.f32.gmra.mrb[0].mxu0 %v4083
      %v4405 = vpop.f32.mrb[0].mxu0
      %v4406 = vadd.f32 0.0, %v4405
      %v4407 = vpop.f32.mrb[0].mxu0
      %4408 = vmatprep.mubr.f32.mxu0 0.0
      %4409 = vmatmul.mubr.f32.gmra.mrb[0].mxu0 %v4086
      %v4410 = vpop.f32.mrb[0].mxu0
      %v4411 = vadd.f32 0.0, %v4410
      %v4412 = vpop.f32.mrb[0].mxu0
      %4413 = vmatprep.mubr.f32.mxu0 0.0
      %4414 = vmatmul.mubr.f32.gmra.mrb[0].mxu0 %v4089
      %v4415 = vpop.f32.mrb[0].mxu0
      %v4416 = vadd.f32 0.0, %v4415
      %v4417 = vpop.f32.mrb[0].mxu0
      %4418 = vmatprep.mubr.f32.mxu0 0.0
      %4419 = vmatmul.mubr.f32.gmra.mrb[0].mxu0 %v4092
      %v4420 = vpop.f32.mrb[0].mxu0
      %v4421 = vadd.f32 0.0, %v4420
      %v4422 = vpop.f32.mrb[0].mxu0
      %4423 = vmatprep.mubr.f32.mxu0 0.0
      %4424 = vmatmul.mubr.f32.gmra.mrb[0].mxu0 %v4095
      %v4425 = vpop.f32.mrb[0].mxu0
      %v4426 = vadd.f32 0.0, %v4425
      %v4427 = vpop.f32.mrb[0].mxu0
      %4428 = vmatprep.mubr.f32.mxu0 0.0
      %4429 = vmatmul.mubr.f32.gmra.mrb[0].mxu0 %v4098
      %v4430 = vpop.f32.mrb[0].mxu0
      %v4431 = vadd.f32 0.0, %v4430
      %v4432 = vpop.f32.mrb[0].mxu0
      %4433 = vmatprep.mubr.f32.mxu0 0.0
      %4434 = vmatmul.mubr.f32.gmra.mrb[0].mxu0 %v4101
      %v4435 = vpop.f32.mrb[0].mxu0
      %v4436 = vadd.f32 0.0, %v4435
      %v4437 = vpop.f32.mrb[0].mxu0
      %4438 = vmatprep.mubr.f32.mxu0 0.0
      %4439 = vmatmul.mubr.f32.gmra.mrb[0].mxu0 %v4104
      %v4440 = vpop.f32.mrb[0].mxu0
      %v4441 = vadd.f32 0.0, %v4440
      %v4442 = vpop.f32.mrb[0].mxu0
      %4443 = vdwg.mxu0
      %4445 = vset.pattern.permute.xlu0 0
      %4446 = vperm.xlu0 %4445, %v3337
      %v4447 = vpop.permute.xlu0 %4446
      %4450 = vset.pattern.permute.xlu0 0
      %4451 = vperm.xlu0 %4450, %v3338
      %v4452 = vpop.permute.xlu0 %4451
      %4455 = vset.pattern.permute.xlu0 0
      %4456 = vperm.xlu0 %4455, %v3339
      %v4457 = vpop.permute.xlu0 %4456
      %4460 = vset.pattern.permute.xlu0 0
      %4461 = vperm.xlu0 %4460, %v3340
      %v4462 = vpop.permute.xlu0 %4461
      %4465 = vset.pattern.permute.xlu0 0
      %4466 = vperm.xlu0 %4465, %v3341
      %v4467 = vpop.permute.xlu0 %4466
      %4470 = vset.pattern.permute.xlu0 0
      %4471 = vperm.xlu0 %4470, %v3342
      %v4472 = vpop.permute.xlu0 %4471
      %4475 = vset.pattern.permute.xlu0 0
      %4476 = vperm.xlu0 %4475, %v3343
      %v4477 = vpop.permute.xlu0 %4476
      %4480 = vset.pattern.permute.xlu0 0
      %4481 = vperm.xlu0 %4480, %v3344
      %v4482 = vpop.permute.xlu0 %4481
      %4485 = vset.pattern.permute.xlu0 0
      %4486 = vperm.xlu0 %4485, %v3345
      %v4487 = vpop.permute.xlu0 %4486
      %4490 = vset.pattern.permute.xlu0 0
      %4491 = vperm.xlu0 %4490, %v3346
      %v4492 = vpop.permute.xlu0 %4491
      %4495 = vset.pattern.permute.xlu0 0
      %4496 = vperm.xlu0 %4495, %v3347
      %v4497 = vpop.permute.xlu0 %4496
      %4500 = vset.pattern.permute.xlu0 0
      %4501 = vperm.xlu0 %4500, %v3348
      %v4502 = vpop.permute.xlu0 %4501
      %4505 = vset.pattern.permute.xlu0 0
      %4506 = vperm.xlu0 %4505, %v3349
      %v4507 = vpop.permute.xlu0 %4506
      %4510 = vset.pattern.permute.xlu0 0
      %4511 = vperm.xlu0 %4510, %v3350
      %v4512 = vpop.permute.xlu0 %4511
      %4515 = vset.pattern.permute.xlu0 0
      %4516 = vperm.xlu0 %4515, %v3351
      %v4517 = vpop.permute.xlu0 %4516
      %4520 = vset.pattern.permute.xlu0 0
      %4521 = vperm.xlu0 %4520, %v3352
      %v4522 = vpop.permute.xlu0 %4521
      %4525 = vset.pattern.permute.xlu0 0
      %4526 = vperm.xlu0 %4525, %v3353
      %v4527 = vpop.permute.xlu0 %4526
      %4530 = vset.pattern.permute.xlu0 0
      %4531 = vperm.xlu0 %4530, %v3354
      %v4532 = vpop.permute.xlu0 %4531
      %4535 = vset.pattern.permute.xlu0 0
      %4536 = vperm.xlu0 %4535, %v3355
      %v4537 = vpop.permute.xlu0 %4536
      %4540 = vset.pattern.permute.xlu0 0
      %4541 = vperm.xlu0 %4540, %v3356
      %v4542 = vpop.permute.xlu0 %4541
      %4545 = vset.pattern.permute.xlu0 0
      %4546 = vperm.xlu0 %4545, %v3357
      %v4547 = vpop.permute.xlu0 %4546
      %4550 = vset.pattern.permute.xlu0 0
      %4551 = vperm.xlu0 %4550, %v3358
      %v4552 = vpop.permute.xlu0 %4551
      %4555 = vset.pattern.permute.xlu0 0
      %4556 = vperm.xlu0 %4555, %v3359
      %v4557 = vpop.permute.xlu0 %4556
      %4560 = vset.pattern.permute.xlu0 0
      %4561 = vperm.xlu0 %4560, %v3360
      %v4562 = vpop.permute.xlu0 %4561
      %4565 = vset.pattern.permute.xlu0 0
      %4566 = vperm.xlu0 %4565, %v3361
      %v4567 = vpop.permute.xlu0 %4566
      %4570 = vset.pattern.permute.xlu0 0
      %4571 = vperm.xlu0 %4570, %v3362
      %v4572 = vpop.permute.xlu0 %4571
      %4575 = vset.pattern.permute.xlu0 0
      %4576 = vperm.xlu0 %4575, %v3363
      %v4577 = vpop.permute.xlu0 %4576
      %4580 = vset.pattern.permute.xlu0 0
      %4581 = vperm.xlu0 %4580, %v3364
      %v4582 = vpop.permute.xlu0 %4581
      %4585 = vset.pattern.permute.xlu0 0
      %4586 = vperm.xlu0 %4585, %v3365
      %v4587 = vpop.permute.xlu0 %4586
      %4590 = vset.pattern.permute.xlu0 0
      %4591 = vperm.xlu0 %4590, %v3366
      %v4592 = vpop.permute.xlu0 %4591
      %4595 = vset.pattern.permute.xlu0 0
      %4596 = vperm.xlu0 %4595, %v3367
      %v4597 = vpop.permute.xlu0 %4596
      %4600 = vset.pattern.permute.xlu0 0
      %4601 = vperm.xlu0 %4600, %v3368
      %v4602 = vpop.permute.xlu0 %4601
      %4605 = vset.pattern.permute.xlu0 0
      %4606 = vperm.xlu0 %4605, %v3369
      %v4607 = vpop.permute.xlu0 %4606
      %4610 = vset.pattern.permute.xlu0 0
      %4611 = vperm.xlu0 %4610, %v3370
      %v4612 = vpop.permute.xlu0 %4611
      %4615 = vset.pattern.permute.xlu0 0
      %4616 = vperm.xlu0 %4615, %v3371
      %v4617 = vpop.permute.xlu0 %4616
      %4620 = vset.pattern.permute.xlu0 0
      %4621 = vperm.xlu0 %4620, %v3372
      %v4622 = vpop.permute.xlu0 %4621
      %4625 = vset.pattern.permute.xlu0 0
      %4626 = vperm.xlu0 %4625, %v3373
      %v4627 = vpop.permute.xlu0 %4626
      %4630 = vset.pattern.permute.xlu0 0
      %4631 = vperm.xlu0 %4630, %v3374
      %v4632 = vpop.permute.xlu0 %4631
      %4635 = vset.pattern.permute.xlu0 0
      %4636 = vperm.xlu0 %4635, %v3375
      %v4637 = vpop.permute.xlu0 %4636
      %4640 = vset.pattern.permute.xlu0 0
      %4641 = vperm.xlu0 %4640, %v3376
      %v4642 = vpop.permute.xlu0 %4641
      %4645 = vset.pattern.permute.xlu0 0
      %4646 = vperm.xlu0 %4645, %v3377
      %v4647 = vpop.permute.xlu0 %4646
      %4650 = vset.pattern.permute.xlu0 0
      %4651 = vperm.xlu0 %4650, %v3378
      %v4652 = vpop.permute.xlu0 %4651
      %4655 = vset.pattern.permute.xlu0 0
      %4656 = vperm.xlu0 %4655, %v3379
      %v4657 = vpop.permute.xlu0 %4656
      %4660 = vset.pattern.permute.xlu0 0
      %4661 = vperm.xlu0 %4660, %v3380
      %v4662 = vpop.permute.xlu0 %4661
      %4665 = vset.pattern.permute.xlu0 0
      %4666 = vperm.xlu0 %4665, %v3381
      %v4667 = vpop.permute.xlu0 %4666
      %4670 = vset.pattern.permute.xlu0 0
      %4671 = vperm.xlu0 %4670, %v3382
      %v4672 = vpop.permute.xlu0 %4671
      %4675 = vset.pattern.permute.xlu0 0
      %4676 = vperm.xlu0 %4675, %v3383
      %v4677 = vpop.permute.xlu0 %4676
      %4680 = vset.pattern.permute.xlu0 0
      %4681 = vperm.xlu0 %4680, %v3384
      %v4682 = vpop.permute.xlu0 %4681
      %4685 = vset.pattern.permute.xlu0 0
      %4686 = vperm.xlu0 %4685, %v3385
      %v4687 = vpop.permute.xlu0 %4686
      %4690 = vset.pattern.permute.xlu0 0
      %4691 = vperm.xlu0 %4690, %v3386
      %v4692 = vpop.permute.xlu0 %4691
      %4695 = vset.pattern.permute.xlu0 0
      %4696 = vperm.xlu0 %4695, %v3387
      %v4697 = vpop.permute.xlu0 %4696
      %4700 = vset.pattern.permute.xlu0 0
      %4701 = vperm.xlu0 %4700, %v3388
      %v4702 = vpop.permute.xlu0 %4701
      %4705 = vset.pattern.permute.xlu0 0
      %4706 = vperm.xlu0 %4705, %v3389
      %v4707 = vpop.permute.xlu0 %4706
      %4710 = vset.pattern.permute.xlu0 0
      %4711 = vperm.xlu0 %4710, %v3390
      %v4712 = vpop.permute.xlu0 %4711
      %v4714 = vadd.f32 %v4447, %v4176
      %v4715 = vadd.f32 %v4452, %v4181
      %v4716 = vadd.f32 %v4457, %v4186
      %v4717 = vadd.f32 %v4462, %v4191
      %v4718 = vadd.f32 %v4467, %v4196
      %v4719 = vadd.f32 %v4472, %v4201
      %v4720 = vadd.f32 %v4477, %v4206
      %v4721 = vadd.f32 %v4482, %v4211
      %v4722 = vadd.f32 %v4487, %v4216
      %v4723 = vadd.f32 %v4492, %v4221
      %v4724 = vadd.f32 %v4497, %v4226
      %v4725 = vadd.f32 %v4502, %v4231
      %v4726 = vadd.f32 %v4507, %v4236
      %v4727 = vadd.f32 %v4512, %v4241
      %v4728 = vadd.f32 %v4517, %v4246
      %v4729 = vadd.f32 %v4522, %v4251
      %v4730 = vadd.f32 %v4527, %v4256
      %v4731 = vadd.f32 %v4532, %v4261
      %v4732 = vadd.f32 %v4537, %v4266
      %v4733 = vadd.f32 %v4542, %v4271
      %v4734 = vadd.f32 %v4547, %v4276
      %v4735 = vadd.f32 %v4552, %v4281
      %v4736 = vadd.f32 %v4557, %v4286
      %v4737 = vadd.f32 %v4562, %v4291
      %v4738 = vadd.f32 %v4567, %v4296
      %v4739 = vadd.f32 %v4572, %v4301
      %v4740 = vadd.f32 %v4577, %v4306
      %v4741 = vadd.f32 %v4582, %v4311
      %v4742 = vadd.f32 %v4587, %v4316
      %v4743 = vadd.f32 %v4592, %v4321
      %v4744 = vadd.f32 %v4597, %v4326
      %v4745 = vadd.f32 %v4602, %v4331
      %v4746 = vadd.f32 %v4607, %v4336
      %v4747 = vadd.f32 %v4612, %v4341
      %v4748 = vadd.f32 %v4617, %v4346
      %v4749 = vadd.f32 %v4622, %v4351
      %v4750 = vadd.f32 %v4627, %v4356
      %v4751 = vadd.f32 %v4632, %v4361
      %v4752 = vadd.f32 %v4637, %v4366
      %v4753 = vadd.f32 %v4642, %v4371
      %v4754 = vadd.f32 %v4647, %v4376
      %v4755 = vadd.f32 %v4652, %v4381
      %v4756 = vadd.f32 %v4657, %v4386
      %v4757 = vadd.f32 %v4662, %v4391
      %v4758 = vadd.f32 %v4667, %v4396
      %v4759 = vadd.f32 %v4672, %v4401
      %v4760 = vadd.f32 %v4677, %v4406
      %v4761 = vadd.f32 %v4682, %v4411
      %v4762 = vadd.f32 %v4687, %v4416
      %v4763 = vadd.f32 %v4692, %v4421
      %v4764 = vadd.f32 %v4697, %v4426
      %v4765 = vadd.f32 %v4702, %v4431
      %v4766 = vadd.f32 %v4707, %v4436
      %v4767 = vadd.f32 %v4712, %v4441
      %s4768 = scalar_lea.vmem %s12, 432
      %v4769 = vld [vmem:[%s4768] sm:$0xff]
      %v4770 = vld [vmem:[%s4768 + $0x8] sm:$0xff]
      %v4771 = vld [vmem:[%s4768 + $0x10] sm:$0xff]
      %v4772 = vld [vmem:[%s4768 + $0x18] sm:$0xff]
      %v4773 = vld [vmem:[%s4768 + $0x20] sm:$0xff]
      %v4774 = vld [vmem:[%s4768 + $0x28] sm:$0xff]
      %v4775 = vld [vmem:[%s4768 + $0x30] sm:$0xff]
      %v4776 = vld [vmem:[%s4768 + $0x38] sm:$0xff]
      %v4777 = vld [vmem:[%s4768 + $0x40] sm:$0xff]
      %v4778 = vld [vmem:[%s4768 + $0x48] sm:$0xff]
      %v4779 = vld [vmem:[%s4768 + $0x50] sm:$0xff]
      %v4780 = vld [vmem:[%s4768 + $0x58] sm:$0xff]
      %v4781 = vld [vmem:[%s4768 + $0x60] sm:$0xff]
      %v4782 = vld [vmem:[%s4768 + $0x68] sm:$0xff]
      %v4783 = vld [vmem:[%s4768 + $0x70] sm:$0xff]
      %v4784 = vld [vmem:[%s4768 + $0x78] sm:$0xff]
      %v4785 = vld [vmem:[%s4768 + $0x80] sm:$0xff]
      %v4786 = vld [vmem:[%s4768 + $0x88] sm:$0xff]
      %v4787 = vld [vmem:[%s4768 + $0x90] sm:$0xff]
      %v4788 = vld [vmem:[%s4768 + $0x98] sm:$0xff]
      %v4789 = vld [vmem:[%s4768 + $0xa0] sm:$0xff]
      %v4790 = vld [vmem:[%s4768 + $0xa8] sm:$0xff]
      %v4791 = vld [vmem:[%s4768 + $0xb0] sm:$0xff]
      %v4792 = vld [vmem:[%s4768 + $0xb8] sm:$0xff]
      %v4793 = vld [vmem:[%s4768 + $0xc0] sm:$0xff]
      %v4794 = vld [vmem:[%s4768 + $0xc8] sm:$0xff]
      %v4795 = vld [vmem:[%s4768 + $0xd0] sm:$0xff]
      %v4796 = vld [vmem:[%s4768 + $0xd8] sm:$0xff]
      %v4797 = vld [vmem:[%s4768 + $0xe0] sm:$0xff]
      %v4798 = vld [vmem:[%s4768 + $0xe8] sm:$0xff]
      %v4799 = vld [vmem:[%s4768 + $0xf0] sm:$0xff]
      %v4800 = vld [vmem:[%s4768 + $0xf8] sm:$0xff]
      %v4801 = vld [vmem:[%s4768 + $0x100] sm:$0xff]
      %v4802 = vld [vmem:[%s4768 + $0x108] sm:$0xff]
      %v4803 = vld [vmem:[%s4768 + $0x110] sm:$0xff]
      %v4804 = vld [vmem:[%s4768 + $0x118] sm:$0xff]
      %v4805 = vld [vmem:[%s4768 + $0x120] sm:$0xff]
      %v4806 = vld [vmem:[%s4768 + $0x128] sm:$0xff]
      %v4807 = vld [vmem:[%s4768 + $0x130] sm:$0xff]
      %v4808 = vld [vmem:[%s4768 + $0x138] sm:$0xff]
      %v4809 = vld [vmem:[%s4768 + $0x140] sm:$0xff]
      %v4810 = vld [vmem:[%s4768 + $0x148] sm:$0xff]
      %v4811 = vld [vmem:[%s4768 + $0x150] sm:$0xff]
      %v4812 = vld [vmem:[%s4768 + $0x158] sm:$0xff]
      %v4813 = vld [vmem:[%s4768 + $0x160] sm:$0xff]
      %v4814 = vld [vmem:[%s4768 + $0x168] sm:$0xff]
      %v4815 = vld [vmem:[%s4768 + $0x170] sm:$0xff]
      %v4816 = vld [vmem:[%s4768 + $0x178] sm:$0xff]
      %v4817 = vld [vmem:[%s4768 + $0x180] sm:$0xff]
      %v4818 = vld [vmem:[%s4768 + $0x188] sm:$0xff]
      %v4819 = vld [vmem:[%s4768 + $0x190] sm:$0xff]
      %v4820 = vld [vmem:[%s4768 + $0x198] sm:$0xff]
      %v4821 = vld [vmem:[%s4768 + $0x1a0] sm:$0xff]
      %v4822 = vld [vmem:[%s4768 + $0x1a8] sm:$0xff]
      %v4824 = vsel %vm551, %v4769, 0
      %v4827 = vsel %vm551, %v4770, 0
      %v4830 = vsel %vm551, %v4771, 0
      %v4833 = vsel %vm551, %v4772, 0
      %v4836 = vsel %vm551, %v4773, 0
      %v4839 = vsel %vm551, %v4774, 0
      %v4842 = vsel %vm551, %v4775, 0
      %v4845 = vsel %vm551, %v4776, 0
      %v4848 = vsel %vm551, %v4777, 0
      %v4851 = vsel %vm551, %v4778, 0
      %v4854 = vsel %vm551, %v4779, 0
      %v4857 = vsel %vm551, %v4780, 0
      %v4860 = vsel %vm551, %v4781, 0
      %v4863 = vsel %vm551, %v4782, 0
      %v4866 = vsel %vm551, %v4783, 0
      %v4869 = vsel %vm551, %v4784, 0
      %v4872 = vsel %vm551, %v4785, 0
      %v4875 = vsel %vm551, %v4786, 0
      %v4878 = vsel %vm551, %v4787, 0
      %v4881 = vsel %vm551, %v4788, 0
      %v4884 = vsel %vm551, %v4789, 0
      %v4887 = vsel %vm551, %v4790, 0
      %v4890 = vsel %vm551, %v4791, 0
      %v4893 = vsel %vm551, %v4792, 0
      %v4896 = vsel %vm551, %v4793, 0
      %v4899 = vsel %vm551, %v4794, 0
      %v4902 = vsel %vm551, %v4795, 0
      %v4905 = vsel %vm551, %v4796, 0
      %v4908 = vsel %vm551, %v4797, 0
      %v4911 = vsel %vm551, %v4798, 0
      %v4914 = vsel %vm551, %v4799, 0
      %v4917 = vsel %vm551, %v4800, 0
      %v4920 = vsel %vm551, %v4801, 0
      %v4923 = vsel %vm551, %v4802, 0
      %v4926 = vsel %vm551, %v4803, 0
      %v4929 = vsel %vm551, %v4804, 0
      %v4932 = vsel %vm551, %v4805, 0
      %v4935 = vsel %vm551, %v4806, 0
      %v4938 = vsel %vm551, %v4807, 0
      %v4941 = vsel %vm551, %v4808, 0
      %v4944 = vsel %vm551, %v4809, 0
      %v4947 = vsel %vm551, %v4810, 0
      %v4950 = vsel %vm551, %v4811, 0
      %v4953 = vsel %vm551, %v4812, 0
      %v4956 = vsel %vm551, %v4813, 0
      %v4959 = vsel %vm551, %v4814, 0
      %v4962 = vsel %vm551, %v4815, 0
      %v4965 = vsel %vm551, %v4816, 0
      %v4968 = vsel %vm551, %v4817, 0
      %v4971 = vsel %vm551, %v4818, 0
      %v4974 = vsel %vm551, %v4819, 0
      %v4977 = vsel %vm551, %v4820, 0
      %v4980 = vsel %vm551, %v4821, 0
      %v4983 = vsel %vm551, %v4822, 0
      %4985 = vmatprep.subr.mxu0 0.0
      %4986 = vmatpush1.msra.mxu0 %v3330
      %4987 = vmatprep.subr.mxu0 0.0
      %4988 = vmatpush1.msra.mxu0 %v3331
      %4989 = vmatprep.subr.mxu0 0.0
      %4990 = vmatpush1.msra.mxu0 %v3332
      %4991 = vmatprep.subr.mxu0 0.0
      %4992 = vmatpush1.msra.mxu0 %v3333
      %4993 = vmatprep.subr.mxu0 0.0
      %4994 = vmatpush1.msra.mxu0 %v3334
      %4995 = vmatprep.subr.mxu0 0.0
      %4996 = vmatpush1.msra.mxu0 %v3335
      %4997 = vmatprep.subr.mxu0 0.0
      %4998 = vmatpush1.msra.mxu0 %v3336
      %4999 = vmatprep.subr.mxu0 0.0
      %5000 = vmatpush1.msra.mxu0 0.0
      %5001 = vmatprep.subr.mxu0 0.0
      %5002 = vmatpush1.msra.mxu0 0.0
      %5003 = vmatprep.subr.mxu0 0.0
      %5004 = vmatpush1.msra.mxu0 0.0
      %5005 = vmatprep.subr.mxu0 0.0
      %5006 = vmatpush1.msra.mxu0 0.0
      %5007 = vmatprep.subr.mxu0 0.0
      %5008 = vmatpush1.msra.mxu0 0.0
      %5009 = vmatprep.subr.mxu0 0.0
      %5010 = vmatpush1.msra.mxu0 0.0
      %5011 = vmatprep.subr.mxu0 0.0
      %5012 = vmatpush1.msra.mxu0 0.0
      %5013 = vmatprep.subr.mxu0 0.0
      %5014 = vmatpush1.msra.mxu0 0.0
      %5015 = vmatprep.subr.mxu0 0.0
      %5016 = vmatpush1.msra.mxu0 0.0
      %5017 = vmatprep.subr.mxu0 0.0
      %5018 = vmatpush1.msra.mxu0 0.0
      %5019 = vmatprep.subr.mxu0 0.0
      %5020 = vmatpush1.msra.mxu0 0.0
      %5021 = vmatprep.subr.mxu0 0.0
      %5022 = vmatpush1.msra.mxu0 0.0
      %5023 = vmatprep.subr.mxu0 0.0
      %5024 = vmatpush1.msra.mxu0 0.0
      %5025 = vmatprep.subr.mxu0 0.0
      %5026 = vmatpush1.msra.mxu0 0.0
      %5027 = vmatprep.subr.mxu0 0.0
      %5028 = vmatpush1.msra.mxu0 0.0
      %5029 = vmatprep.subr.mxu0 0.0
      %5030 = vmatpush1.msra.mxu0 0.0
      %5031 = vmatprep.subr.mxu0 0.0
      %5032 = vmatpush1.msra.mxu0 0.0
      %5033 = vmatprep.subr.mxu0 0.0
      %5034 = vmatpush1.msra.mxu0 0.0
      %5035 = vmatprep.subr.mxu0 0.0
      %5036 = vmatpush1.msra.mxu0 0.0
      %5037 = vmatprep.subr.mxu0 0.0
      %5038 = vmatpush1.msra.mxu0 0.0
      %5039 = vmatprep.subr.mxu0 0.0
      %5040 = vmatpush1.msra.mxu0 0.0
      %5041 = vmatprep.subr.mxu0 0.0
      %5042 = vmatpush1.msra.mxu0 0.0
      %5043 = vmatprep.subr.mxu0 0.0
      %5044 = vmatpush1.msra.mxu0 0.0
      %5045 = vmatprep.subr.mxu0 0.0
      %5046 = vmatpush1.msra.mxu0 0.0
      %5047 = vmatprep.subr.mxu0 0.0
      %5048 = vmatpush1.msra.mxu0 0.0
      %5049 = vmatprep.mubr.f32.mxu0 0.0
      %5050 = vmatmul.mubr.f32.gmra.mrb[0].mxu0 %v4824
      %v5051 = vpop.f32.mrb[0].mxu0
      %v5052 = vadd.f32 0.0, %v5051
      %v5053 = vpop.f32.mrb[0].mxu0
      %5054 = vmatprep.mubr.f32.mxu0 0.0
      %5055 = vmatmul.mubr.f32.gmra.mrb[0].mxu0 %v4827
      %v5056 = vpop.f32.mrb[0].mxu0
      %v5057 = vadd.f32 0.0, %v5056
      %v5058 = vpop.f32.mrb[0].mxu0
      %5059 = vmatprep.mubr.f32.mxu0 0.0
      %5060 = vmatmul.mubr.f32.gmra.mrb[0].mxu0 %v4830
      %v5061 = vpop.f32.mrb[0].mxu0
      %v5062 = vadd.f32 0.0, %v5061
      %v5063 = vpop.f32.mrb[0].mxu0
      %5064 = vmatprep.mubr.f32.mxu0 0.0
      %5065 = vmatmul.mubr.f32.gmra.mrb[0].mxu0 %v4833
      %v5066 = vpop.f32.mrb[0].mxu0
      %v5067 = vadd.f32 0.0, %v5066
      %v5068 = vpop.f32.mrb[0].mxu0
      %5069 = vmatprep.mubr.f32.mxu0 0.0
      %5070 = vmatmul.mubr.f32.gmra.mrb[0].mxu0 %v4836
      %v5071 = vpop.f32.mrb[0].mxu0
      %v5072 = vadd.f32 0.0, %v5071
      %v5073 = vpop.f32.mrb[0].mxu0
      %5074 = vmatprep.mubr.f32.mxu0 0.0
      %5075 = vmatmul.mubr.f32.gmra.mrb[0].mxu0 %v4839
      %v5076 = vpop.f32.mrb[0].mxu0
      %v5077 = vadd.f32 0.0, %v5076
      %v5078 = vpop.f32.mrb[0].mxu0
      %5079 = vmatprep.mubr.f32.mxu0 0.0
      %5080 = vmatmul.mubr.f32.gmra.mrb[0].mxu0 %v4842
      %v5081 = vpop.f32.mrb[0].mxu0
      %v5082 = vadd.f32 0.0, %v5081
      %v5083 = vpop.f32.mrb[0].mxu0
      %5084 = vmatprep.mubr.f32.mxu0 0.0
      %5085 = vmatmul.mubr.f32.gmra.mrb[0].mxu0 %v4845
      %v5086 = vpop.f32.mrb[0].mxu0
      %v5087 = vadd.f32 0.0, %v5086
      %v5088 = vpop.f32.mrb[0].mxu0
      %5089 = vmatprep.mubr.f32.mxu0 0.0
      %5090 = vmatmul.mubr.f32.gmra.mrb[0].mxu0 %v4848
      %v5091 = vpop.f32.mrb[0].mxu0
      %v5092 = vadd.f32 0.0, %v5091
      %v5093 = vpop.f32.mrb[0].mxu0
      %5094 = vmatprep.mubr.f32.mxu0 0.0
      %5095 = vmatmul.mubr.f32.gmra.mrb[0].mxu0 %v4851
      %v5096 = vpop.f32.mrb[0].mxu0
      %v5097 = vadd.f32 0.0, %v5096
      %v5098 = vpop.f32.mrb[0].mxu0
      %5099 = vmatprep.mubr.f32.mxu0 0.0
      %5100 = vmatmul.mubr.f32.gmra.mrb[0].mxu0 %v4854
      %v5101 = vpop.f32.mrb[0].mxu0
      %v5102 = vadd.f32 0.0, %v5101
      %v5103 = vpop.f32.mrb[0].mxu0
      %5104 = vmatprep.mubr.f32.mxu0 0.0
      %5105 = vmatmul.mubr.f32.gmra.mrb[0].mxu0 %v4857
      %v5106 = vpop.f32.mrb[0].mxu0
      %v5107 = vadd.f32 0.0, %v5106
      %v5108 = vpop.f32.mrb[0].mxu0
      %5109 = vmatprep.mubr.f32.mxu0 0.0
      %5110 = vmatmul.mubr.f32.gmra.mrb[0].mxu0 %v4860
      %v5111 = vpop.f32.mrb[0].mxu0
      %v5112 = vadd.f32 0.0, %v5111
      %v5113 = vpop.f32.mrb[0].mxu0
      %5114 = vmatprep.mubr.f32.mxu0 0.0
      %5115 = vmatmul.mubr.f32.gmra.mrb[0].mxu0 %v4863
      %v5116 = vpop.f32.mrb[0].mxu0
      %v5117 = vadd.f32 0.0, %v5116
      %v5118 = vpop.f32.mrb[0].mxu0
      %5119 = vmatprep.mubr.f32.mxu0 0.0
      %5120 = vmatmul.mubr.f32.gmra.mrb[0].mxu0 %v4866
      %v5121 = vpop.f32.mrb[0].mxu0
      %v5122 = vadd.f32 0.0, %v5121
      %v5123 = vpop.f32.mrb[0].mxu0
      %5124 = vmatprep.mubr.f32.mxu0 0.0
      %5125 = vmatmul.mubr.f32.gmra.mrb[0].mxu0 %v4869
      %v5126 = vpop.f32.mrb[0].mxu0
      %v5127 = vadd.f32 0.0, %v5126
      %v5128 = vpop.f32.mrb[0].mxu0
      %5129 = vmatprep.mubr.f32.mxu0 0.0
      %5130 = vmatmul.mubr.f32.gmra.mrb[0].mxu0 %v4872
      %v5131 = vpop.f32.mrb[0].mxu0
      %v5132 = vadd.f32 0.0, %v5131
      %v5133 = vpop.f32.mrb[0].mxu0
      %5134 = vmatprep.mubr.f32.mxu0 0.0
      %5135 = vmatmul.mubr.f32.gmra.mrb[0].mxu0 %v4875
      %v5136 = vpop.f32.mrb[0].mxu0
      %v5137 = vadd.f32 0.0, %v5136
      %v5138 = vpop.f32.mrb[0].mxu0
      %5139 = vmatprep.mubr.f32.mxu0 0.0
      %5140 = vmatmul.mubr.f32.gmra.mrb[0].mxu0 %v4878
      %v5141 = vpop.f32.mrb[0].mxu0
      %v5142 = vadd.f32 0.0, %v5141
      %v5143 = vpop.f32.mrb[0].mxu0
      %5144 = vmatprep.mubr.f32.mxu0 0.0
      %5145 = vmatmul.mubr.f32.gmra.mrb[0].mxu0 %v4881
      %v5146 = vpop.f32.mrb[0].mxu0
      %v5147 = vadd.f32 0.0, %v5146
      %v5148 = vpop.f32.mrb[0].mxu0
      %5149 = vmatprep.mubr.f32.mxu0 0.0
      %5150 = vmatmul.mubr.f32.gmra.mrb[0].mxu0 %v4884
      %v5151 = vpop.f32.mrb[0].mxu0
      %v5152 = vadd.f32 0.0, %v5151
      %v5153 = vpop.f32.mrb[0].mxu0
      %5154 = vmatprep.mubr.f32.mxu0 0.0
      %5155 = vmatmul.mubr.f32.gmra.mrb[0].mxu0 %v4887
      %v5156 = vpop.f32.mrb[0].mxu0
      %v5157 = vadd.f32 0.0, %v5156
      %v5158 = vpop.f32.mrb[0].mxu0
      %5159 = vmatprep.mubr.f32.mxu0 0.0
      %5160 = vmatmul.mubr.f32.gmra.mrb[0].mxu0 %v4890
      %v5161 = vpop.f32.mrb[0].mxu0
      %v5162 = vadd.f32 0.0, %v5161
      %v5163 = vpop.f32.mrb[0].mxu0
      %5164 = vmatprep.mubr.f32.mxu0 0.0
      %5165 = vmatmul.mubr.f32.gmra.mrb[0].mxu0 %v4893
      %v5166 = vpop.f32.mrb[0].mxu0
      %v5167 = vadd.f32 0.0, %v5166
      %v5168 = vpop.f32.mrb[0].mxu0
      %5169 = vmatprep.mubr.f32.mxu0 0.0
      %5170 = vmatmul.mubr.f32.gmra.mrb[0].mxu0 %v4896
      %v5171 = vpop.f32.mrb[0].mxu0
      %v5172 = vadd.f32 0.0, %v5171
      %v5173 = vpop.f32.mrb[0].mxu0
      %5174 = vmatprep.mubr.f32.mxu0 0.0
      %5175 = vmatmul.mubr.f32.gmra.mrb[0].mxu0 %v4899
      %v5176 = vpop.f32.mrb[0].mxu0
      %v5177 = vadd.f32 0.0, %v5176
      %v5178 = vpop.f32.mrb[0].mxu0
      %5179 = vmatprep.mubr.f32.mxu0 0.0
      %5180 = vmatmul.mubr.f32.gmra.mrb[0].mxu0 %v4902
      %v5181 = vpop.f32.mrb[0].mxu0
      %v5182 = vadd.f32 0.0, %v5181
      %v5183 = vpop.f32.mrb[0].mxu0
      %5184 = vmatprep.mubr.f32.mxu0 0.0
      %5185 = vmatmul.mubr.f32.gmra.mrb[0].mxu0 %v4905
      %v5186 = vpop.f32.mrb[0].mxu0
      %v5187 = vadd.f32 0.0, %v5186
      %v5188 = vpop.f32.mrb[0].mxu0
      %5189 = vmatprep.mubr.f32.mxu0 0.0
      %5190 = vmatmul.mubr.f32.gmra.mrb[0].mxu0 %v4908
      %v5191 = vpop.f32.mrb[0].mxu0
      %v5192 = vadd.f32 0.0, %v5191
      %v5193 = vpop.f32.mrb[0].mxu0
      %5194 = vmatprep.mubr.f32.mxu0 0.0
      %5195 = vmatmul.mubr.f32.gmra.mrb[0].mxu0 %v4911
      %v5196 = vpop.f32.mrb[0].mxu0
      %v5197 = vadd.f32 0.0, %v5196
      %v5198 = vpop.f32.mrb[0].mxu0
      %5199 = vmatprep.mubr.f32.mxu0 0.0
      %5200 = vmatmul.mubr.f32.gmra.mrb[0].mxu0 %v4914
      %v5201 = vpop.f32.mrb[0].mxu0
      %v5202 = vadd.f32 0.0, %v5201
      %v5203 = vpop.f32.mrb[0].mxu0
      %5204 = vmatprep.mubr.f32.mxu0 0.0
      %5205 = vmatmul.mubr.f32.gmra.mrb[0].mxu0 %v4917
      %v5206 = vpop.f32.mrb[0].mxu0
      %v5207 = vadd.f32 0.0, %v5206
      %v5208 = vpop.f32.mrb[0].mxu0
      %5209 = vmatprep.mubr.f32.mxu0 0.0
      %5210 = vmatmul.mubr.f32.gmra.mrb[0].mxu0 %v4920
      %v5211 = vpop.f32.mrb[0].mxu0
      %v5212 = vadd.f32 0.0, %v5211
      %v5213 = vpop.f32.mrb[0].mxu0
      %5214 = vmatprep.mubr.f32.mxu0 0.0
      %5215 = vmatmul.mubr.f32.gmra.mrb[0].mxu0 %v4923
      %v5216 = vpop.f32.mrb[0].mxu0
      %v5217 = vadd.f32 0.0, %v5216
      %v5218 = vpop.f32.mrb[0].mxu0
      %5219 = vmatprep.mubr.f32.mxu0 0.0
      %5220 = vmatmul.mubr.f32.gmra.mrb[0].mxu0 %v4926
      %v5221 = vpop.f32.mrb[0].mxu0
      %v5222 = vadd.f32 0.0, %v5221
      %v5223 = vpop.f32.mrb[0].mxu0
      %5224 = vmatprep.mubr.f32.mxu0 0.0
      %5225 = vmatmul.mubr.f32.gmra.mrb[0].mxu0 %v4929
      %v5226 = vpop.f32.mrb[0].mxu0
      %v5227 = vadd.f32 0.0, %v5226
      %v5228 = vpop.f32.mrb[0].mxu0
      %5229 = vmatprep.mubr.f32.mxu0 0.0
      %5230 = vmatmul.mubr.f32.gmra.mrb[0].mxu0 %v4932
      %v5231 = vpop.f32.mrb[0].mxu0
      %v5232 = vadd.f32 0.0, %v5231
      %v5233 = vpop.f32.mrb[0].mxu0
      %5234 = vmatprep.mubr.f32.mxu0 0.0
      %5235 = vmatmul.mubr.f32.gmra.mrb[0].mxu0 %v4935
      %v5236 = vpop.f32.mrb[0].mxu0
      %v5237 = vadd.f32 0.0, %v5236
      %v5238 = vpop.f32.mrb[0].mxu0
      %5239 = vmatprep.mubr.f32.mxu0 0.0
      %5240 = vmatmul.mubr.f32.gmra.mrb[0].mxu0 %v4938
      %v5241 = vpop.f32.mrb[0].mxu0
      %v5242 = vadd.f32 0.0, %v5241
      %v5243 = vpop.f32.mrb[0].mxu0
      %5244 = vmatprep.mubr.f32.mxu0 0.0
      %5245 = vmatmul.mubr.f32.gmra.mrb[0].mxu0 %v4941
      %v5246 = vpop.f32.mrb[0].mxu0
      %v5247 = vadd.f32 0.0, %v5246
      %v5248 = vpop.f32.mrb[0].mxu0
      %5249 = vmatprep.mubr.f32.mxu0 0.0
      %5250 = vmatmul.mubr.f32.gmra.mrb[0].mxu0 %v4944
      %v5251 = vpop.f32.mrb[0].mxu0
      %v5252 = vadd.f32 0.0, %v5251
      %v5253 = vpop.f32.mrb[0].mxu0
      %5254 = vmatprep.mubr.f32.mxu0 0.0
      %5255 = vmatmul.mubr.f32.gmra.mrb[0].mxu0 %v4947
      %v5256 = vpop.f32.mrb[0].mxu0
      %v5257 = vadd.f32 0.0, %v5256
      %v5258 = vpop.f32.mrb[0].mxu0
      %5259 = vmatprep.mubr.f32.mxu0 0.0
      %5260 = vmatmul.mubr.f32.gmra.mrb[0].mxu0 %v4950
      %v5261 = vpop.f32.mrb[0].mxu0
      %v5262 = vadd.f32 0.0, %v5261
      %v5263 = vpop.f32.mrb[0].mxu0
      %5264 = vmatprep.mubr.f32.mxu0 0.0
      %5265 = vmatmul.mubr.f32.gmra.mrb[0].mxu0 %v4953
      %v5266 = vpop.f32.mrb[0].mxu0
      %v5267 = vadd.f32 0.0, %v5266
      %v5268 = vpop.f32.mrb[0].mxu0
      %5269 = vmatprep.mubr.f32.mxu0 0.0
      %5270 = vmatmul.mubr.f32.gmra.mrb[0].mxu0 %v4956
      %v5271 = vpop.f32.mrb[0].mxu0
      %v5272 = vadd.f32 0.0, %v5271
      %v5273 = vpop.f32.mrb[0].mxu0
      %5274 = vmatprep.mubr.f32.mxu0 0.0
      %5275 = vmatmul.mubr.f32.gmra.mrb[0].mxu0 %v4959
      %v5276 = vpop.f32.mrb[0].mxu0
      %v5277 = vadd.f32 0.0, %v5276
      %v5278 = vpop.f32.mrb[0].mxu0
      %5279 = vmatprep.mubr.f32.mxu0 0.0
      %5280 = vmatmul.mubr.f32.gmra.mrb[0].mxu0 %v4962
      %v5281 = vpop.f32.mrb[0].mxu0
      %v5282 = vadd.f32 0.0, %v5281
      %v5283 = vpop.f32.mrb[0].mxu0
      %5284 = vmatprep.mubr.f32.mxu0 0.0
      %5285 = vmatmul.mubr.f32.gmra.mrb[0].mxu0 %v4965
      %v5286 = vpop.f32.mrb[0].mxu0
      %v5287 = vadd.f32 0.0, %v5286
      %v5288 = vpop.f32.mrb[0].mxu0
      %5289 = vmatprep.mubr.f32.mxu0 0.0
      %5290 = vmatmul.mubr.f32.gmra.mrb[0].mxu0 %v4968
      %v5291 = vpop.f32.mrb[0].mxu0
      %v5292 = vadd.f32 0.0, %v5291
      %v5293 = vpop.f32.mrb[0].mxu0
      %5294 = vmatprep.mubr.f32.mxu0 0.0
      %5295 = vmatmul.mubr.f32.gmra.mrb[0].mxu0 %v4971
      %v5296 = vpop.f32.mrb[0].mxu0
      %v5297 = vadd.f32 0.0, %v5296
      %v5298 = vpop.f32.mrb[0].mxu0
      %5299 = vmatprep.mubr.f32.mxu0 0.0
      %5300 = vmatmul.mubr.f32.gmra.mrb[0].mxu0 %v4974
      %v5301 = vpop.f32.mrb[0].mxu0
      %v5302 = vadd.f32 0.0, %v5301
      %v5303 = vpop.f32.mrb[0].mxu0
      %5304 = vmatprep.mubr.f32.mxu0 0.0
      %5305 = vmatmul.mubr.f32.gmra.mrb[0].mxu0 %v4977
      %v5306 = vpop.f32.mrb[0].mxu0
      %v5307 = vadd.f32 0.0, %v5306
      %v5308 = vpop.f32.mrb[0].mxu0
      %5309 = vmatprep.mubr.f32.mxu0 0.0
      %5310 = vmatmul.mubr.f32.gmra.mrb[0].mxu0 %v4980
      %v5311 = vpop.f32.mrb[0].mxu0
      %v5312 = vadd.f32 0.0, %v5311
      %v5313 = vpop.f32.mrb[0].mxu0
      %5314 = vmatprep.mubr.f32.mxu0 0.0
      %5315 = vmatmul.mubr.f32.gmra.mrb[0].mxu0 %v4983
      %v5316 = vpop.f32.mrb[0].mxu0
      %v5317 = vadd.f32 0.0, %v5316
      %v5318 = vpop.f32.mrb[0].mxu0
      %5319 = vdwg.mxu0
      %s5320 = scalar_lea.vmem %s13, 16
      %v5321 = vld [vmem:[%s5320] sm:$0xff]
      %v5322 = vld [vmem:[%s5320 + $0x8] sm:$0x3f]
      %v5324 = vsel %vm2203, %v5052, 0
      %v5327 = vsel %vm2203, %v5057, 0
      %v5330 = vsel %vm2203, %v5062, 0
      %v5333 = vsel %vm2203, %v5067, 0
      %v5336 = vsel %vm2203, %v5072, 0
      %v5339 = vsel %vm2203, %v5077, 0
      %v5342 = vsel %vm2203, %v5082, 0
      %v5345 = vsel %vm2203, %v5087, 0
      %v5348 = vsel %vm2203, %v5092, 0
      %v5351 = vsel %vm2203, %v5097, 0
      %v5354 = vsel %vm2203, %v5102, 0
      %v5357 = vsel %vm2203, %v5107, 0
      %v5360 = vsel %vm2203, %v5112, 0
      %v5363 = vsel %vm2203, %v5117, 0
      %v5366 = vsel %vm2203, %v5122, 0
      %v5369 = vsel %vm2203, %v5127, 0
      %v5372 = vsel %vm2203, %v5132, 0
      %v5375 = vsel %vm2203, %v5137, 0
      %v5378 = vsel %vm2203, %v5142, 0
      %v5381 = vsel %vm2203, %v5147, 0
      %v5384 = vsel %vm2203, %v5152, 0
      %v5387 = vsel %vm2203, %v5157, 0
      %v5390 = vsel %vm2203, %v5162, 0
      %v5393 = vsel %vm2203, %v5167, 0
      %v5396 = vsel %vm2203, %v5172, 0
      %v5399 = vsel %vm2203, %v5177, 0
      %v5402 = vsel %vm2203, %v5182, 0
      %v5405 = vsel %vm2203, %v5187, 0
      %v5408 = vsel %vm2203, %v5192, 0
      %v5411 = vsel %vm2203, %v5197, 0
      %v5414 = vsel %vm2203, %v5202, 0
      %v5417 = vsel %vm2203, %v5207, 0
      %v5420 = vsel %vm2203, %v5212, 0
      %v5423 = vsel %vm2203, %v5217, 0
      %v5426 = vsel %vm2203, %v5222, 0
      %v5429 = vsel %vm2203, %v5227, 0
      %v5432 = vsel %vm2203, %v5232, 0
      %v5435 = vsel %vm2203, %v5237, 0
      %v5438 = vsel %vm2203, %v5242, 0
      %v5441 = vsel %vm2203, %v5247, 0
      %v5444 = vsel %vm2203, %v5252, 0
      %v5447 = vsel %vm2203, %v5257, 0
      %v5450 = vsel %vm2203, %v5262, 0
      %v5453 = vsel %vm2203, %v5267, 0
      %v5456 = vsel %vm2203, %v5272, 0
      %v5459 = vsel %vm2203, %v5277, 0
      %v5462 = vsel %vm2203, %v5282, 0
      %v5465 = vsel %vm2203, %v5287, 0
      %v5468 = vsel %vm2203, %v5292, 0
      %v5471 = vsel %vm2203, %v5297, 0
      %v5474 = vsel %vm2203, %v5302, 0
      %v5477 = vsel %vm2203, %v5307, 0
      %v5480 = vsel %vm2203, %v5312, 0
      %v5483 = vsel %vm2203, %v5317, 0
      %v5486 = vsel %vm2228, %v5322, 0
      %5488 = vmatprep.subr.mxu0 0.0
      %5489 = vmatpush1.msra.mxu0 %v5321
      %5490 = vmatprep.subr.mxu0 0.0
      %5491 = vmatpush1.msra.mxu0 %v5486
      %5492 = vmatprep.subr.mxu0 0.0
      %5493 = vmatpush1.msra.mxu0 0.0
      %5494 = vmatprep.subr.mxu0 0.0
      %5495 = vmatpush1.msra.mxu0 0.0
      %5496 = vmatprep.subr.mxu0 0.0
      %5497 = vmatpush1.msra.mxu0 0.0
      %5498 = vmatprep.subr.mxu0 0.0
      %5499 = vmatpush1.msra.mxu0 0.0
      %5500 = vmatprep.subr.mxu0 0.0
      %5501 = vmatpush1.msra.mxu0 0.0
      %5502 = vmatprep.subr.mxu0 0.0
      %5503 = vmatpush1.msra.mxu0 0.0
      %5504 = vmatprep.subr.mxu0 0.0
      %5505 = vmatpush1.msra.mxu0 0.0
      %5506 = vmatprep.subr.mxu0 0.0
      %5507 = vmatpush1.msra.mxu0 0.0
      %5508 = vmatprep.subr.mxu0 0.0
      %5509 = vmatpush1.msra.mxu0 0.0
      %5510 = vmatprep.subr.mxu0 0.0
      %5511 = vmatpush1.msra.mxu0 0.0
      %5512 = vmatprep.subr.mxu0 0.0
      %5513 = vmatpush1.msra.mxu0 0.0
      %5514 = vmatprep.subr.mxu0 0.0
      %5515 = vmatpush1.msra.mxu0 0.0
      %5516 = vmatprep.subr.mxu0 0.0
      %5517 = vmatpush1.msra.mxu0 0.0
      %5518 = vmatprep.subr.mxu0 0.0
      %5519 = vmatpush1.msra.mxu0 0.0
      %5520 = vmatprep.subr.mxu0 0.0
      %5521 = vmatpush1.msra.mxu0 0.0
      %5522 = vmatprep.subr.mxu0 0.0
      %5523 = vmatpush1.msra.mxu0 0.0
      %5524 = vmatprep.subr.mxu0 0.0
      %5525 = vmatpush1.msra.mxu0 0.0
      %5526 = vmatprep.subr.mxu0 0.0
      %5527 = vmatpush1.msra.mxu0 0.0
      %5528 = vmatprep.subr.mxu0 0.0
      %5529 = vmatpush1.msra.mxu0 0.0
      %5530 = vmatprep.subr.mxu0 0.0
      %5531 = vmatpush1.msra.mxu0 0.0
      %5532 = vmatprep.subr.mxu0 0.0
      %5533 = vmatpush1.msra.mxu0 0.0
      %5534 = vmatprep.subr.mxu0 0.0
      %5535 = vmatpush1.msra.mxu0 0.0
      %5536 = vmatprep.subr.mxu0 0.0
      %5537 = vmatpush1.msra.mxu0 0.0
      %5538 = vmatprep.subr.mxu0 0.0
      %5539 = vmatpush1.msra.mxu0 0.0
      %5540 = vmatprep.subr.mxu0 0.0
      %5541 = vmatpush1.msra.mxu0 0.0
      %5542 = vmatprep.subr.mxu0 0.0
      %5543 = vmatpush1.msra.mxu0 0.0
      %5544 = vmatprep.subr.mxu0 0.0
      %5545 = vmatpush1.msra.mxu0 0.0
      %5546 = vmatprep.subr.mxu0 0.0
      %5547 = vmatpush1.msra.mxu0 0.0
      %5548 = vmatprep.subr.mxu0 0.0
      %5549 = vmatpush1.msra.mxu0 0.0
      %5550 = vmatprep.subr.mxu0 0.0
      %5551 = vmatpush1.msra.mxu0 0.0
      %5552 = vmatprep.mubr.f32.mxu0 0.0
      %5553 = vmatmul.mubr.f32.gmra.mrb[0].mxu0 %v5324
      %v5554 = vpop.f32.mrb[0].mxu0
      %v5555 = vadd.f32 0.0, %v5554
      %v5556 = vpop.f32.mrb[0].mxu0
      %5557 = vmatprep.mubr.f32.mxu0 0.0
      %5558 = vmatmul.mubr.f32.gmra.mrb[0].mxu0 %v5327
      %v5559 = vpop.f32.mrb[0].mxu0
      %v5560 = vadd.f32 0.0, %v5559
      %v5561 = vpop.f32.mrb[0].mxu0
      %5562 = vmatprep.mubr.f32.mxu0 0.0
      %5563 = vmatmul.mubr.f32.gmra.mrb[0].mxu0 %v5330
      %v5564 = vpop.f32.mrb[0].mxu0
      %v5565 = vadd.f32 0.0, %v5564
      %v5566 = vpop.f32.mrb[0].mxu0
      %5567 = vmatprep.mubr.f32.mxu0 0.0
      %5568 = vmatmul.mubr.f32.gmra.mrb[0].mxu0 %v5333
      %v5569 = vpop.f32.mrb[0].mxu0
      %v5570 = vadd.f32 0.0, %v5569
      %v5571 = vpop.f32.mrb[0].mxu0
      %5572 = vmatprep.mubr.f32.mxu0 0.0
      %5573 = vmatmul.mubr.f32.gmra.mrb[0].mxu0 %v5336
      %v5574 = vpop.f32.mrb[0].mxu0
      %v5575 = vadd.f32 0.0, %v5574
      %v5576 = vpop.f32.mrb[0].mxu0
      %5577 = vmatprep.mubr.f32.mxu0 0.0
      %5578 = vmatmul.mubr.f32.gmra.mrb[0].mxu0 %v5339
      %v5579 = vpop.f32.mrb[0].mxu0
      %v5580 = vadd.f32 0.0, %v5579
      %v5581 = vpop.f32.mrb[0].mxu0
      %5582 = vmatprep.mubr.f32.mxu0 0.0
      %5583 = vmatmul.mubr.f32.gmra.mrb[0].mxu0 %v5342
      %v5584 = vpop.f32.mrb[0].mxu0
      %v5585 = vadd.f32 0.0, %v5584
      %v5586 = vpop.f32.mrb[0].mxu0
      %5587 = vmatprep.mubr.f32.mxu0 0.0
      %5588 = vmatmul.mubr.f32.gmra.mrb[0].mxu0 %v5345
      %v5589 = vpop.f32.mrb[0].mxu0
      %v5590 = vadd.f32 0.0, %v5589
      %v5591 = vpop.f32.mrb[0].mxu0
      %5592 = vmatprep.mubr.f32.mxu0 0.0
      %5593 = vmatmul.mubr.f32.gmra.mrb[0].mxu0 %v5348
      %v5594 = vpop.f32.mrb[0].mxu0
      %v5595 = vadd.f32 0.0, %v5594
      %v5596 = vpop.f32.mrb[0].mxu0
      %5597 = vmatprep.mubr.f32.mxu0 0.0
      %5598 = vmatmul.mubr.f32.gmra.mrb[0].mxu0 %v5351
      %v5599 = vpop.f32.mrb[0].mxu0
      %v5600 = vadd.f32 0.0, %v5599
      %v5601 = vpop.f32.mrb[0].mxu0
      %5602 = vmatprep.mubr.f32.mxu0 0.0
      %5603 = vmatmul.mubr.f32.gmra.mrb[0].mxu0 %v5354
      %v5604 = vpop.f32.mrb[0].mxu0
      %v5605 = vadd.f32 0.0, %v5604
      %v5606 = vpop.f32.mrb[0].mxu0
      %5607 = vmatprep.mubr.f32.mxu0 0.0
      %5608 = vmatmul.mubr.f32.gmra.mrb[0].mxu0 %v5357
      %v5609 = vpop.f32.mrb[0].mxu0
      %v5610 = vadd.f32 0.0, %v5609
      %v5611 = vpop.f32.mrb[0].mxu0
      %5612 = vmatprep.mubr.f32.mxu0 0.0
      %5613 = vmatmul.mubr.f32.gmra.mrb[0].mxu0 %v5360
      %v5614 = vpop.f32.mrb[0].mxu0
      %v5615 = vadd.f32 0.0, %v5614
      %v5616 = vpop.f32.mrb[0].mxu0
      %5617 = vmatprep.mubr.f32.mxu0 0.0
      %5618 = vmatmul.mubr.f32.gmra.mrb[0].mxu0 %v5363
      %v5619 = vpop.f32.mrb[0].mxu0
      %v5620 = vadd.f32 0.0, %v5619
      %v5621 = vpop.f32.mrb[0].mxu0
      %5622 = vmatprep.mubr.f32.mxu0 0.0
      %5623 = vmatmul.mubr.f32.gmra.mrb[0].mxu0 %v5366
      %v5624 = vpop.f32.mrb[0].mxu0
      %v5625 = vadd.f32 0.0, %v5624
      %v5626 = vpop.f32.mrb[0].mxu0
      %5627 = vmatprep.mubr.f32.mxu0 0.0
      %5628 = vmatmul.mubr.f32.gmra.mrb[0].mxu0 %v5369
      %v5629 = vpop.f32.mrb[0].mxu0
      %v5630 = vadd.f32 0.0, %v5629
      %v5631 = vpop.f32.mrb[0].mxu0
      %5632 = vmatprep.mubr.f32.mxu0 0.0
      %5633 = vmatmul.mubr.f32.gmra.mrb[0].mxu0 %v5372
      %v5634 = vpop.f32.mrb[0].mxu0
      %v5635 = vadd.f32 0.0, %v5634
      %v5636 = vpop.f32.mrb[0].mxu0
      %5637 = vmatprep.mubr.f32.mxu0 0.0
      %5638 = vmatmul.mubr.f32.gmra.mrb[0].mxu0 %v5375
      %v5639 = vpop.f32.mrb[0].mxu0
      %v5640 = vadd.f32 0.0, %v5639
      %v5641 = vpop.f32.mrb[0].mxu0
      %5642 = vmatprep.mubr.f32.mxu0 0.0
      %5643 = vmatmul.mubr.f32.gmra.mrb[0].mxu0 %v5378
      %v5644 = vpop.f32.mrb[0].mxu0
      %v5645 = vadd.f32 0.0, %v5644
      %v5646 = vpop.f32.mrb[0].mxu0
      %5647 = vmatprep.mubr.f32.mxu0 0.0
      %5648 = vmatmul.mubr.f32.gmra.mrb[0].mxu0 %v5381
      %v5649 = vpop.f32.mrb[0].mxu0
      %v5650 = vadd.f32 0.0, %v5649
      %v5651 = vpop.f32.mrb[0].mxu0
      %5652 = vmatprep.mubr.f32.mxu0 0.0
      %5653 = vmatmul.mubr.f32.gmra.mrb[0].mxu0 %v5384
      %v5654 = vpop.f32.mrb[0].mxu0
      %v5655 = vadd.f32 0.0, %v5654
      %v5656 = vpop.f32.mrb[0].mxu0
      %5657 = vmatprep.mubr.f32.mxu0 0.0
      %5658 = vmatmul.mubr.f32.gmra.mrb[0].mxu0 %v5387
      %v5659 = vpop.f32.mrb[0].mxu0
      %v5660 = vadd.f32 0.0, %v5659
      %v5661 = vpop.f32.mrb[0].mxu0
      %5662 = vmatprep.mubr.f32.mxu0 0.0
      %5663 = vmatmul.mubr.f32.gmra.mrb[0].mxu0 %v5390
      %v5664 = vpop.f32.mrb[0].mxu0
      %v5665 = vadd.f32 0.0, %v5664
      %v5666 = vpop.f32.mrb[0].mxu0
      %5667 = vmatprep.mubr.f32.mxu0 0.0
      %5668 = vmatmul.mubr.f32.gmra.mrb[0].mxu0 %v5393
      %v5669 = vpop.f32.mrb[0].mxu0
      %v5670 = vadd.f32 0.0, %v5669
      %v5671 = vpop.f32.mrb[0].mxu0
      %5672 = vmatprep.mubr.f32.mxu0 0.0
      %5673 = vmatmul.mubr.f32.gmra.mrb[0].mxu0 %v5396
      %v5674 = vpop.f32.mrb[0].mxu0
      %v5675 = vadd.f32 0.0, %v5674
      %v5676 = vpop.f32.mrb[0].mxu0
      %5677 = vmatprep.mubr.f32.mxu0 0.0
      %5678 = vmatmul.mubr.f32.gmra.mrb[0].mxu0 %v5399
      %v5679 = vpop.f32.mrb[0].mxu0
      %v5680 = vadd.f32 0.0, %v5679
      %v5681 = vpop.f32.mrb[0].mxu0
      %5682 = vmatprep.mubr.f32.mxu0 0.0
      %5683 = vmatmul.mubr.f32.gmra.mrb[0].mxu0 %v5402
      %v5684 = vpop.f32.mrb[0].mxu0
      %v5685 = vadd.f32 0.0, %v5684
      %v5686 = vpop.f32.mrb[0].mxu0
      %5687 = vmatprep.mubr.f32.mxu0 0.0
      %5688 = vmatmul.mubr.f32.gmra.mrb[0].mxu0 %v5405
      %v5689 = vpop.f32.mrb[0].mxu0
      %v5690 = vadd.f32 0.0, %v5689
      %v5691 = vpop.f32.mrb[0].mxu0
      %5692 = vmatprep.mubr.f32.mxu0 0.0
      %5693 = vmatmul.mubr.f32.gmra.mrb[0].mxu0 %v5408
      %v5694 = vpop.f32.mrb[0].mxu0
      %v5695 = vadd.f32 0.0, %v5694
      %v5696 = vpop.f32.mrb[0].mxu0
      %5697 = vmatprep.mubr.f32.mxu0 0.0
      %5698 = vmatmul.mubr.f32.gmra.mrb[0].mxu0 %v5411
      %v5699 = vpop.f32.mrb[0].mxu0
      %v5700 = vadd.f32 0.0, %v5699
      %v5701 = vpop.f32.mrb[0].mxu0
      %5702 = vmatprep.mubr.f32.mxu0 0.0
      %5703 = vmatmul.mubr.f32.gmra.mrb[0].mxu0 %v5414
      %v5704 = vpop.f32.mrb[0].mxu0
      %v5705 = vadd.f32 0.0, %v5704
      %v5706 = vpop.f32.mrb[0].mxu0
      %5707 = vmatprep.mubr.f32.mxu0 0.0
      %5708 = vmatmul.mubr.f32.gmra.mrb[0].mxu0 %v5417
      %v5709 = vpop.f32.mrb[0].mxu0
      %v5710 = vadd.f32 0.0, %v5709
      %v5711 = vpop.f32.mrb[0].mxu0
      %5712 = vmatprep.mubr.f32.mxu0 0.0
      %5713 = vmatmul.mubr.f32.gmra.mrb[0].mxu0 %v5420
      %v5714 = vpop.f32.mrb[0].mxu0
      %v5715 = vadd.f32 0.0, %v5714
      %v5716 = vpop.f32.mrb[0].mxu0
      %5717 = vmatprep.mubr.f32.mxu0 0.0
      %5718 = vmatmul.mubr.f32.gmra.mrb[0].mxu0 %v5423
      %v5719 = vpop.f32.mrb[0].mxu0
      %v5720 = vadd.f32 0.0, %v5719
      %v5721 = vpop.f32.mrb[0].mxu0
      %5722 = vmatprep.mubr.f32.mxu0 0.0
      %5723 = vmatmul.mubr.f32.gmra.mrb[0].mxu0 %v5426
      %v5724 = vpop.f32.mrb[0].mxu0
      %v5725 = vadd.f32 0.0, %v5724
      %v5726 = vpop.f32.mrb[0].mxu0
      %5727 = vmatprep.mubr.f32.mxu0 0.0
      %5728 = vmatmul.mubr.f32.gmra.mrb[0].mxu0 %v5429
      %v5729 = vpop.f32.mrb[0].mxu0
      %v5730 = vadd.f32 0.0, %v5729
      %v5731 = vpop.f32.mrb[0].mxu0
      %5732 = vmatprep.mubr.f32.mxu0 0.0
      %5733 = vmatmul.mubr.f32.gmra.mrb[0].mxu0 %v5432
      %v5734 = vpop.f32.mrb[0].mxu0
      %v5735 = vadd.f32 0.0, %v5734
      %v5736 = vpop.f32.mrb[0].mxu0
      %5737 = vmatprep.mubr.f32.mxu0 0.0
      %5738 = vmatmul.mubr.f32.gmra.mrb[0].mxu0 %v5435
      %v5739 = vpop.f32.mrb[0].mxu0
      %v5740 = vadd.f32 0.0, %v5739
      %v5741 = vpop.f32.mrb[0].mxu0
      %5742 = vmatprep.mubr.f32.mxu0 0.0
      %5743 = vmatmul.mubr.f32.gmra.mrb[0].mxu0 %v5438
      %v5744 = vpop.f32.mrb[0].mxu0
      %v5745 = vadd.f32 0.0, %v5744
      %v5746 = vpop.f32.mrb[0].mxu0
      %5747 = vmatprep.mubr.f32.mxu0 0.0
      %5748 = vmatmul.mubr.f32.gmra.mrb[0].mxu0 %v5441
      %v5749 = vpop.f32.mrb[0].mxu0
      %v5750 = vadd.f32 0.0, %v5749
      %v5751 = vpop.f32.mrb[0].mxu0
      %5752 = vmatprep.mubr.f32.mxu0 0.0
      %5753 = vmatmul.mubr.f32.gmra.mrb[0].mxu0 %v5444
      %v5754 = vpop.f32.mrb[0].mxu0
      %v5755 = vadd.f32 0.0, %v5754
      %v5756 = vpop.f32.mrb[0].mxu0
      %5757 = vmatprep.mubr.f32.mxu0 0.0
      %5758 = vmatmul.mubr.f32.gmra.mrb[0].mxu0 %v5447
      %v5759 = vpop.f32.mrb[0].mxu0
      %v5760 = vadd.f32 0.0, %v5759
      %v5761 = vpop.f32.mrb[0].mxu0
      %5762 = vmatprep.mubr.f32.mxu0 0.0
      %5763 = vmatmul.mubr.f32.gmra.mrb[0].mxu0 %v5450
      %v5764 = vpop.f32.mrb[0].mxu0
      %v5765 = vadd.f32 0.0, %v5764
      %v5766 = vpop.f32.mrb[0].mxu0
      %5767 = vmatprep.mubr.f32.mxu0 0.0
      %5768 = vmatmul.mubr.f32.gmra.mrb[0].mxu0 %v5453
      %v5769 = vpop.f32.mrb[0].mxu0
      %v5770 = vadd.f32 0.0, %v5769
      %v5771 = vpop.f32.mrb[0].mxu0
      %5772 = vmatprep.mubr.f32.mxu0 0.0
      %5773 = vmatmul.mubr.f32.gmra.mrb[0].mxu0 %v5456
      %v5774 = vpop.f32.mrb[0].mxu0
      %v5775 = vadd.f32 0.0, %v5774
      %v5776 = vpop.f32.mrb[0].mxu0
      %5777 = vmatprep.mubr.f32.mxu0 0.0
      %5778 = vmatmul.mubr.f32.gmra.mrb[0].mxu0 %v5459
      %v5779 = vpop.f32.mrb[0].mxu0
      %v5780 = vadd.f32 0.0, %v5779
      %v5781 = vpop.f32.mrb[0].mxu0
      %5782 = vmatprep.mubr.f32.mxu0 0.0
      %5783 = vmatmul.mubr.f32.gmra.mrb[0].mxu0 %v5462
      %v5784 = vpop.f32.mrb[0].mxu0
      %v5785 = vadd.f32 0.0, %v5784
      %v5786 = vpop.f32.mrb[0].mxu0
      %5787 = vmatprep.mubr.f32.mxu0 0.0
      %5788 = vmatmul.mubr.f32.gmra.mrb[0].mxu0 %v5465
      %v5789 = vpop.f32.mrb[0].mxu0
      %v5790 = vadd.f32 0.0, %v5789
      %v5791 = vpop.f32.mrb[0].mxu0
      %5792 = vmatprep.mubr.f32.mxu0 0.0
      %5793 = vmatmul.mubr.f32.gmra.mrb[0].mxu0 %v5468
      %v5794 = vpop.f32.mrb[0].mxu0
      %v5795 = vadd.f32 0.0, %v5794
      %v5796 = vpop.f32.mrb[0].mxu0
      %5797 = vmatprep.mubr.f32.mxu0 0.0
      %5798 = vmatmul.mubr.f32.gmra.mrb[0].mxu0 %v5471
      %v5799 = vpop.f32.mrb[0].mxu0
      %v5800 = vadd.f32 0.0, %v5799
      %v5801 = vpop.f32.mrb[0].mxu0
      %5802 = vmatprep.mubr.f32.mxu0 0.0
      %5803 = vmatmul.mubr.f32.gmra.mrb[0].mxu0 %v5474
      %v5804 = vpop.f32.mrb[0].mxu0
      %v5805 = vadd.f32 0.0, %v5804
      %v5806 = vpop.f32.mrb[0].mxu0
      %5807 = vmatprep.mubr.f32.mxu0 0.0
      %5808 = vmatmul.mubr.f32.gmra.mrb[0].mxu0 %v5477
      %v5809 = vpop.f32.mrb[0].mxu0
      %v5810 = vadd.f32 0.0, %v5809
      %v5811 = vpop.f32.mrb[0].mxu0
      %5812 = vmatprep.mubr.f32.mxu0 0.0
      %5813 = vmatmul.mubr.f32.gmra.mrb[0].mxu0 %v5480
      %v5814 = vpop.f32.mrb[0].mxu0
      %v5815 = vadd.f32 0.0, %v5814
      %v5816 = vpop.f32.mrb[0].mxu0
      %5817 = vmatprep.mubr.f32.mxu0 0.0
      %5818 = vmatmul.mubr.f32.gmra.mrb[0].mxu0 %v5483
      %v5819 = vpop.f32.mrb[0].mxu0
      %v5820 = vadd.f32 0.0, %v5819
      %v5821 = vpop.f32.mrb[0].mxu0
      %5822 = vdwg.mxu0
      %v5823 = vadd.f32 %v4714, %v5555
      %v5824 = vadd.f32 %v4715, %v5560
      %v5825 = vadd.f32 %v4716, %v5565
      %v5826 = vadd.f32 %v4717, %v5570
      %v5827 = vadd.f32 %v4718, %v5575
      %v5828 = vadd.f32 %v4719, %v5580
      %v5829 = vadd.f32 %v4720, %v5585
      %v5830 = vadd.f32 %v4721, %v5590
      %v5831 = vadd.f32 %v4722, %v5595
      %v5832 = vadd.f32 %v4723, %v5600
      %v5833 = vadd.f32 %v4724, %v5605
      %v5834 = vadd.f32 %v4725, %v5610
      %v5835 = vadd.f32 %v4726, %v5615
      %v5836 = vadd.f32 %v4727, %v5620
      %v5837 = vadd.f32 %v4728, %v5625
      %v5838 = vadd.f32 %v4729, %v5630
      %v5839 = vadd.f32 %v4730, %v5635
      %v5840 = vadd.f32 %v4731, %v5640
      %v5841 = vadd.f32 %v4732, %v5645
      %v5842 = vadd.f32 %v4733, %v5650
      %v5843 = vadd.f32 %v4734, %v5655
      %v5844 = vadd.f32 %v4735, %v5660
      %v5845 = vadd.f32 %v4736, %v5665
      %v5846 = vadd.f32 %v4737, %v5670
      %v5847 = vadd.f32 %v4738, %v5675
      %v5848 = vadd.f32 %v4739, %v5680
      %v5849 = vadd.f32 %v4740, %v5685
      %v5850 = vadd.f32 %v4741, %v5690
      %v5851 = vadd.f32 %v4742, %v5695
      %v5852 = vadd.f32 %v4743, %v5700
      %v5853 = vadd.f32 %v4744, %v5705
      %v5854 = vadd.f32 %v4745, %v5710
      %v5855 = vadd.f32 %v4746, %v5715
      %v5856 = vadd.f32 %v4747, %v5720
      %v5857 = vadd.f32 %v4748, %v5725
      %v5858 = vadd.f32 %v4749, %v5730
      %v5859 = vadd.f32 %v4750, %v5735
      %v5860 = vadd.f32 %v4751, %v5740
      %v5861 = vadd.f32 %v4752, %v5745
      %v5862 = vadd.f32 %v4753, %v5750
      %v5863 = vadd.f32 %v4754, %v5755
      %v5864 = vadd.f32 %v4755, %v5760
      %v5865 = vadd.f32 %v4756, %v5765
      %v5866 = vadd.f32 %v4757, %v5770
      %v5867 = vadd.f32 %v4758, %v5775
      %v5868 = vadd.f32 %v4759, %v5780
      %v5869 = vadd.f32 %v4760, %v5785
      %v5870 = vadd.f32 %v4761, %v5790
      %v5871 = vadd.f32 %v4762, %v5795
      %v5872 = vadd.f32 %v4763, %v5800
      %v5873 = vadd.f32 %v4764, %v5805
      %v5874 = vadd.f32 %v4765, %v5810
      %v5875 = vadd.f32 %v4766, %v5815
      %v5876 = vadd.f32 %v4767, %v5820
      %vm5877 = vcmask 441344
      %5878 = vst.msk [vmem:[%s494] sm:$0xff] %vm5877, %v5823
      %5879 = vst.msk [vmem:[%s494 + $0x8] sm:$0xff] %vm5877, %v5824
      %5880 = vst.msk [vmem:[%s494 + $0x10] sm:$0xff] %vm5877, %v5825
      %5881 = vst.msk [vmem:[%s494 + $0x18] sm:$0xff] %vm5877, %v5826
      %5882 = vst.msk [vmem:[%s494 + $0x20] sm:$0xff] %vm5877, %v5827
      %5883 = vst.msk [vmem:[%s494 + $0x28] sm:$0xff] %vm5877, %v5828
      %5884 = vst.msk [vmem:[%s494 + $0x30] sm:$0xff] %vm5877, %v5829
      %5885 = vst.msk [vmem:[%s494 + $0x38] sm:$0xff] %vm5877, %v5830
      %5886 = vst.msk [vmem:[%s494 + $0x40] sm:$0xff] %vm5877, %v5831
      %5887 = vst.msk [vmem:[%s494 + $0x48] sm:$0xff] %vm5877, %v5832
      %5888 = vst.msk [vmem:[%s494 + $0x50] sm:$0xff] %vm5877, %v5833
      %5889 = vst.msk [vmem:[%s494 + $0x58] sm:$0xff] %vm5877, %v5834
      %5890 = vst.msk [vmem:[%s494 + $0x60] sm:$0xff] %vm5877, %v5835
      %5891 = vst.msk [vmem:[%s494 + $0x68] sm:$0xff] %vm5877, %v5836
      %5892 = vst.msk [vmem:[%s494 + $0x70] sm:$0xff] %vm5877, %v5837
      %5893 = vst.msk [vmem:[%s494 + $0x78] sm:$0xff] %vm5877, %v5838
      %5894 = vst.msk [vmem:[%s494 + $0x80] sm:$0xff] %vm5877, %v5839
      %5895 = vst.msk [vmem:[%s494 + $0x88] sm:$0xff] %vm5877, %v5840
      %5896 = vst.msk [vmem:[%s494 + $0x90] sm:$0xff] %vm5877, %v5841
      %5897 = vst.msk [vmem:[%s494 + $0x98] sm:$0xff] %vm5877, %v5842
      %5898 = vst.msk [vmem:[%s494 + $0xa0] sm:$0xff] %vm5877, %v5843
      %5899 = vst.msk [vmem:[%s494 + $0xa8] sm:$0xff] %vm5877, %v5844
      %5900 = vst.msk [vmem:[%s494 + $0xb0] sm:$0xff] %vm5877, %v5845
      %5901 = vst.msk [vmem:[%s494 + $0xb8] sm:$0xff] %vm5877, %v5846
      %5902 = vst.msk [vmem:[%s494 + $0xc0] sm:$0xff] %vm5877, %v5847
      %5903 = vst.msk [vmem:[%s494 + $0xc8] sm:$0xff] %vm5877, %v5848
      %5904 = vst.msk [vmem:[%s494 + $0xd0] sm:$0xff] %vm5877, %v5849
      %5905 = vst.msk [vmem:[%s494 + $0xd8] sm:$0xff] %vm5877, %v5850
      %5906 = vst.msk [vmem:[%s494 + $0xe0] sm:$0xff] %vm5877, %v5851
      %5907 = vst.msk [vmem:[%s494 + $0xe8] sm:$0xff] %vm5877, %v5852
      %5908 = vst.msk [vmem:[%s494 + $0xf0] sm:$0xff] %vm5877, %v5853
      %5909 = vst.msk [vmem:[%s494 + $0xf8] sm:$0xff] %vm5877, %v5854
      %5910 = vst.msk [vmem:[%s494 + $0x100] sm:$0xff] %vm5877, %v5855
      %5911 = vst.msk [vmem:[%s494 + $0x108] sm:$0xff] %vm5877, %v5856
      %5912 = vst.msk [vmem:[%s494 + $0x110] sm:$0xff] %vm5877, %v5857
      %5913 = vst.msk [vmem:[%s494 + $0x118] sm:$0xff] %vm5877, %v5858
      %5914 = vst.msk [vmem:[%s494 + $0x120] sm:$0xff] %vm5877, %v5859
      %5915 = vst.msk [vmem:[%s494 + $0x128] sm:$0xff] %vm5877, %v5860
      %5916 = vst.msk [vmem:[%s494 + $0x130] sm:$0xff] %vm5877, %v5861
      %5917 = vst.msk [vmem:[%s494 + $0x138] sm:$0xff] %vm5877, %v5862
      %5918 = vst.msk [vmem:[%s494 + $0x140] sm:$0xff] %vm5877, %v5863
      %5919 = vst.msk [vmem:[%s494 + $0x148] sm:$0xff] %vm5877, %v5864
      %5920 = vst.msk [vmem:[%s494 + $0x150] sm:$0xff] %vm5877, %v5865
      %5921 = vst.msk [vmem:[%s494 + $0x158] sm:$0xff] %vm5877, %v5866
      %5922 = vst.msk [vmem:[%s494 + $0x160] sm:$0xff] %vm5877, %v5867
      %5923 = vst.msk [vmem:[%s494 + $0x168] sm:$0xff] %vm5877, %v5868
      %5924 = vst.msk [vmem:[%s494 + $0x170] sm:$0xff] %vm5877, %v5869
      %5925 = vst.msk [vmem:[%s494 + $0x178] sm:$0xff] %vm5877, %v5870
      %5926 = vst.msk [vmem:[%s494 + $0x180] sm:$0xff] %vm5877, %v5871
      %5927 = vst.msk [vmem:[%s494 + $0x188] sm:$0xff] %vm5877, %v5872
      %5928 = vst.msk [vmem:[%s494 + $0x190] sm:$0xff] %vm5877, %v5873
      %5929 = vst.msk [vmem:[%s494 + $0x198] sm:$0xff] %vm5877, %v5874
      %5930 = vst.msk [vmem:[%s494 + $0x1a0] sm:$0xff] %vm5877, %v5875
      %5931 = vst.msk [vmem:[%s494 + $0x1a8] sm:$0xff] %vm5877, %v5876
      %p5932 = scmp.lt.s32.totalorder %s26, 1
      %s5933 = scalar_select %p5932, %s26, 1
      %s5934 = smul.addr %s5933, 54
      %s5935 = smul.addr %s5934, 8
      %s5936 = scalar_lea.vmem %s15, %s5935
      // Predicated region
      $region81: #{_lambda_.1} parent=79 // pred_check
        %p5937 = pneg %p364
      $region82: #{_lambda_.1} parent=79 // pred_check_branch
        %5939 = sbr.rel (%p5937) target = $region84
      $region83: #{_lambda_.1} parent=79 // pred_region
        _
      $region84: #{_lambda_.1} parent=79 // pred_fallthru
        _
    $region80: #{_lambda_.1} parent=5 // pred_fallthru
      _
    %p5940 = scmp.le.s32.totalorder 2, %s21
    // Predicated region
    $region85: #{_lambda_.1} parent=5 // pred_check
      %p5941 = pneg %p5940
    $region86: #{_lambda_.1} parent=5 // pred_check_branch
      %5943 = sbr.rel (%p5941) target = $region88
    $region87: #{_lambda_.1} parent=5 // pred_region
      %s5944 = ssub.s32 %s21, 2
      // Predicated region
      $region89: #{_lambda_.1} parent=87 // pred_check
        %p5945 = pneg %p370
      $region90: #{_lambda_.1} parent=87 // pred_check_branch
        %5947 = sbr.rel (%p5945) target = $region92
      $region91: #{_lambda_.1} parent=87 // pred_region
        %p5948 = scmp.lt.s32.totalorder %s27, 1
        %s5949 = scalar_select %p5948, %s27, 1
        %s5950 = smul.addr %s5949, 54
        %s5951 = smul.addr %s5950, 8
        %s5952 = scalar_lea.vmem %s15, %s5951
      $region92: #{_lambda_.1} parent=87 // pred_fallthru
        _
    $region88: #{_lambda_.1} parent=5 // pred_fallthru
      _
  $region6: #{_lambda_.1} parent=0 // loop_footer
    %s25 = sadd.s32 1, %s21
  $region7: #{_lambda_.1} parent=0 // loop_footer_branch
    %20 = sbr.rel target = $region3
  $region8: #{_lambda_.1} parent=0 // loop_exit
    _

</llo_original>
